<compile_context>
chip_gen: v7x
topology: tpu7x:2x2x1
jax: 0.10.0
libtpu: 0.0.40
codegen_flags: <defaults>
</compile_context>

<pallas_src>
import functools

import jax
import jax.numpy as jnp
from jax.experimental import pallas as pl
from jax.experimental.pallas import tpu as pltpu

LRELU_SLOPE = 0.2     # nn.LeakyReLU(0.2)
BN_EPS = 1e-5         # nn.BatchNorm3d default eps
TM_MAX = 1024         # max lane tile (output positions per block)
TK_MAX = 512          # max contraction tile


def _round_up(x, m):
    return ((x + m - 1) // m) * m


# ------------------------------- Pallas kernel ------------------------------ #

def _conv_block_kernel(lhs_ref, w_ref, scale_ref, shift_ref, *refs,
                       apply_affine, pre_act, compute_stats, m_real, tm):
    """Fused conv block in transposed / lane-dense layout.

    lhs_ref:   (TK, TM)       bf16  im2col patches of the previous RAW activation
    w_ref:     (Cout_pad, TK) bf16  conv weights (resident across the M axis)
    scale_ref: (TK, 1)        f32   previous layer's BN scale per patch row
    shift_ref: (TK, 1)        f32   previous layer's BN shift per patch row
    outputs:   y (Cout_pad, TM); optionally sum / sumsq partials (1, Cout_pad, 1)
    scratch:   acc (Cout_pad, TM) f32
    """
    if compute_stats:
        y_ref, sum_ref, sq_ref, acc_ref = refs
    else:
        y_ref, acc_ref = refs

    i = pl.program_id(0)          # M tile   ("parallel")
    k = pl.program_id(1)          # K tile   ("arbitrary", reduction — last axis)

    @pl.when(k == 0)
    def _init():
        acc_ref[...] = jnp.zeros_like(acc_ref)

    # Previous layer's BatchNorm affine + LeakyReLU applied to the patches in f32.
    # Both are pointwise, so they commute with replication padding and patch
    # extraction — VPU filler hidden under the MXU.
    if apply_affine or pre_act:
        x = lhs_ref[...].astype(jnp.float32)
        if apply_affine:
            x = x * scale_ref[...] + shift_ref[...]
        if pre_act:
            x = jnp.where(x >= 0, x, LRELU_SLOPE * x)
        a = x.astype(jnp.bfloat16)
    else:
        a = lhs_ref[...]

    acc_ref[...] += jnp.dot(w_ref[...], a, preferred_element_type=jnp.float32)

    @pl.when(k == pl.num_programs(1) - 1)
    def _finalize():
        y = acc_ref[...]                              # (Cout_pad, TM) f32
        y_ref[...] = y.astype(y_ref.dtype)
        if compute_stats:
            # Per-channel partials for training-mode BatchNorm3d, from the f32
            # accumulator.  Ragged M tail masked explicitly (does not rely on
            # zero padding).  One-pass E[x^2]-E[x]^2 in f32 — acceptable here;
            # TODO(synk): Welford / two-pass if mean >> std at production scale.
            cpad = y.shape[0]
            col = jax.lax.broadcasted_iota(jnp.int32, (cpad, tm), 1)
            valid = (i * tm + col) < m_real
            ym = jnp.where(valid, y, 0.0)
            sum_ref[...] = jnp.sum(ym, axis=1, keepdims=True).reshape(1, cpad, 1)
            sq_ref[...] = jnp.sum(ym * ym, axis=1, keepdims=True).reshape(1, cpad, 1)


# --------------------------- layout glue (XLA side) -------------------------- #

def _replication_pad3d_cf(x, pad):
    # x: (C, N, D, H, W); pad = (Wl, Wr, Hl, Hr, Dl, Dr) (ReplicationPad3d order).
    wl, wr, hl, hr, dl, dr = pad
    return jnp.pad(x, ((0, 0), (0, 0), (dl, dr), (hl, hr), (wl, wr)), mode="edge")


def _extract_patches_cf(xp, ksize, strides):
    # Transposed im2col: (C, N, Dp, Hp, Wp) -> (K, M) with K ordered (kd, kh, kw)
    # major, cin minor — matching the (Cout, kd, kh, kw, Cin) weight layout.
    kD, kH, kW = ksize
    sD, sH, sW = strides
    c, n, dp, hp, wp = xp.shape
    do = (dp - kD) // sD + 1
    ho = (hp - kH) // sH + 1
    wo = (wp - kW) // sW + 1
    taps = []
    for kd in range(kD):
        for kh in range(kH):
            for kw in range(kW):
                taps.append(xp[:, :,
                               kd:kd + sD * (do - 1) + 1:sD,
                               kh:kh + sH * (ho - 1) + 1:sH,
                               kw:kw + sW * (wo - 1) + 1:sW])
    patches = jnp.stack(taps, axis=0)            # (T, C, N, Do, Ho, Wo)
    k = kD * kH * kW * c
    return patches.reshape(k, n * do * ho * wo), (n, do, ho, wo)


# ------------------------------ kernel wrapper ------------------------------- #

def conv_block(x_cf, w_t, *, ksize, strides, pad, pre_affine, pre_act,
               compute_stats, out_dtype):
    """ReplicationPad3d -> [prev BN affine + LeakyReLU fused in-kernel] -> Conv3d
    -> [BatchNorm batch-stat partials].  x_cf: (Cin, N, D, H, W), w_t: (Cout, K)."""
    cin = x_cf.shape[0]
    cout, kdim = w_t.shape
    taps = ksize[0] * ksize[1] * ksize[2]
    assert kdim == taps * cin

    xp = _replication_pad3d_cf(x_cf, pad)
    lhs, (n, do, ho, wo) = _extract_patches_cf(xp, ksize, strides)
    m = n * do * ho * wo

    tm = min(_round_up(m, 128), TM_MAX)
    m_pad = _round_up(m, tm)
    tk = min(_round_up(kdim, 128), TK_MAX)
    k_pad = _round_up(kdim, tk)
    c_sub = 16 if out_dtype == jnp.bfloat16 else 8
    cout_pad = _round_up(cout, c_sub)
    num_m, num_k = m_pad // tm, k_pad // tk

    # Built directly at padded size (single producer).  Zero K rows hit zero
    # weight columns; padded M columns are masked in the stats and sliced off.
    lhs = jnp.pad(lhs.astype(jnp.bfloat16), ((0, k_pad - kdim), (0, m_pad - m)))
    w_p = jnp.pad(w_t, ((0, cout_pad - cout), (0, k_pad - kdim)))

    if pre_affine is None:
        scale_rows = jnp.zeros((k_pad, 1), jnp.float32)   # unused in-kernel
        shift_rows = jnp.zeros((k_pad, 1), jnp.float32)
        apply_affine = False
    else:
        scale_c, shift_c = pre_affine                      # (Cin, 1) f32 each
        scale_rows = jnp.pad(jnp.tile(scale_c.astype(jnp.float32), (taps, 1)),
                             ((0, k_pad - kdim), (0, 0)))
        shift_rows = jnp.pad(jnp.tile(shift_c.astype(jnp.float32), (taps, 1)),
                             ((0, k_pad - kdim), (0, 0)))
        apply_affine = True

    kernel = functools.partial(
        _conv_block_kernel, apply_affine=apply_affine, pre_act=pre_act,
        compute_stats=compute_stats, m_real=m, tm=tm)

    out_shape = [jax.ShapeDtypeStruct((cout_pad, m_pad), out_dtype)]
    out_specs = [pl.BlockSpec((cout_pad, tm), lambda i, k: (0, i))]
    if compute_stats:
        out_shape += [jax.ShapeDtypeStruct((num_m, cout_pad, 1), jnp.float32),
                      jax.ShapeDtypeStruct((num_m, cout_pad, 1), jnp.float32)]
        out_specs += [pl.BlockSpec((1, cout_pad, 1), lambda i, k: (i, 0, 0)),
                      pl.BlockSpec((1, cout_pad, 1), lambda i, k: (i, 0, 0))]

    results = pl.pallas_call(
        kernel,
        out_shape=tuple(out_shape),
        grid_spec=pltpu.PrefetchScalarGridSpec(
            num_scalar_prefetch=0,
            grid=(num_m, num_k),
            in_specs=[
                pl.BlockSpec((tk, tm), lambda i, k: (k, i)),        # patches (bf16)
                pl.BlockSpec((cout_pad, tk), lambda i, k: (0, k)),  # weights (bf16)
                pl.BlockSpec((tk, 1), lambda i, k: (k, 0)),         # prev BN scale
                pl.BlockSpec((tk, 1), lambda i, k: (k, 0)),         # prev BN shift
            ],
            out_specs=tuple(out_specs),
            scratch_shapes=[pltpu.VMEM((cout_pad, tm), jnp.float32)],
        ),
        compiler_params=pltpu.CompilerParams(
            dimension_semantics=("parallel", "arbitrary")),
    )(lhs, w_p, scale_rows, shift_rows)

    if compute_stats:
        y, psum, psq = results
        s = jnp.sum(psum, axis=0)[:cout]        # (Cout, 1)
        sq = jnp.sum(psq, axis=0)[:cout]
        stats = (s, sq, float(m))
    else:
        y = results[0] if isinstance(results, (tuple, list)) else results
        stats = None

    y = y[:cout, :m].reshape(cout, n, do, ho, wo)
    return y, stats


# --------------------------- model params / forward -------------------------- #

def _conv_weight(key, cin, cout, ksize):
    # PyTorch Conv3d weight (Cout, Cin, kD, kH, kW), deterministically initialized,
    # re-laid-out to (Cout, kD*kH*kW*Cin) to match the im2col tap order; bf16 for MXU.
    kd, kh, kw = ksize
    fan_in = cin * kd * kh * kw
    w = jax.random.normal(key, (cout, cin, kd, kh, kw), jnp.float32) / jnp.sqrt(fan_in)
    w_t = jnp.transpose(w, (0, 2, 3, 4, 1)).reshape(cout, kd * kh * kw * cin)
    return w_t.astype(jnp.bfloat16)


def init_params(key, input_nc, ndf, n_layers, max_ndf):
    params = {}
    keys = jax.random.split(key, n_layers + 2)
    params["conv0"] = _conv_weight(keys[0], input_nc, ndf, (3, 3, 3))
    nf = ndf
    for n in range(n_layers):
        nf_prev = nf
        nf = min(nf * 2, max_ndf)
        params[f"conv{n + 1}"] = _conv_weight(keys[n + 1], nf_prev, nf, (3, 3, 3))
        params[f"bn{n + 1}_gamma"] = jnp.ones((nf,), jnp.float32)   # BatchNorm3d default init
        params[f"bn{n + 1}_beta"] = jnp.zeros((nf,), jnp.float32)
    nf = min(nf * 2, max_ndf)  # module quirk; consistent because of the max_ndf cap
    params["conv_final"] = _conv_weight(keys[n_layers + 1], nf, 1, (1, 3, 3))
    return params


def nlayer_discriminator_forward(params, x_ncdhw, n_layers):
    # input (N, C, D, H, W) like PyTorch; output (N, 1, D, H', W').
    x = jnp.transpose(x_ncdhw, (1, 0, 2, 3, 4)).astype(jnp.bfloat16)   # (C, N, D, H, W)

    # block 0: ReplicationPad3d(1,...) -> Conv3d(k=3, s=(1,2,2), no bias).
    # Its LeakyReLU(0.2) is deferred and fused into the next conv kernel (pointwise
    # ops commute with replication padding / patch extraction).
    x, _ = conv_block(x, params["conv0"], ksize=(3, 3, 3), strides=(1, 2, 2),
                      pad=(1, 1, 1, 1, 1, 1), pre_affine=None, pre_act=False,
                      compute_stats=False, out_dtype=jnp.bfloat16)

    pre_affine = None   # block 0 has no BN; pre_act covers its LeakyReLU
    for n in range(n_layers):
        y, (s, sq, m) = conv_block(
            x, params[f"conv{n + 1}"], ksize=(3, 3, 3), strides=(1, 2, 2),
            pad=(1, 1, 1, 1, 1, 1), pre_affine=pre_affine, pre_act=True,
            compute_stats=True, out_dtype=jnp.bfloat16)
        # BatchNorm3d, training-mode batch statistics (biased variance, no running
        # stats), folded into a per-channel scale/shift for the next conv kernel.
        mean = s / m
        var = sq / m - mean * mean
        inv_std = 1.0 / jnp.sqrt(var + BN_EPS)
        gamma = params[f"bn{n + 1}_gamma"][:, None]
        beta = params[f"bn{n + 1}_beta"][:, None]
        scale_c = gamma * inv_std
        shift_c = beta - mean * scale_c
        pre_affine = (scale_c, shift_c)     # fused (with LeakyReLU) into next conv
        x = y

    # final: ReplicationPad3d(1,1,1,1,0,0) -> Conv3d(nf -> 1, k=(1,3,3), s=1, no bias)
    out, _ = conv_block(x, params["conv_final"], ksize=(1, 3, 3), strides=(1, 1, 1),
                        pad=(1, 1, 1, 1, 0, 0), pre_affine=pre_affine, pre_act=True,
                        compute_stats=False, out_dtype=jnp.float32)
    return jnp.transpose(out, (1, 0, 2, 3, 4))   # (1,N,D,H,W) -> (N,1,D,H,W)


# ----------------------------------- main ------------------------------------ #

if __name__ == "__main__":
    key = jax.random.PRNGKey(0)
    k_in, k_par = jax.random.split(key)

    # small shapes: N=2, input_nc=4, D=5, H=W=16; ndf=8, n_layers=2, max_ndf=16
    N, C, D, H, W = 2, 4, 5, 16, 16
    NDF, NLAYERS, MAX_NDF = 8, 2, 16

    x = jax.random.normal(k_in, (N, C, D, H, W), jnp.float32)
    params = init_params(k_par, input_nc=C, ndf=NDF, n_layers=NLAYERS, max_ndf=MAX_NDF)

    fwd = jax.jit(functools.partial(nlayer_discriminator_forward, n_layers=NLAYERS))
    out = fwd(params, x)
    jax.block_until_ready(out)

    assert out.shape == (N, 1, D, 2, 2), out.shape
    assert bool(jnp.all(jnp.isfinite(out)))
    print("KERNEL_OK")
</pallas_src>

<mosaic_0001>
module attributes {stable_mosaic.version = 11 : i64} {
  func.func @_conv_block_kernel(%arg0: i32, %arg1: i32, %arg2: memref<128x640xbf16, #tpu.memory_space<vmem>>, %arg3: memref<16x128xbf16, #tpu.memory_space<vmem>>, %arg4: memref<128x1xf32, #tpu.memory_space<vmem>>, %arg5: memref<128x1xf32, #tpu.memory_space<vmem>>, %arg6: memref<16x640xbf16, #tpu.memory_space<vmem>>, %arg7: memref<16x640xf32, #tpu.memory_space<vmem>>) attributes {dimension_semantics = [#tpu.dimension_semantics<parallel>, #tpu.dimension_semantics<arbitrary>], iteration_bounds = array<i64: 1, 1>, scalar_prefetch = 0 : i64, scratch_operands = 1 : i64, tpu.core_type = #tpu.core_type<tc>, window_params = [{transform_indices = @transform_0, window_bounds = array<i64: 128, 640>}, {transform_indices = @transform_1, window_bounds = array<i64: 16, 128>}, {transform_indices = @transform_2, window_bounds = array<i64: 128, 1>}, {transform_indices = @transform_3, window_bounds = array<i64: 128, 1>}, {transform_indices = @transform_4, window_bounds = array<i64: 16, 640>}]} {
    %c0_i32 = arith.constant 0 : i32
    %0 = arith.cmpi eq, %arg1, %c0_i32 : i32
    %1 = arith.extui %0 : i1 to i32
    %c0_i32_0 = arith.constant 0 : i32
    %2 = arith.cmpi ne, %1, %c0_i32_0 : i32
    scf.if %2 {
      %cst_10 = arith.constant 0.000000e+00 : f32
      %12 = vector.broadcast %cst_10 : f32 to vector<16x640xf32>
      %c0_11 = arith.constant 0 : index
      %c0_12 = arith.constant 0 : index
      %13 = vector.load %arg7[%c0_11, %c0_12] : memref<16x640xf32, #tpu.memory_space<vmem>>, vector<16x640xf32>
      tpu.vector_store %arg7[%c0_11, %c0_12], %12 {strides = array<i32>} : memref<16x640xf32, #tpu.memory_space<vmem>>, vector<16x640xf32>,
    } else {
    }
    %c0 = arith.constant 0 : index
    %c0_1 = arith.constant 0 : index
    %3 = vector.load %arg2[%c0, %c0_1] : memref<128x640xbf16, #tpu.memory_space<vmem>>, vector<128x640xbf16>
    %c0_2 = arith.constant 0 : index
    %c0_3 = arith.constant 0 : index
    %4 = vector.load %arg7[%c0_2, %c0_3] : memref<16x640xf32, #tpu.memory_space<vmem>>, vector<16x640xf32>
    %c0_4 = arith.constant 0 : index
    %c0_5 = arith.constant 0 : index
    %5 = vector.load %arg3[%c0_4, %c0_5] : memref<16x128xbf16, #tpu.memory_space<vmem>>, vector<16x128xbf16>
    %cst = arith.constant dense<0.000000e+00> : vector<16x640xf32>
    %6 = tpu.matmul %5, %3, %cst {dimension_numbers = #tpu.dot_dimension_numbers<[1], [0], [0], [1], [0, 0, 1, 1], [], []>} : vector<16x128xbf16>, vector<128x640xbf16>, vector<16x640xf32> -> vector<16x640xf32>
    %7 = arith.addf %4, %6 : vector<16x640xf32>
    %c0_6 = arith.constant 0 : index
    %c0_7 = arith.constant 0 : index
    %8 = vector.load %arg7[%c0_6, %c0_7] : memref<16x640xf32, #tpu.memory_space<vmem>>, vector<16x640xf32>
    tpu.vector_store %arg7[%c0_6, %c0_7], %7 {strides = array<i32>} : memref<16x640xf32, #tpu.memory_space<vmem>>, vector<16x640xf32>,
    %c0_i32_8 = arith.constant 0 : i32
    %9 = arith.cmpi eq, %arg1, %c0_i32_8 : i32
    %10 = arith.extui %9 : i1 to i32
    %c0_i32_9 = arith.constant 0 : i32
    %11 = arith.cmpi ne, %10, %c0_i32_9 : i32
    scf.if %11 {
      %c0_10 = arith.constant 0 : index
      %c0_11 = arith.constant 0 : index
      %12 = vector.load %arg7[%c0_10, %c0_11] : memref<16x640xf32, #tpu.memory_space<vmem>>, vector<16x640xf32>
      %13 = arith.truncf %12 : vector<16x640xf32> to vector<16x640xbf16>
      %c0_12 = arith.constant 0 : index
      %c0_13 = arith.constant 0 : index
      %14 = vector.load %arg6[%c0_12, %c0_13] : memref<16x640xbf16, #tpu.memory_space<vmem>>, vector<16x640xbf16>
      tpu.vector_store %arg6[%c0_12, %c0_13], %13 {strides = array<i32>} : memref<16x640xbf16, #tpu.memory_space<vmem>>, vector<16x640xbf16>,
    } else {
    }
    return
  }
  func.func @transform_0(%arg0: i32, %arg1: i32) -> (i32, i32) {
    %c0_i32 = arith.constant 0 : i32
    return %arg1, %arg0 : i32, i32
  }
  func.func @transform_1(%arg0: i32, %arg1: i32) -> (i32, i32) {
    %c0_i32 = arith.constant 0 : i32
    %c0_i32_0 = arith.constant 0 : i32
    return %c0_i32, %arg1 : i32, i32
  }
  func.func @transform_2(%arg0: i32, %arg1: i32) -> (i32, i32) {
    %c0_i32 = arith.constant 0 : i32
    %c0_i32_0 = arith.constant 0 : i32
    return %arg1, %c0_i32 : i32, i32
  }
  func.func @transform_3(%arg0: i32, %arg1: i32) -> (i32, i32) {
    %c0_i32 = arith.constant 0 : i32
    %c0_i32_0 = arith.constant 0 : i32
    return %arg1, %c0_i32 : i32, i32
  }
  func.func @transform_4(%arg0: i32, %arg1: i32) -> (i32, i32) {
    %c0_i32 = arith.constant 0 : i32
    %c0_i32_0 = arith.constant 0 : i32
    return %c0_i32, %arg0 : i32, i32
  }
}

module attributes {stable_mosaic.version = 11 : i64} {
  func.func @_conv_block_kernel(%arg0: i32, %arg1: i32, %arg2: memref<256x256xbf16, #tpu.memory_space<vmem>>, %arg3: memref<16x256xbf16, #tpu.memory_space<vmem>>, %arg4: memref<256x1xf32, #tpu.memory_space<vmem>>, %arg5: memref<256x1xf32, #tpu.memory_space<vmem>>, %arg6: memref<16x256xbf16, #tpu.memory_space<vmem>>, %arg7: memref<1x16x1xf32, #tpu.memory_space<vmem>>, %arg8: memref<1x16x1xf32, #tpu.memory_space<vmem>>, %arg9: memref<16x256xf32, #tpu.memory_space<vmem>>) attributes {dimension_semantics = [#tpu.dimension_semantics<parallel>, #tpu.dimension_semantics<arbitrary>], iteration_bounds = array<i64: 1, 1>, scalar_prefetch = 0 : i64, scratch_operands = 1 : i64, tpu.core_type = #tpu.core_type<tc>, window_params = [{transform_indices = @transform_0, window_bounds = array<i64: 256, 256>}, {transform_indices = @transform_1, window_bounds = array<i64: 16, 256>}, {transform_indices = @transform_2, window_bounds = array<i64: 256, 1>}, {transform_indices = @transform_3, window_bounds = array<i64: 256, 1>}, {transform_indices = @transform_4, window_bounds = array<i64: 16, 256>}, {transform_indices = @transform_5, window_bounds = array<i64: 1, 16, 1>}, {transform_indices = @transform_6, window_bounds = array<i64: 1, 16, 1>}]} {
    %c0_i32 = arith.constant 0 : i32
    %0 = arith.cmpi eq, %arg1, %c0_i32 : i32
    %1 = arith.extui %0 : i1 to i32
    %c0_i32_0 = arith.constant 0 : i32
    %2 = arith.cmpi ne, %1, %c0_i32_0 : i32
    scf.if %2 {
      %cst_12 = arith.constant 0.000000e+00 : f32
      %19 = vector.broadcast %cst_12 : f32 to vector<16x256xf32>
      %c0_13 = arith.constant 0 : index
      %c0_14 = arith.constant 0 : index
      %20 = vector.load %arg9[%c0_13, %c0_14] : memref<16x256xf32, #tpu.memory_space<vmem>>, vector<16x256xf32>
      tpu.vector_store %arg9[%c0_13, %c0_14], %19 {strides = array<i32>} : memref<16x256xf32, #tpu.memory_space<vmem>>, vector<16x256xf32>,
    } else {
    }
    %c0 = arith.constant 0 : index
    %c0_1 = arith.constant 0 : index
    %3 = vector.load %arg2[%c0, %c0_1] : memref<256x256xbf16, #tpu.memory_space<vmem>>, vector<256x256xbf16>
    %4 = arith.extf %3 : vector<256x256xbf16> to vector<256x256xf32>
    %cst = arith.constant 0.000000e+00 : f32
    %5 = vector.broadcast %cst : f32 to vector<256x256xf32>
    %6 = arith.cmpf oge, %4, %5 : vector<256x256xf32>
    %cst_2 = arith.constant 2.000000e-01 : f32
    %7 = vector.broadcast %cst_2 : f32 to vector<256x256xf32>
    %8 = arith.mulf %7, %4 : vector<256x256xf32>
    %9 = arith.select %6, %4, %8 : vector<256x256xi1>, vector<256x256xf32>
    %10 = arith.truncf %9 : vector<256x256xf32> to vector<256x256xbf16>
    %c0_3 = arith.constant 0 : index
    %c0_4 = arith.constant 0 : index
    %11 = vector.load %arg9[%c0_3, %c0_4] : memref<16x256xf32, #tpu.memory_space<vmem>>, vector<16x256xf32>
    %c0_5 = arith.constant 0 : index
    %c0_6 = arith.constant 0 : index
    %12 = vector.load %arg3[%c0_5, %c0_6] : memref<16x256xbf16, #tpu.memory_space<vmem>>, vector<16x256xbf16>
    %cst_7 = arith.constant dense<0.000000e+00> : vector<16x256xf32>
    %13 = tpu.matmul %12, %10, %cst_7 {dimension_numbers = #tpu.dot_dimension_numbers<[1], [0], [0], [1], [0, 0, 1, 1], [], []>} : vector<16x256xbf16>, vector<256x256xbf16>, vector<16x256xf32> -> vector<16x256xf32>
    %14 = arith.addf %11, %13 : vector<16x256xf32>
    %c0_8 = arith.constant 0 : index
    %c0_9 = arith.constant 0 : index
    %15 = vector.load %arg9[%c0_8, %c0_9] : memref<16x256xf32, #tpu.memory_space<vmem>>, vector<16x256xf32>
    tpu.vector_store %arg9[%c0_8, %c0_9], %14 {strides = array<i32>} : memref<16x256xf32, #tpu.memory_space<vmem>>, vector<16x256xf32>,
    %c0_i32_10 = arith.constant 0 : i32
    %16 = arith.cmpi eq, %arg1, %c0_i32_10 : i32
    %17 = arith.extui %16 : i1 to i32
    %c0_i32_11 = arith.constant 0 : i32
    %18 = arith.cmpi ne, %17, %c0_i32_11 : i32
    scf.if %18 {
      %c0_12 = arith.constant 0 : index
      %c0_13 = arith.constant 0 : index
      %19 = vector.load %arg9[%c0_12, %c0_13] : memref<16x256xf32, #tpu.memory_space<vmem>>, vector<16x256xf32>
      %20 = arith.truncf %19 : vector<16x256xf32> to vector<16x256xbf16>
      %c0_14 = arith.constant 0 : index
      %c0_15 = arith.constant 0 : index
      %21 = vector.load %arg6[%c0_14, %c0_15] : memref<16x256xbf16, #tpu.memory_space<vmem>>, vector<16x256xbf16>
      tpu.vector_store %arg6[%c0_14, %c0_15], %20 {strides = array<i32>} : memref<16x256xbf16, #tpu.memory_space<vmem>>, vector<16x256xbf16>,
      %22 = tpu.iota {dimensions = array<i32: 1>} : vector<16x256xi32>
      %c256_i32 = arith.constant 256 : i32
      %23 = arith.muli %arg0, %c256_i32 : i32
      %24 = vector.broadcast %23 : i32 to vector<16x256xi32>
      %25 = arith.addi %24, %22 : vector<16x256xi32>
      %c160_i32 = arith.constant 160 : i32
      %26 = vector.broadcast %c160_i32 : i32 to vector<16x256xi32>
      %27 = arith.cmpi slt, %25, %26 : vector<16x256xi32>
      %cst_16 = arith.constant 0.000000e+00 : f32
      %28 = vector.broadcast %cst_16 : f32 to vector<16x256xf32>
      %29 = arith.select %27, %19, %28 : vector<16x256xi1>, vector<16x256xf32>
      %cst_17 = arith.constant dense<0.000000e+00> : vector<16xf32>
      %30 = vector.multi_reduction <add>, %29, %cst_17 [1] : vector<16x256xf32> to vector<16xf32>
      %31 = vector.shape_cast %30 : vector<16xf32> to vector<16x1xf32>
      %32 = vector.shape_cast %31 : vector<16x1xf32> to vector<1x16x1xf32>
      %c0_18 = arith.constant 0 : index
      %c0_19 = arith.constant 0 : index
      %c0_20 = arith.constant 0 : index
      %33 = vector.load %arg7[%c0_18, %c0_19, %c0_20] : memref<1x16x1xf32, #tpu.memory_space<vmem>>, vector<1x16x1xf32>
      tpu.vector_store %arg7[%c0_18, %c0_19, %c0_20], %32 {strides = array<i32>} : memref<1x16x1xf32, #tpu.memory_space<vmem>>, vector<1x16x1xf32>,
      %34 = arith.mulf %29, %29 : vector<16x256xf32>
      %cst_21 = arith.constant dense<0.000000e+00> : vector<16xf32>
      %35 = vector.multi_reduction <add>, %34, %cst_21 [1] : vector<16x256xf32> to vector<16xf32>
      %36 = vector.shape_cast %35 : vector<16xf32> to vector<16x1xf32>
      %37 = vector.shape_cast %36 : vector<16x1xf32> to vector<1x16x1xf32>
      %c0_22 = arith.constant 0 : index
      %c0_23 = arith.constant 0 : index
      %c0_24 = arith.constant 0 : index
      %38 = vector.load %arg8[%c0_22, %c0_23, %c0_24] : memref<1x16x1xf32, #tpu.memory_space<vmem>>, vector<1x16x1xf32>
      tpu.vector_store %arg8[%c0_22, %c0_23, %c0_24], %37 {strides = array<i32>} : memref<1x16x1xf32, #tpu.memory_space<vmem>>, vector<1x16x1xf32>,
    } else {
    }
    return
  }
  func.func @transform_0(%arg0: i32, %arg1: i32) -> (i32, i32) {
    %c0_i32 = arith.constant 0 : i32
    return %arg1, %arg0 : i32, i32
  }
  func.func @transform_1(%arg0: i32, %arg1: i32) -> (i32, i32) {
    %c0_i32 = arith.constant 0 : i32
    %c0_i32_0 = arith.constant 0 : i32
    return %c0_i32, %arg1 : i32, i32
  }
  func.func @transform_2(%arg0: i32, %arg1: i32) -> (i32, i32) {
    %c0_i32 = arith.constant 0 : i32
    %c0_i32_0 = arith.constant 0 : i32
    return %arg1, %c0_i32 : i32, i32
  }
  func.func @transform_3(%arg0: i32, %arg1: i32) -> (i32, i32) {
    %c0_i32 = arith.constant 0 : i32
    %c0_i32_0 = arith.constant 0 : i32
    return %arg1, %c0_i32 : i32, i32
  }
  func.func @transform_4(%arg0: i32, %arg1: i32) -> (i32, i32) {
    %c0_i32 = arith.constant 0 : i32
    %c0_i32_0 = arith.constant 0 : i32
    return %c0_i32, %arg0 : i32, i32
  }
  func.func @transform_5(%arg0: i32, %arg1: i32) -> (i32, i32, i32) {
    %c0_i32 = arith.constant 0 : i32
    %c0_i32_0 = arith.constant 0 : i32
    %c0_i32_1 = arith.constant 0 : i32
    return %arg0, %c0_i32, %c0_i32_0 : i32, i32, i32
  }
  func.func @transform_6(%arg0: i32, %arg1: i32) -> (i32, i32, i32) {
    %c0_i32 = arith.constant 0 : i32
    %c0_i32_0 = arith.constant 0 : i32
    %c0_i32_1 = arith.constant 0 : i32
    return %arg0, %c0_i32, %c0_i32_0 : i32, i32, i32
  }
}

module attributes {stable_mosaic.version = 11 : i64} {
  func.func @_conv_block_kernel(%arg0: i32, %arg1: i32, %arg2: memref<512x128xbf16, #tpu.memory_space<vmem>>, %arg3: memref<16x512xbf16, #tpu.memory_space<vmem>>, %arg4: memref<512x1xf32, #tpu.memory_space<vmem>>, %arg5: memref<512x1xf32, #tpu.memory_space<vmem>>, %arg6: memref<16x128xbf16, #tpu.memory_space<vmem>>, %arg7: memref<1x16x1xf32, #tpu.memory_space<vmem>>, %arg8: memref<1x16x1xf32, #tpu.memory_space<vmem>>, %arg9: memref<16x128xf32, #tpu.memory_space<vmem>>) attributes {dimension_semantics = [#tpu.dimension_semantics<parallel>, #tpu.dimension_semantics<arbitrary>], iteration_bounds = array<i64: 1, 1>, scalar_prefetch = 0 : i64, scratch_operands = 1 : i64, tpu.core_type = #tpu.core_type<tc>, window_params = [{transform_indices = @transform_0, window_bounds = array<i64: 512, 128>}, {transform_indices = @transform_1, window_bounds = array<i64: 16, 512>}, {transform_indices = @transform_2, window_bounds = array<i64: 512, 1>}, {transform_indices = @transform_3, window_bounds = array<i64: 512, 1>}, {transform_indices = @transform_4, window_bounds = array<i64: 16, 128>}, {transform_indices = @transform_5, window_bounds = array<i64: 1, 16, 1>}, {transform_indices = @transform_6, window_bounds = array<i64: 1, 16, 1>}]} {
    %c0_i32 = arith.constant 0 : i32
    %0 = arith.cmpi eq, %arg1, %c0_i32 : i32
    %1 = arith.extui %0 : i1 to i32
    %c0_i32_0 = arith.constant 0 : i32
    %2 = arith.cmpi ne, %1, %c0_i32_0 : i32
    scf.if %2 {
      %cst_16 = arith.constant 0.000000e+00 : f32
      %25 = vector.broadcast %cst_16 : f32 to vector<16x128xf32>
      %c0_17 = arith.constant 0 : index
      %c0_18 = arith.constant 0 : index
      %26 = vector.load %arg9[%c0_17, %c0_18] : memref<16x128xf32, #tpu.memory_space<vmem>>, vector<16x128xf32>
      tpu.vector_store %arg9[%c0_17, %c0_18], %25 {strides = array<i32>} : memref<16x128xf32, #tpu.memory_space<vmem>>, vector<16x128xf32>,
    } else {
    }
    %c0 = arith.constant 0 : index
    %c0_1 = arith.constant 0 : index
    %3 = vector.load %arg2[%c0, %c0_1] : memref<512x128xbf16, #tpu.memory_space<vmem>>, vector<512x128xbf16>
    %4 = arith.extf %3 : vector<512x128xbf16> to vector<512x128xf32>
    %c0_2 = arith.constant 0 : index
    %c0_3 = arith.constant 0 : index
    %5 = vector.load %arg4[%c0_2, %c0_3] : memref<512x1xf32, #tpu.memory_space<vmem>>, vector<512x1xf32>
    %6 = vector.broadcast %5 : vector<512x1xf32> to vector<512x128xf32>
    %7 = arith.mulf %4, %6 : vector<512x128xf32>
    %c0_4 = arith.constant 0 : index
    %c0_5 = arith.constant 0 : index
    %8 = vector.load %arg5[%c0_4, %c0_5] : memref<512x1xf32, #tpu.memory_space<vmem>>, vector<512x1xf32>
    %9 = vector.broadcast %8 : vector<512x1xf32> to vector<512x128xf32>
    %10 = arith.addf %7, %9 : vector<512x128xf32>
    %cst = arith.constant 0.000000e+00 : f32
    %11 = vector.broadcast %cst : f32 to vector<512x128xf32>
    %12 = arith.cmpf oge, %10, %11 : vector<512x128xf32>
    %cst_6 = arith.constant 2.000000e-01 : f32
    %13 = vector.broadcast %cst_6 : f32 to vector<512x128xf32>
    %14 = arith.mulf %13, %10 : vector<512x128xf32>
    %15 = arith.select %12, %10, %14 : vector<512x128xi1>, vector<512x128xf32>
    %16 = arith.truncf %15 : vector<512x128xf32> to vector<512x128xbf16>
    %c0_7 = arith.constant 0 : index
    %c0_8 = arith.constant 0 : index
    %17 = vector.load %arg9[%c0_7, %c0_8] : memref<16x128xf32, #tpu.memory_space<vmem>>, vector<16x128xf32>
    %c0_9 = arith.constant 0 : index
    %c0_10 = arith.constant 0 : index
    %18 = vector.load %arg3[%c0_9, %c0_10] : memref<16x512xbf16, #tpu.memory_space<vmem>>, vector<16x512xbf16>
    %cst_11 = arith.constant dense<0.000000e+00> : vector<16x128xf32>
    %19 = tpu.matmul %18, %16, %cst_11 {dimension_numbers = #tpu.dot_dimension_numbers<[1], [0], [0], [1], [0, 0, 1, 1], [], []>} : vector<16x512xbf16>, vector<512x128xbf16>, vector<16x128xf32> -> vector<16x128xf32>
    %20 = arith.addf %17, %19 : vector<16x128xf32>
    %c0_12 = arith.constant 0 : index
    %c0_13 = arith.constant 0 : index
    %21 = vector.load %arg9[%c0_12, %c0_13] : memref<16x128xf32, #tpu.memory_space<vmem>>, vector<16x128xf32>
    tpu.vector_store %arg9[%c0_12, %c0_13], %20 {strides = array<i32>} : memref<16x128xf32, #tpu.memory_space<vmem>>, vector<16x128xf32>,
    %c0_i32_14 = arith.constant 0 : i32
    %22 = arith.cmpi eq, %arg1, %c0_i32_14 : i32
    %23 = arith.extui %22 : i1 to i32
    %c0_i32_15 = arith.constant 0 : i32
    %24 = arith.cmpi ne, %23, %c0_i32_15 : i32
    scf.if %24 {
      %c0_16 = arith.constant 0 : index
      %c0_17 = arith.constant 0 : index
      %25 = vector.load %arg9[%c0_16, %c0_17] : memref<16x128xf32, #tpu.memory_space<vmem>>, vector<16x128xf32>
      %26 = arith.truncf %25 : vector<16x128xf32> to vector<16x128xbf16>
      %c0_18 = arith.constant 0 : index
      %c0_19 = arith.constant 0 : index
      %27 = vector.load %arg6[%c0_18, %c0_19] : memref<16x128xbf16, #tpu.memory_space<vmem>>, vector<16x128xbf16>
      tpu.vector_store %arg6[%c0_18, %c0_19], %26 {strides = array<i32>} : memref<16x128xbf16, #tpu.memory_space<vmem>>, vector<16x128xbf16>,
      %28 = tpu.iota {dimensions = array<i32: 1>} : vector<16x128xi32>
      %c128_i32 = arith.constant 128 : i32
      %29 = arith.muli %arg0, %c128_i32 : i32
      %30 = vector.broadcast %29 : i32 to vector<16x128xi32>
      %31 = arith.addi %30, %28 : vector<16x128xi32>
      %c40_i32 = arith.constant 40 : i32
      %32 = vector.broadcast %c40_i32 : i32 to vector<16x128xi32>
      %33 = arith.cmpi slt, %31, %32 : vector<16x128xi32>
      %cst_20 = arith.constant 0.000000e+00 : f32
      %34 = vector.broadcast %cst_20 : f32 to vector<16x128xf32>
      %35 = arith.select %33, %25, %34 : vector<16x128xi1>, vector<16x128xf32>
      %cst_21 = arith.constant dense<0.000000e+00> : vector<16xf32>
      %36 = vector.multi_reduction <add>, %35, %cst_21 [1] : vector<16x128xf32> to vector<16xf32>
      %37 = vector.shape_cast %36 : vector<16xf32> to vector<16x1xf32>
      %38 = vector.shape_cast %37 : vector<16x1xf32> to vector<1x16x1xf32>
      %c0_22 = arith.constant 0 : index
      %c0_23 = arith.constant 0 : index
      %c0_24 = arith.constant 0 : index
      %39 = vector.load %arg7[%c0_22, %c0_23, %c0_24] : memref<1x16x1xf32, #tpu.memory_space<vmem>>, vector<1x16x1xf32>
      tpu.vector_store %arg7[%c0_22, %c0_23, %c0_24], %38 {strides = array<i32>} : memref<1x16x1xf32, #tpu.memory_space<vmem>>, vector<1x16x1xf32>,
      %40 = arith.mulf %35, %35 : vector<16x128xf32>
      %cst_25 = arith.constant dense<0.000000e+00> : vector<16xf32>
      %41 = vector.multi_reduction <add>, %40, %cst_25 [1] : vector<16x128xf32> to vector<16xf32>
      %42 = vector.shape_cast %41 : vector<16xf32> to vector<16x1xf32>
      %43 = vector.shape_cast %42 : vector<16x1xf32> to vector<1x16x1xf32>
      %c0_26 = arith.constant 0 : index
      %c0_27 = arith.constant 0 : index
      %c0_28 = arith.constant 0 : index
      %44 = vector.load %arg8[%c0_26, %c0_27, %c0_28] : memref<1x16x1xf32, #tpu.memory_space<vmem>>, vector<1x16x1xf32>
      tpu.vector_store %arg8[%c0_26, %c0_27, %c0_28], %43 {strides = array<i32>} : memref<1x16x1xf32, #tpu.memory_space<vmem>>, vector<1x16x1xf32>,
    } else {
    }
    return
  }
  func.func @transform_0(%arg0: i32, %arg1: i32) -> (i32, i32) {
    %c0_i32 = arith.constant 0 : i32
    return %arg1, %arg0 : i32, i32
  }
  func.func @transform_1(%arg0: i32, %arg1: i32) -> (i32, i32) {
    %c0_i32 = arith.constant 0 : i32
    %c0_i32_0 = arith.constant 0 : i32
    return %c0_i32, %arg1 : i32, i32
  }
  func.func @transform_2(%arg0: i32, %arg1: i32) -> (i32, i32) {
    %c0_i32 = arith.constant 0 : i32
    %c0_i32_0 = arith.constant 0 : i32
    return %arg1, %c0_i32 : i32, i32
  }
  func.func @transform_3(%arg0: i32, %arg1: i32) -> (i32, i32) {
    %c0_i32 = arith.constant 0 : i32
    %c0_i32_0 = arith.constant 0 : i32
    return %arg1, %c0_i32 : i32, i32
  }
  func.func @transform_4(%arg0: i32, %arg1: i32) -> (i32, i32) {
    %c0_i32 = arith.constant 0 : i32
    %c0_i32_0 = arith.constant 0 : i32
    return %c0_i32, %arg0 : i32, i32
  }
  func.func @transform_5(%arg0: i32, %arg1: i32) -> (i32, i32, i32) {
    %c0_i32 = arith.constant 0 : i32
    %c0_i32_0 = arith.constant 0 : i32
    %c0_i32_1 = arith.constant 0 : i32
    return %arg0, %c0_i32, %c0_i32_0 : i32, i32, i32
  }
  func.func @transform_6(%arg0: i32, %arg1: i32) -> (i32, i32, i32) {
    %c0_i32 = arith.constant 0 : i32
    %c0_i32_0 = arith.constant 0 : i32
    %c0_i32_1 = arith.constant 0 : i32
    return %arg0, %c0_i32, %c0_i32_0 : i32, i32, i32
  }
}

module attributes {stable_mosaic.version = 11 : i64} {
  func.func @_conv_block_kernel(%arg0: i32, %arg1: i32, %arg2: memref<256x128xbf16, #tpu.memory_space<vmem>>, %arg3: memref<8x256xbf16, #tpu.memory_space<vmem>>, %arg4: memref<256x1xf32, #tpu.memory_space<vmem>>, %arg5: memref<256x1xf32, #tpu.memory_space<vmem>>, %arg6: memref<8x128xf32, #tpu.memory_space<vmem>>, %arg7: memref<8x128xf32, #tpu.memory_space<vmem>>) attributes {dimension_semantics = [#tpu.dimension_semantics<parallel>, #tpu.dimension_semantics<arbitrary>], iteration_bounds = array<i64: 1, 1>, scalar_prefetch = 0 : i64, scratch_operands = 1 : i64, tpu.core_type = #tpu.core_type<tc>, window_params = [{transform_indices = @transform_0, window_bounds = array<i64: 256, 128>}, {transform_indices = @transform_1, window_bounds = array<i64: 8, 256>}, {transform_indices = @transform_2, window_bounds = array<i64: 256, 1>}, {transform_indices = @transform_3, window_bounds = array<i64: 256, 1>}, {transform_indices = @transform_4, window_bounds = array<i64: 8, 128>}]} {
    %c0_i32 = arith.constant 0 : i32
    %0 = arith.cmpi eq, %arg1, %c0_i32 : i32
    %1 = arith.extui %0 : i1 to i32
    %c0_i32_0 = arith.constant 0 : i32
    %2 = arith.cmpi ne, %1, %c0_i32_0 : i32
    scf.if %2 {
      %cst_16 = arith.constant 0.000000e+00 : f32
      %25 = vector.broadcast %cst_16 : f32 to vector<8x128xf32>
      %c0_17 = arith.constant 0 : index
      %c0_18 = arith.constant 0 : index
      %26 = vector.load %arg7[%c0_17, %c0_18] : memref<8x128xf32, #tpu.memory_space<vmem>>, vector<8x128xf32>
      tpu.vector_store %arg7[%c0_17, %c0_18], %25 {strides = array<i32>} : memref<8x128xf32, #tpu.memory_space<vmem>>, vector<8x128xf32>,
    } else {
    }
    %c0 = arith.constant 0 : index
    %c0_1 = arith.constant 0 : index
    %3 = vector.load %arg2[%c0, %c0_1] : memref<256x128xbf16, #tpu.memory_space<vmem>>, vector<256x128xbf16>
    %4 = arith.extf %3 : vector<256x128xbf16> to vector<256x128xf32>
    %c0_2 = arith.constant 0 : index
    %c0_3 = arith.constant 0 : index
    %5 = vector.load %arg4[%c0_2, %c0_3] : memref<256x1xf32, #tpu.memory_space<vmem>>, vector<256x1xf32>
    %6 = vector.broadcast %5 : vector<256x1xf32> to vector<256x128xf32>
    %7 = arith.mulf %4, %6 : vector<256x128xf32>
    %c0_4 = arith.constant 0 : index
    %c0_5 = arith.constant 0 : index
    %8 = vector.load %arg5[%c0_4, %c0_5] : memref<256x1xf32, #tpu.memory_space<vmem>>, vector<256x1xf32>
    %9 = vector.broadcast %8 : vector<256x1xf32> to vector<256x128xf32>
    %10 = arith.addf %7, %9 : vector<256x128xf32>
    %cst = arith.constant 0.000000e+00 : f32
    %11 = vector.broadcast %cst : f32 to vector<256x128xf32>
    %12 = arith.cmpf oge, %10, %11 : vector<256x128xf32>
    %cst_6 = arith.constant 2.000000e-01 : f32
    %13 = vector.broadcast %cst_6 : f32 to vector<256x128xf32>
    %14 = arith.mulf %13, %10 : vector<256x128xf32>
    %15 = arith.select %12, %10, %14 : vector<256x128xi1>, vector<256x128xf32>
    %16 = arith.truncf %15 : vector<256x128xf32> to vector<256x128xbf16>
    %c0_7 = arith.constant 0 : index
    %c0_8 = arith.constant 0 : index
    %17 = vector.load %arg7[%c0_7, %c0_8] : memref<8x128xf32, #tpu.memory_space<vmem>>, vector<8x128xf32>
    %c0_9 = arith.constant 0 : index
    %c0_10 = arith.constant 0 : index
    %18 = vector.load %arg3[%c0_9, %c0_10] : memref<8x256xbf16, #tpu.memory_space<vmem>>, vector<8x256xbf16>
    %cst_11 = arith.constant dense<0.000000e+00> : vector<8x128xf32>
    %19 = tpu.matmul %18, %16, %cst_11 {dimension_numbers = #tpu.dot_dimension_numbers<[1], [0], [0], [1], [0, 0, 1, 1], [], []>} : vector<8x256xbf16>, vector<256x128xbf16>, vector<8x128xf32> -> vector<8x128xf32>
    %20 = arith.addf %17, %19 : vector<8x128xf32>
    %c0_12 = arith.constant 0 : index
    %c0_13 = arith.constant 0 : index
    %21 = vector.load %arg7[%c0_12, %c0_13] : memref<8x128xf32, #tpu.memory_space<vmem>>, vector<8x128xf32>
    tpu.vector_store %arg7[%c0_12, %c0_13], %20 {strides = array<i32>} : memref<8x128xf32, #tpu.memory_space<vmem>>, vector<8x128xf32>,
    %c0_i32_14 = arith.constant 0 : i32
    %22 = arith.cmpi eq, %arg1, %c0_i32_14 : i32
    %23 = arith.extui %22 : i1 to i32
    %c0_i32_15 = arith.constant 0 : i32
    %24 = arith.cmpi ne, %23, %c0_i32_15 : i32
    scf.if %24 {
      %c0_16 = arith.constant 0 : index
      %c0_17 = arith.constant 0 : index
      %25 = vector.load %arg7[%c0_16, %c0_17] : memref<8x128xf32, #tpu.memory_space<vmem>>, vector<8x128xf32>
      %c0_18 = arith.constant 0 : index
      %c0_19 = arith.constant 0 : index
      %26 = vector.load %arg6[%c0_18, %c0_19] : memref<8x128xf32, #tpu.memory_space<vmem>>, vector<8x128xf32>
      tpu.vector_store %arg6[%c0_18, %c0_19], %25 {strides = array<i32>} : memref<8x128xf32, #tpu.memory_space<vmem>>, vector<8x128xf32>,
    } else {
    }
    return
  }
  func.func @transform_0(%arg0: i32, %arg1: i32) -> (i32, i32) {
    %c0_i32 = arith.constant 0 : i32
    return %arg1, %arg0 : i32, i32
  }
  func.func @transform_1(%arg0: i32, %arg1: i32) -> (i32, i32) {
    %c0_i32 = arith.constant 0 : i32
    %c0_i32_0 = arith.constant 0 : i32
    return %c0_i32, %arg1 : i32, i32
  }
  func.func @transform_2(%arg0: i32, %arg1: i32) -> (i32, i32) {
    %c0_i32 = arith.constant 0 : i32
    %c0_i32_0 = arith.constant 0 : i32
    return %arg1, %c0_i32 : i32, i32
  }
  func.func @transform_3(%arg0: i32, %arg1: i32) -> (i32, i32) {
    %c0_i32 = arith.constant 0 : i32
    %c0_i32_0 = arith.constant 0 : i32
    return %arg1, %c0_i32 : i32, i32
  }
  func.func @transform_4(%arg0: i32, %arg1: i32) -> (i32, i32) {
    %c0_i32 = arith.constant 0 : i32
    %c0_i32_0 = arith.constant 0 : i32
    return %c0_i32, %arg0 : i32, i32
  }
}

</mosaic_0001>

<llo_original>
// kernel: nlayer_discriminator_forward.4
$region0: #{nlayer_discriminator_forward.4}
  #allocation0 [shape = 'u32[]', space=smem, size = 0x4, offset = 0x4, fixed_abs, tag = 'smem constant byte address 0x4 - core index']
  #allocation1 [shape = 'u32[144,128]{1,0:T(1,128)}', space=vmem, size = 0x12000, scoped, tag = 'internal scratch']
  #allocation2 [shape = 'f32[16,640]{1,0:T(8,128)}', space=vmem, size = 0xa000, scoped, tag = 'scratch operand']
  %s0 = inlined_call_operand.vmem [shape: bf16[128,640], index: 0, kind: input, shape index: {}]
  %s1 = inlined_call_operand.vmem [shape: bf16[16,128], index: 1, kind: input, shape index: {}]
  %s2 = inlined_call_operand.vmem [shape: f32[128,1], index: 2, kind: input, shape index: {}, may-alias: {2,3}]
  %s3 = inlined_call_operand.vmem [shape: f32[128,1], index: 3, kind: input, shape index: {}, may-alias: {2,3}]
  %s4 = inlined_call_operand.vmem [shape: bf16[16,640], index: 4, kind: output, shape index: {}]
  %s5 = sld [smem:[#allocation0]]
  $region34: #{nlayer_discriminator_forward.4} parent=0
    _
  %s7 = ssub.s32 1, %s5
  %s8 = scalar_select 0, %s7, %s5
  // Predicated region
  $region2: #{nlayer_discriminator_forward.4} parent=0 // pred_check
    _
  $region3: #{nlayer_discriminator_forward.4} parent=0 // pred_check_branch
    %10 = sbr.rel (0) target = $region5
  $region4: #{nlayer_discriminator_forward.4} parent=0 // pred_region
    _
  $region5: #{nlayer_discriminator_forward.4} parent=0 // pred_fallthru
    _
  // Predicated region
  $region6: #{nlayer_discriminator_forward.4} parent=0 // pred_check
    _
  $region7: #{nlayer_discriminator_forward.4} parent=0 // pred_check_branch
    %12 = sbr.rel (0) target = $region9
  $region8: #{nlayer_discriminator_forward.4} parent=0 // pred_region
    _
  $region9: #{nlayer_discriminator_forward.4} parent=0 // pred_fallthru
    _
  // Predicated region
  $region10: #{nlayer_discriminator_forward.4} parent=0 // pred_check
    _
  $region11: #{nlayer_discriminator_forward.4} parent=0 // pred_check_branch
    %14 = sbr.rel (0) target = $region13
  $region12: #{nlayer_discriminator_forward.4} parent=0 // pred_region
    _
  $region13: #{nlayer_discriminator_forward.4} parent=0 // pred_fallthru
    _
  // Predicated region
  $region14: #{nlayer_discriminator_forward.4} parent=0 // pred_check
    _
  $region15: #{nlayer_discriminator_forward.4} parent=0 // pred_check_branch
    %16 = sbr.rel (0) target = $region17
  $region16: #{nlayer_discriminator_forward.4} parent=0 // pred_region
    _
  $region17: #{nlayer_discriminator_forward.4} parent=0 // pred_fallthru
    _
  %p18 = scmp.eq.s32.totalorder 0, 0
  // Predicated region
  $region18: #{nlayer_discriminator_forward.4} parent=0 // pred_check
    %p19 = pneg %p18
  $region19: #{nlayer_discriminator_forward.4} parent=0 // pred_check_branch
    %21 = sbr.rel (%p19) target = $region21
  $region20: #{nlayer_discriminator_forward.4} parent=0 // pred_region
    %22 = vst [vmem:[#allocation2] sm:$0xff] 0.0
    %23 = vst [vmem:[#allocation2 + $0x8] sm:$0xff] 0.0
    %24 = vst [vmem:[#allocation2 + $0x10] sm:$0xff] 0.0
    %25 = vst [vmem:[#allocation2 + $0x18] sm:$0xff] 0.0
    %26 = vst [vmem:[#allocation2 + $0x20] sm:$0xff] 0.0
    %27 = vst [vmem:[#allocation2 + $0x28] sm:$0xff] 0.0
    %28 = vst [vmem:[#allocation2 + $0x30] sm:$0xff] 0.0
    %29 = vst [vmem:[#allocation2 + $0x38] sm:$0xff] 0.0
    %30 = vst [vmem:[#allocation2 + $0x40] sm:$0xff] 0.0
    %31 = vst [vmem:[#allocation2 + $0x48] sm:$0xff] 0.0
  $region21: #{nlayer_discriminator_forward.4} parent=0 // pred_fallthru
    _
  %v32 = vld [vmem:[%s0] sm:$0xff]
  %v33 = vld [vmem:[%s0 + $0x8] sm:$0xff]
  %v34 = vld [vmem:[%s0 + $0x10] sm:$0xf]
  %v35 = vld [vmem:[%s0 + $0x14] sm:$0xff]
  %v36 = vld [vmem:[%s0 + $0x1c] sm:$0xff]
  %v37 = vld [vmem:[%s0 + $0x24] sm:$0xf]
  %v38 = vld [vmem:[%s0 + $0x28] sm:$0xff]
  %v39 = vld [vmem:[%s0 + $0x30] sm:$0xff]
  %v40 = vld [vmem:[%s0 + $0x38] sm:$0xf]
  %v41 = vld [vmem:[%s0 + $0x3c] sm:$0xff]
  %v42 = vld [vmem:[%s0 + $0x44] sm:$0xff]
  %v43 = vld [vmem:[%s0 + $0x4c] sm:$0xf]
  %v44 = vld [vmem:[%s0 + $0x50] sm:$0xff]
  %v45 = vld [vmem:[%s0 + $0x58] sm:$0xff]
  %v46 = vld [vmem:[%s0 + $0x60] sm:$0xf]
  %v47 = vld [vmem:[%s0 + $0x64] sm:$0xff]
  %v48 = vld [vmem:[%s0 + $0x6c] sm:$0xff]
  %v49 = vld [vmem:[%s0 + $0x74] sm:$0xf]
  %v50 = vld [vmem:[%s0 + $0x78] sm:$0xff]
  %v51 = vld [vmem:[%s0 + $0x80] sm:$0xff]
  %v52 = vld [vmem:[%s0 + $0x88] sm:$0xf]
  %v53 = vld [vmem:[%s0 + $0x8c] sm:$0xff]
  %v54 = vld [vmem:[%s0 + $0x94] sm:$0xff]
  %v55 = vld [vmem:[%s0 + $0x9c] sm:$0xf]
  %v56 = vld [vmem:[%s0 + $0xa0] sm:$0xff]
  %v57 = vld [vmem:[%s0 + $0xa8] sm:$0xff]
  %v58 = vld [vmem:[%s0 + $0xb0] sm:$0xf]
  %v59 = vld [vmem:[%s0 + $0xb4] sm:$0xff]
  %v60 = vld [vmem:[%s0 + $0xbc] sm:$0xff]
  %v61 = vld [vmem:[%s0 + $0xc4] sm:$0xf]
  %v62 = vld [vmem:[%s0 + $0xc8] sm:$0xff]
  %v63 = vld [vmem:[%s0 + $0xd0] sm:$0xff]
  %v64 = vld [vmem:[%s0 + $0xd8] sm:$0xf]
  %v65 = vld [vmem:[%s0 + $0xdc] sm:$0xff]
  %v66 = vld [vmem:[%s0 + $0xe4] sm:$0xff]
  %v67 = vld [vmem:[%s0 + $0xec] sm:$0xf]
  %v68 = vld [vmem:[%s0 + $0xf0] sm:$0xff]
  %v69 = vld [vmem:[%s0 + $0xf8] sm:$0xff]
  %v70 = vld [vmem:[%s0 + $0x100] sm:$0xf]
  %v71 = vld [vmem:[%s0 + $0x104] sm:$0xff]
  %v72 = vld [vmem:[%s0 + $0x10c] sm:$0xff]
  %v73 = vld [vmem:[%s0 + $0x114] sm:$0xf]
  %v74 = vld [vmem:[%s0 + $0x118] sm:$0xff]
  %v75 = vld [vmem:[%s0 + $0x120] sm:$0xff]
  %v76 = vld [vmem:[%s0 + $0x128] sm:$0xf]
  %v77 = vld [vmem:[%s0 + $0x12c] sm:$0xff]
  %v78 = vld [vmem:[%s0 + $0x134] sm:$0xff]
  %v79 = vld [vmem:[%s0 + $0x13c] sm:$0xf]
  %v80 = vld [vmem:[#allocation2] sm:$0xff]
  %v81 = vld [vmem:[#allocation2 + $0x8] sm:$0xff]
  %v82 = vld [vmem:[#allocation2 + $0x10] sm:$0xff]
  %v83 = vld [vmem:[#allocation2 + $0x18] sm:$0xff]
  %v84 = vld [vmem:[#allocation2 + $0x20] sm:$0xff]
  %v85 = vld [vmem:[#allocation2 + $0x28] sm:$0xff]
  %v86 = vld [vmem:[#allocation2 + $0x30] sm:$0xff]
  %v87 = vld [vmem:[#allocation2 + $0x38] sm:$0xff]
  %v88 = vld [vmem:[#allocation2 + $0x40] sm:$0xff]
  %v89 = vld [vmem:[#allocation2 + $0x48] sm:$0xff]
  %v90 = vld [vmem:[%s1] sm:$0xf]
  %v91 = vld [vmem:[%s1 + $0x4] sm:$0xf]
  %v94 = vunpack.c.l.b16 %v90
  %v95 = vunpack.c.l.b16 %v91
  %v96 = vpack.c.b16 %v95, %v94
  %v146 = vunpack.c.l.b16 %v32
  %v147 = vunpack.c.h.b16 %v32
  %v148 = vunpack.c.l.b16 %v33
  %v149 = vunpack.c.h.b16 %v33
  %v150 = vunpack.c.l.b16 %v34
  %v151 = vunpack.c.l.b16 %v35
  %v152 = vunpack.c.h.b16 %v35
  %v153 = vunpack.c.l.b16 %v36
  %v154 = vunpack.c.h.b16 %v36
  %v155 = vunpack.c.l.b16 %v37
  %v156 = vunpack.c.l.b16 %v38
  %v157 = vunpack.c.h.b16 %v38
  %v158 = vunpack.c.l.b16 %v39
  %v159 = vunpack.c.h.b16 %v39
  %v160 = vunpack.c.l.b16 %v40
  %v161 = vunpack.c.l.b16 %v41
  %v162 = vunpack.c.h.b16 %v41
  %v163 = vunpack.c.l.b16 %v42
  %v164 = vunpack.c.h.b16 %v42
  %v165 = vunpack.c.l.b16 %v43
  %v166 = vunpack.c.l.b16 %v44
  %v167 = vunpack.c.h.b16 %v44
  %v168 = vunpack.c.l.b16 %v45
  %v169 = vunpack.c.h.b16 %v45
  %v170 = vunpack.c.l.b16 %v46
  %v171 = vunpack.c.l.b16 %v47
  %v172 = vunpack.c.h.b16 %v47
  %v173 = vunpack.c.l.b16 %v48
  %v174 = vunpack.c.h.b16 %v48
  %v175 = vunpack.c.l.b16 %v49
  %v176 = vunpack.c.l.b16 %v50
  %v177 = vunpack.c.h.b16 %v50
  %v178 = vunpack.c.l.b16 %v51
  %v179 = vunpack.c.h.b16 %v51
  %v180 = vunpack.c.l.b16 %v52
  %v181 = vunpack.c.l.b16 %v53
  %v182 = vunpack.c.h.b16 %v53
  %v183 = vunpack.c.l.b16 %v54
  %v184 = vunpack.c.h.b16 %v54
  %v185 = vunpack.c.l.b16 %v55
  %v186 = vunpack.c.l.b16 %v56
  %v187 = vunpack.c.h.b16 %v56
  %v188 = vunpack.c.l.b16 %v57
  %v189 = vunpack.c.h.b16 %v57
  %v190 = vunpack.c.l.b16 %v58
  %v191 = vunpack.c.l.b16 %v59
  %v192 = vunpack.c.h.b16 %v59
  %v193 = vunpack.c.l.b16 %v60
  %v194 = vunpack.c.h.b16 %v60
  %v195 = vunpack.c.l.b16 %v61
  %v196 = vunpack.c.l.b16 %v62
  %v197 = vunpack.c.h.b16 %v62
  %v198 = vunpack.c.l.b16 %v63
  %v199 = vunpack.c.h.b16 %v63
  %v200 = vunpack.c.l.b16 %v64
  %v201 = vunpack.c.l.b16 %v65
  %v202 = vunpack.c.h.b16 %v65
  %v203 = vunpack.c.l.b16 %v66
  %v204 = vunpack.c.h.b16 %v66
  %v205 = vunpack.c.l.b16 %v67
  %v206 = vunpack.c.l.b16 %v68
  %v207 = vunpack.c.h.b16 %v68
  %v208 = vunpack.c.l.b16 %v69
  %v209 = vunpack.c.h.b16 %v69
  %v210 = vunpack.c.l.b16 %v70
  %v211 = vunpack.c.l.b16 %v71
  %v212 = vunpack.c.h.b16 %v71
  %v213 = vunpack.c.l.b16 %v72
  %v214 = vunpack.c.h.b16 %v72
  %v215 = vunpack.c.l.b16 %v73
  %v216 = vunpack.c.l.b16 %v74
  %v217 = vunpack.c.h.b16 %v74
  %v218 = vunpack.c.l.b16 %v75
  %v219 = vunpack.c.h.b16 %v75
  %v220 = vunpack.c.l.b16 %v76
  %v221 = vunpack.c.l.b16 %v77
  %v222 = vunpack.c.h.b16 %v77
  %v223 = vunpack.c.l.b16 %v78
  %v224 = vunpack.c.h.b16 %v78
  %v225 = vunpack.c.l.b16 %v79
  %v226 = vpack.c.b16 %v151, %v146
  %v227 = vpack.c.b16 %v152, %v147
  %v228 = vpack.c.b16 %v153, %v148
  %v229 = vpack.c.b16 %v154, %v149
  %v230 = vpack.c.b16 %v155, %v150
  %v231 = vpack.c.b16 %v161, %v156
  %v232 = vpack.c.b16 %v162, %v157
  %v233 = vpack.c.b16 %v163, %v158
  %v234 = vpack.c.b16 %v164, %v159
  %v235 = vpack.c.b16 %v165, %v160
  %v236 = vpack.c.b16 %v171, %v166
  %v237 = vpack.c.b16 %v172, %v167
  %v238 = vpack.c.b16 %v173, %v168
  %v239 = vpack.c.b16 %v174, %v169
  %v240 = vpack.c.b16 %v175, %v170
  %v241 = vpack.c.b16 %v181, %v176
  %v242 = vpack.c.b16 %v182, %v177
  %v243 = vpack.c.b16 %v183, %v178
  %v244 = vpack.c.b16 %v184, %v179
  %v245 = vpack.c.b16 %v185, %v180
  %v246 = vpack.c.b16 %v191, %v186
  %v247 = vpack.c.b16 %v192, %v187
  %v248 = vpack.c.b16 %v193, %v188
  %v249 = vpack.c.b16 %v194, %v189
  %v250 = vpack.c.b16 %v195, %v190
  %v251 = vpack.c.b16 %v201, %v196
  %v252 = vpack.c.b16 %v202, %v197
  %v253 = vpack.c.b16 %v203, %v198
  %v254 = vpack.c.b16 %v204, %v199
  %v255 = vpack.c.b16 %v205, %v200
  %v256 = vpack.c.b16 %v211, %v206
  %v257 = vpack.c.b16 %v212, %v207
  %v258 = vpack.c.b16 %v213, %v208
  %v259 = vpack.c.b16 %v214, %v209
  %v260 = vpack.c.b16 %v215, %v210
  %v261 = vpack.c.b16 %v221, %v216
  %v262 = vpack.c.b16 %v222, %v217
  %v263 = vpack.c.b16 %v223, %v218
  %v264 = vpack.c.b16 %v224, %v219
  %v265 = vpack.c.b16 %v225, %v220
  %306 = vmatprep.subr.bf16.mxu0 %v227
  %307 = vmatpush1.bf16.msra.mxu0 %v226
  %308 = vmatprep.subr.bf16.mxu0 %v232
  %309 = vmatpush1.bf16.msra.mxu0 %v231
  %310 = vmatprep.subr.bf16.mxu0 %v237
  %311 = vmatpush1.bf16.msra.mxu0 %v236
  %312 = vmatprep.subr.bf16.mxu0 %v242
  %313 = vmatpush1.bf16.msra.mxu0 %v241
  %314 = vmatprep.subr.bf16.mxu0 %v247
  %315 = vmatpush1.bf16.msra.mxu0 %v246
  %316 = vmatprep.subr.bf16.mxu0 %v252
  %317 = vmatpush1.bf16.msra.mxu0 %v251
  %318 = vmatprep.subr.bf16.mxu0 %v257
  %319 = vmatpush1.bf16.msra.mxu0 %v256
  %320 = vmatprep.subr.bf16.mxu0 %v262
  %321 = vmatpush1.bf16.msra.mxu0 %v261
  %322 = vmatprep.subr.bf16.mxu0 0
  %323 = vmatpush1.bf16.msra.mxu0 0
  %324 = vmatprep.subr.bf16.mxu0 0
  %325 = vmatpush1.bf16.msra.mxu0 0
  %326 = vmatprep.subr.bf16.mxu0 0
  %327 = vmatpush1.bf16.msra.mxu0 0
  %328 = vmatprep.subr.bf16.mxu0 0
  %329 = vmatpush1.bf16.msra.mxu0 0
  %330 = vmatprep.subr.bf16.mxu0 0
  %331 = vmatpush1.bf16.msra.mxu0 0
  %332 = vmatprep.subr.bf16.mxu0 0
  %333 = vmatpush1.bf16.msra.mxu0 0
  %334 = vmatprep.subr.bf16.mxu0 0
  %335 = vmatpush1.bf16.msra.mxu0 0
  %336 = vmatprep.subr.bf16.mxu0 0
  %337 = vmatpush1.bf16.msra.mxu0 0
  %338 = vmatprep.mubr.bf16.mxu0 0
  %339 = vmatmul.mubr.bf16.gmra.mrb[0].mxu0 %v96
  %v340 = vpop.f32.mrb[0].mxu0
  %v341 = vadd.f32 0.0, %v340
  %v342 = vpop.f32.mrb[0].mxu0
  %v343 = vadd.f32 0.0, %v342
  %v344 = vpop.f32.mrb[0].mxu0
  %v345 = vadd.f32 0.0, %v344
  %v346 = vpop.f32.mrb[0].mxu0
  %v347 = vadd.f32 0.0, %v346
  %348 = vdwg.mxu0
  %349 = vmatprep.subr.bf16.mxu0 %v229
  %350 = vmatpush1.bf16.msra.mxu0 %v228
  %351 = vmatprep.subr.bf16.mxu0 %v234
  %352 = vmatpush1.bf16.msra.mxu0 %v233
  %353 = vmatprep.subr.bf16.mxu0 %v239
  %354 = vmatpush1.bf16.msra.mxu0 %v238
  %355 = vmatprep.subr.bf16.mxu0 %v244
  %356 = vmatpush1.bf16.msra.mxu0 %v243
  %357 = vmatprep.subr.bf16.mxu0 %v249
  %358 = vmatpush1.bf16.msra.mxu0 %v248
  %359 = vmatprep.subr.bf16.mxu0 %v254
  %360 = vmatpush1.bf16.msra.mxu0 %v253
  %361 = vmatprep.subr.bf16.mxu0 %v259
  %362 = vmatpush1.bf16.msra.mxu0 %v258
  %363 = vmatprep.subr.bf16.mxu0 %v264
  %364 = vmatpush1.bf16.msra.mxu0 %v263
  %365 = vmatprep.subr.bf16.mxu0 0
  %366 = vmatpush1.bf16.msra.mxu0 0
  %367 = vmatprep.subr.bf16.mxu0 0
  %368 = vmatpush1.bf16.msra.mxu0 0
  %369 = vmatprep.subr.bf16.mxu0 0
  %370 = vmatpush1.bf16.msra.mxu0 0
  %371 = vmatprep.subr.bf16.mxu0 0
  %372 = vmatpush1.bf16.msra.mxu0 0
  %373 = vmatprep.subr.bf16.mxu0 0
  %374 = vmatpush1.bf16.msra.mxu0 0
  %375 = vmatprep.subr.bf16.mxu0 0
  %376 = vmatpush1.bf16.msra.mxu0 0
  %377 = vmatprep.subr.bf16.mxu0 0
  %378 = vmatpush1.bf16.msra.mxu0 0
  %379 = vmatprep.subr.bf16.mxu0 0
  %380 = vmatpush1.bf16.msra.mxu0 0
  %381 = vmatprep.mubr.bf16.mxu0 0
  %382 = vmatmul.mubr.bf16.gmra.mrb[0].mxu0 %v96
  %v383 = vpop.f32.mrb[0].mxu0
  %v384 = vadd.f32 0.0, %v383
  %v385 = vpop.f32.mrb[0].mxu0
  %v386 = vadd.f32 0.0, %v385
  %v387 = vpop.f32.mrb[0].mxu0
  %v388 = vadd.f32 0.0, %v387
  %v389 = vpop.f32.mrb[0].mxu0
  %v390 = vadd.f32 0.0, %v389
  %391 = vdwg.mxu0
  %392 = vmatprep.subr.bf16.mxu0 0
  %393 = vmatpush1.bf16.msra.mxu0 %v230
  %394 = vmatprep.subr.bf16.mxu0 0
  %395 = vmatpush1.bf16.msra.mxu0 %v235
  %396 = vmatprep.subr.bf16.mxu0 0
  %397 = vmatpush1.bf16.msra.mxu0 %v240
  %398 = vmatprep.subr.bf16.mxu0 0
  %399 = vmatpush1.bf16.msra.mxu0 %v245
  %400 = vmatprep.subr.bf16.mxu0 0
  %401 = vmatpush1.bf16.msra.mxu0 %v250
  %402 = vmatprep.subr.bf16.mxu0 0
  %403 = vmatpush1.bf16.msra.mxu0 %v255
  %404 = vmatprep.subr.bf16.mxu0 0
  %405 = vmatpush1.bf16.msra.mxu0 %v260
  %406 = vmatprep.subr.bf16.mxu0 0
  %407 = vmatpush1.bf16.msra.mxu0 %v265
  %408 = vmatprep.subr.bf16.mxu0 0
  %409 = vmatpush1.bf16.msra.mxu0 0
  %410 = vmatprep.subr.bf16.mxu0 0
  %411 = vmatpush1.bf16.msra.mxu0 0
  %412 = vmatprep.subr.bf16.mxu0 0
  %413 = vmatpush1.bf16.msra.mxu0 0
  %414 = vmatprep.subr.bf16.mxu0 0
  %415 = vmatpush1.bf16.msra.mxu0 0
  %416 = vmatprep.subr.bf16.mxu0 0
  %417 = vmatpush1.bf16.msra.mxu0 0
  %418 = vmatprep.subr.bf16.mxu0 0
  %419 = vmatpush1.bf16.msra.mxu0 0
  %420 = vmatprep.subr.bf16.mxu0 0
  %421 = vmatpush1.bf16.msra.mxu0 0
  %422 = vmatprep.subr.bf16.mxu0 0
  %423 = vmatpush1.bf16.msra.mxu0 0
  %424 = vmatprep.mubr.bf16.mxu0 0
  %425 = vmatmul.mubr.bf16.gmra.mrb[0].mxu0 %v96
  %v426 = vpop.f32.mrb[0].mxu0
  %v427 = vadd.f32 0.0, %v426
  %v428 = vpop.f32.mrb[0].mxu0
  %v429 = vpop.f32.mrb[0].mxu0
  %v430 = vadd.f32 0.0, %v429
  %v431 = vpop.f32.mrb[0].mxu0
  %432 = vdwg.mxu0
  %v433 = vadd.f32 %v80, %v341
  %v434 = vadd.f32 %v81, %v343
  %v435 = vadd.f32 %v82, %v384
  %v436 = vadd.f32 %v83, %v386
  %v437 = vadd.f32 %v84, %v427
  %v438 = vadd.f32 %v85, %v345
  %v439 = vadd.f32 %v86, %v347
  %v440 = vadd.f32 %v87, %v388
  %v441 = vadd.f32 %v88, %v390
  %v442 = vadd.f32 %v89, %v430
  %443 = vst [vmem:[#allocation2] sm:$0xff] %v433
  %444 = vst [vmem:[#allocation2 + $0x8] sm:$0xff] %v434
  %445 = vst [vmem:[#allocation2 + $0x10] sm:$0xff] %v435
  %446 = vst [vmem:[#allocation2 + $0x18] sm:$0xff] %v436
  %447 = vst [vmem:[#allocation2 + $0x20] sm:$0xff] %v437
  %448 = vst [vmem:[#allocation2 + $0x28] sm:$0xff] %v438
  %449 = vst [vmem:[#allocation2 + $0x30] sm:$0xff] %v439
  %450 = vst [vmem:[#allocation2 + $0x38] sm:$0xff] %v440
  %451 = vst [vmem:[#allocation2 + $0x40] sm:$0xff] %v441
  %452 = vst [vmem:[#allocation2 + $0x48] sm:$0xff] %v442
  // Predicated region
  $region22: #{nlayer_discriminator_forward.4} parent=0 // pred_check
    %p453 = pneg %p18
  $region23: #{nlayer_discriminator_forward.4} parent=0 // pred_check_branch
    %455 = sbr.rel (%p453) target = $region25
  $region24: #{nlayer_discriminator_forward.4} parent=0 // pred_region
    %v456 = vld [vmem:[#allocation2] sm:$0xff]
    %v457 = vld [vmem:[#allocation2 + $0x8] sm:$0xff]
    %v458 = vld [vmem:[#allocation2 + $0x10] sm:$0xff]
    %v459 = vld [vmem:[#allocation2 + $0x18] sm:$0xff]
    %v460 = vld [vmem:[#allocation2 + $0x20] sm:$0xff]
    %v461 = vld [vmem:[#allocation2 + $0x28] sm:$0xff]
    %v462 = vld [vmem:[#allocation2 + $0x30] sm:$0xff]
    %v463 = vld [vmem:[#allocation2 + $0x38] sm:$0xff]
    %v464 = vld [vmem:[#allocation2 + $0x40] sm:$0xff]
    %v465 = vld [vmem:[#allocation2 + $0x48] sm:$0xff]
    %v466 = vpack.c.bf16 %v461, %v456
    %v467 = vpack.c.bf16 %v462, %v457
    %v468 = vpack.c.bf16 %v463, %v458
    %v469 = vpack.c.bf16 %v464, %v459
    %v470 = vpack.c.bf16 %v465, %v460
    %v476 = vunpack.c.l.b16 %v466
    %v477 = vunpack.c.l.b16 %v467
    %v478 = vunpack.c.l.b16 %v468
    %v479 = vunpack.c.l.b16 %v469
    %v480 = vunpack.c.l.b16 %v470
    %v481 = vunpack.c.h.b16 %v466
    %v482 = vunpack.c.h.b16 %v467
    %v483 = vunpack.c.h.b16 %v468
    %v484 = vunpack.c.h.b16 %v469
    %v485 = vunpack.c.h.b16 %v470
    %v486 = vpack.c.b16 %v477, %v476
    %v487 = vpack.c.b16 %v479, %v478
    %v488 = vpack.c.b16 %v480, %v480
    %v489 = vpack.c.b16 %v482, %v481
    %v490 = vpack.c.b16 %v484, %v483
    %v491 = vpack.c.b16 %v485, %v485
    %498 = vst [vmem:[%s4] sm:$0xff] %v486
    %499 = vst [vmem:[%s4 + $0x8] sm:$0xff] %v487
    %500 = vst [vmem:[%s4 + $0x10] sm:$0xf] %v488
    %501 = vst [vmem:[%s4 + $0x14] sm:$0xff] %v489
    %502 = vst [vmem:[%s4 + $0x1c] sm:$0xff] %v490
    %503 = vst [vmem:[%s4 + $0x24] sm:$0xf] %v491
  $region25: #{nlayer_discriminator_forward.4} parent=0 // pred_fallthru
    _
  // Predicated region
  $region26: #{nlayer_discriminator_forward.4} parent=0 // pred_check
    _
  $region27: #{nlayer_discriminator_forward.4} parent=0 // pred_check_branch
    %505 = sbr.rel (0) target = $region29
  $region28: #{nlayer_discriminator_forward.4} parent=0 // pred_region
    _
  $region29: #{nlayer_discriminator_forward.4} parent=0 // pred_fallthru
    _
  // Predicated region
  $region30: #{nlayer_discriminator_forward.4} parent=0 // pred_check
    _
  $region31: #{nlayer_discriminator_forward.4} parent=0 // pred_check_branch
    %507 = sbr.rel (0) target = $region33
  $region32: #{nlayer_discriminator_forward.4} parent=0 // pred_region
    _
  $region33: #{nlayer_discriminator_forward.4} parent=0 // pred_fallthru
    _

// kernel: nlayer_discriminator_forward.5
$region0: #{nlayer_discriminator_forward.5}
  #allocation0 [shape = 'u32[]', space=smem, size = 0x4, offset = 0x4, fixed_abs, tag = 'smem constant byte address 0x4 - core index']
  #allocation1 [shape = 'u32[144,128]{1,0:T(1,128)}', space=vmem, size = 0x12000, scoped, tag = 'internal scratch']
  #allocation2 [shape = 'f32[16,256]{1,0:T(8,128)}', space=vmem, size = 0x4000, scoped, tag = 'scratch operand']
  %s0 = inlined_call_operand.vmem [shape: bf16[256,256], index: 0, kind: input, shape index: {}]
  %s1 = inlined_call_operand.vmem [shape: bf16[16,256], index: 1, kind: input, shape index: {}]
  %s2 = inlined_call_operand.vmem [shape: f32[256,1], index: 2, kind: input, shape index: {}, may-alias: {2,3}]
  %s3 = inlined_call_operand.vmem [shape: f32[256,1], index: 3, kind: input, shape index: {}, may-alias: {2,3}]
  %s4 = inlined_call_operand.vmem [shape: bf16[16,256], index: 4, kind: output, shape index: {0}]
  %s5 = inlined_call_operand.vmem [shape: f32[1,16,1], index: 5, kind: output, shape index: {1}]
  %s6 = inlined_call_operand.vmem [shape: f32[1,16,1], index: 6, kind: output, shape index: {2}]
  %7 = xla_tuple %s4, %s5, %s6
  %s8 = sld [smem:[#allocation0]]
  $region50: #{nlayer_discriminator_forward.5} parent=0
    _
  %s10 = ssub.s32 1, %s8
  %s11 = scalar_select 0, %s10, %s8
  // Predicated region
  $region2: #{nlayer_discriminator_forward.5} parent=0 // pred_check
    _
  $region3: #{nlayer_discriminator_forward.5} parent=0 // pred_check_branch
    %13 = sbr.rel (0) target = $region5
  $region4: #{nlayer_discriminator_forward.5} parent=0 // pred_region
    _
  $region5: #{nlayer_discriminator_forward.5} parent=0 // pred_fallthru
    _
  // Predicated region
  $region6: #{nlayer_discriminator_forward.5} parent=0 // pred_check
    _
  $region7: #{nlayer_discriminator_forward.5} parent=0 // pred_check_branch
    %15 = sbr.rel (0) target = $region9
  $region8: #{nlayer_discriminator_forward.5} parent=0 // pred_region
    _
  $region9: #{nlayer_discriminator_forward.5} parent=0 // pred_fallthru
    _
  // Predicated region
  $region10: #{nlayer_discriminator_forward.5} parent=0 // pred_check
    _
  $region11: #{nlayer_discriminator_forward.5} parent=0 // pred_check_branch
    %17 = sbr.rel (0) target = $region13
  $region12: #{nlayer_discriminator_forward.5} parent=0 // pred_region
    _
  $region13: #{nlayer_discriminator_forward.5} parent=0 // pred_fallthru
    _
  // Predicated region
  $region14: #{nlayer_discriminator_forward.5} parent=0 // pred_check
    _
  $region15: #{nlayer_discriminator_forward.5} parent=0 // pred_check_branch
    %19 = sbr.rel (0) target = $region17
  $region16: #{nlayer_discriminator_forward.5} parent=0 // pred_region
    _
  $region17: #{nlayer_discriminator_forward.5} parent=0 // pred_fallthru
    _
  %p20 = scmp.eq.s32.totalorder 0, 0
  // Predicated region
  $region18: #{nlayer_discriminator_forward.5} parent=0 // pred_check
    %p21 = pneg %p20
  $region19: #{nlayer_discriminator_forward.5} parent=0 // pred_check_branch
    %23 = sbr.rel (%p21) target = $region21
  $region20: #{nlayer_discriminator_forward.5} parent=0 // pred_region
    %24 = vst [vmem:[#allocation2] sm:$0xff] 0.0
    %25 = vst [vmem:[#allocation2 + $0x8] sm:$0xff] 0.0
    %26 = vst [vmem:[#allocation2 + $0x10] sm:$0xff] 0.0
    %27 = vst [vmem:[#allocation2 + $0x18] sm:$0xff] 0.0
  $region21: #{nlayer_discriminator_forward.5} parent=0 // pred_fallthru
    _
  %v28 = vld [vmem:[%s0] sm:$0xff]
  %v29 = vld [vmem:[%s0 + $0x8] sm:$0xff]
  %v30 = vld [vmem:[%s0 + $0x10] sm:$0xff]
  %v31 = vld [vmem:[%s0 + $0x18] sm:$0xff]
  %v32 = vld [vmem:[%s0 + $0x20] sm:$0xff]
  %v33 = vld [vmem:[%s0 + $0x28] sm:$0xff]
  %v34 = vld [vmem:[%s0 + $0x30] sm:$0xff]
  %v35 = vld [vmem:[%s0 + $0x38] sm:$0xff]
  %v36 = vld [vmem:[%s0 + $0x40] sm:$0xff]
  %v37 = vld [vmem:[%s0 + $0x48] sm:$0xff]
  %v38 = vld [vmem:[%s0 + $0x50] sm:$0xff]
  %v39 = vld [vmem:[%s0 + $0x58] sm:$0xff]
  %v40 = vld [vmem:[%s0 + $0x60] sm:$0xff]
  %v41 = vld [vmem:[%s0 + $0x68] sm:$0xff]
  %v42 = vld [vmem:[%s0 + $0x70] sm:$0xff]
  %v43 = vld [vmem:[%s0 + $0x78] sm:$0xff]
  %v44 = vld [vmem:[%s0 + $0x80] sm:$0xff]
  %v45 = vld [vmem:[%s0 + $0x88] sm:$0xff]
  %v46 = vld [vmem:[%s0 + $0x90] sm:$0xff]
  %v47 = vld [vmem:[%s0 + $0x98] sm:$0xff]
  %v48 = vld [vmem:[%s0 + $0xa0] sm:$0xff]
  %v49 = vld [vmem:[%s0 + $0xa8] sm:$0xff]
  %v50 = vld [vmem:[%s0 + $0xb0] sm:$0xff]
  %v51 = vld [vmem:[%s0 + $0xb8] sm:$0xff]
  %v52 = vld [vmem:[%s0 + $0xc0] sm:$0xff]
  %v53 = vld [vmem:[%s0 + $0xc8] sm:$0xff]
  %v54 = vld [vmem:[%s0 + $0xd0] sm:$0xff]
  %v55 = vld [vmem:[%s0 + $0xd8] sm:$0xff]
  %v56 = vld [vmem:[%s0 + $0xe0] sm:$0xff]
  %v57 = vld [vmem:[%s0 + $0xe8] sm:$0xff]
  %v58 = vld [vmem:[%s0 + $0xf0] sm:$0xff]
  %v59 = vld [vmem:[%s0 + $0xf8] sm:$0xff]
  %v60 = vunpack.c.l.bf16 %v28
  %v61 = vunpack.c.h.bf16 %v28
  %v62 = vunpack.c.l.bf16 %v29
  %v63 = vunpack.c.h.bf16 %v29
  %v64 = vunpack.c.l.bf16 %v30
  %v65 = vunpack.c.h.bf16 %v30
  %v66 = vunpack.c.l.bf16 %v31
  %v67 = vunpack.c.h.bf16 %v31
  %v68 = vunpack.c.l.bf16 %v32
  %v69 = vunpack.c.h.bf16 %v32
  %v70 = vunpack.c.l.bf16 %v33
  %v71 = vunpack.c.h.bf16 %v33
  %v72 = vunpack.c.l.bf16 %v34
  %v73 = vunpack.c.h.bf16 %v34
  %v74 = vunpack.c.l.bf16 %v35
  %v75 = vunpack.c.h.bf16 %v35
  %v76 = vunpack.c.l.bf16 %v36
  %v77 = vunpack.c.h.bf16 %v36
  %v78 = vunpack.c.l.bf16 %v37
  %v79 = vunpack.c.h.bf16 %v37
  %v80 = vunpack.c.l.bf16 %v38
  %v81 = vunpack.c.h.bf16 %v38
  %v82 = vunpack.c.l.bf16 %v39
  %v83 = vunpack.c.h.bf16 %v39
  %v84 = vunpack.c.l.bf16 %v40
  %v85 = vunpack.c.h.bf16 %v40
  %v86 = vunpack.c.l.bf16 %v41
  %v87 = vunpack.c.h.bf16 %v41
  %v88 = vunpack.c.l.bf16 %v42
  %v89 = vunpack.c.h.bf16 %v42
  %v90 = vunpack.c.l.bf16 %v43
  %v91 = vunpack.c.h.bf16 %v43
  %v92 = vunpack.c.l.bf16 %v44
  %v93 = vunpack.c.h.bf16 %v44
  %v94 = vunpack.c.l.bf16 %v45
  %v95 = vunpack.c.h.bf16 %v45
  %v96 = vunpack.c.l.bf16 %v46
  %v97 = vunpack.c.h.bf16 %v46
  %v98 = vunpack.c.l.bf16 %v47
  %v99 = vunpack.c.h.bf16 %v47
  %v100 = vunpack.c.l.bf16 %v48
  %v101 = vunpack.c.h.bf16 %v48
  %v102 = vunpack.c.l.bf16 %v49
  %v103 = vunpack.c.h.bf16 %v49
  %v104 = vunpack.c.l.bf16 %v50
  %v105 = vunpack.c.h.bf16 %v50
  %v106 = vunpack.c.l.bf16 %v51
  %v107 = vunpack.c.h.bf16 %v51
  %v108 = vunpack.c.l.bf16 %v52
  %v109 = vunpack.c.h.bf16 %v52
  %v110 = vunpack.c.l.bf16 %v53
  %v111 = vunpack.c.h.bf16 %v53
  %v112 = vunpack.c.l.bf16 %v54
  %v113 = vunpack.c.h.bf16 %v54
  %v114 = vunpack.c.l.bf16 %v55
  %v115 = vunpack.c.h.bf16 %v55
  %v116 = vunpack.c.l.bf16 %v56
  %v117 = vunpack.c.h.bf16 %v56
  %v118 = vunpack.c.l.bf16 %v57
  %v119 = vunpack.c.h.bf16 %v57
  %v120 = vunpack.c.l.bf16 %v58
  %v121 = vunpack.c.h.bf16 %v58
  %v122 = vunpack.c.l.bf16 %v59
  %v123 = vunpack.c.h.bf16 %v59
  %vm124 = vcmp.ge.f32.partialorder %v60, 0.0
  %vm125 = vcmp.ge.f32.partialorder %v61, 0.0
  %vm126 = vcmp.ge.f32.partialorder %v62, 0.0
  %vm127 = vcmp.ge.f32.partialorder %v63, 0.0
  %vm128 = vcmp.ge.f32.partialorder %v64, 0.0
  %vm129 = vcmp.ge.f32.partialorder %v65, 0.0
  %vm130 = vcmp.ge.f32.partialorder %v66, 0.0
  %vm131 = vcmp.ge.f32.partialorder %v67, 0.0
  %vm132 = vcmp.ge.f32.partialorder %v68, 0.0
  %vm133 = vcmp.ge.f32.partialorder %v69, 0.0
  %vm134 = vcmp.ge.f32.partialorder %v70, 0.0
  %vm135 = vcmp.ge.f32.partialorder %v71, 0.0
  %vm136 = vcmp.ge.f32.partialorder %v72, 0.0
  %vm137 = vcmp.ge.f32.partialorder %v73, 0.0
  %vm138 = vcmp.ge.f32.partialorder %v74, 0.0
  %vm139 = vcmp.ge.f32.partialorder %v75, 0.0
  %vm140 = vcmp.ge.f32.partialorder %v76, 0.0
  %vm141 = vcmp.ge.f32.partialorder %v77, 0.0
  %vm142 = vcmp.ge.f32.partialorder %v78, 0.0
  %vm143 = vcmp.ge.f32.partialorder %v79, 0.0
  %vm144 = vcmp.ge.f32.partialorder %v80, 0.0
  %vm145 = vcmp.ge.f32.partialorder %v81, 0.0
  %vm146 = vcmp.ge.f32.partialorder %v82, 0.0
  %vm147 = vcmp.ge.f32.partialorder %v83, 0.0
  %vm148 = vcmp.ge.f32.partialorder %v84, 0.0
  %vm149 = vcmp.ge.f32.partialorder %v85, 0.0
  %vm150 = vcmp.ge.f32.partialorder %v86, 0.0
  %vm151 = vcmp.ge.f32.partialorder %v87, 0.0
  %vm152 = vcmp.ge.f32.partialorder %v88, 0.0
  %vm153 = vcmp.ge.f32.partialorder %v89, 0.0
  %vm154 = vcmp.ge.f32.partialorder %v90, 0.0
  %vm155 = vcmp.ge.f32.partialorder %v91, 0.0
  %vm156 = vcmp.ge.f32.partialorder %v92, 0.0
  %vm157 = vcmp.ge.f32.partialorder %v93, 0.0
  %vm158 = vcmp.ge.f32.partialorder %v94, 0.0
  %vm159 = vcmp.ge.f32.partialorder %v95, 0.0
  %vm160 = vcmp.ge.f32.partialorder %v96, 0.0
  %vm161 = vcmp.ge.f32.partialorder %v97, 0.0
  %vm162 = vcmp.ge.f32.partialorder %v98, 0.0
  %vm163 = vcmp.ge.f32.partialorder %v99, 0.0
  %vm164 = vcmp.ge.f32.partialorder %v100, 0.0
  %vm165 = vcmp.ge.f32.partialorder %v101, 0.0
  %vm166 = vcmp.ge.f32.partialorder %v102, 0.0
  %vm167 = vcmp.ge.f32.partialorder %v103, 0.0
  %vm168 = vcmp.ge.f32.partialorder %v104, 0.0
  %vm169 = vcmp.ge.f32.partialorder %v105, 0.0
  %vm170 = vcmp.ge.f32.partialorder %v106, 0.0
  %vm171 = vcmp.ge.f32.partialorder %v107, 0.0
  %vm172 = vcmp.ge.f32.partialorder %v108, 0.0
  %vm173 = vcmp.ge.f32.partialorder %v109, 0.0
  %vm174 = vcmp.ge.f32.partialorder %v110, 0.0
  %vm175 = vcmp.ge.f32.partialorder %v111, 0.0
  %vm176 = vcmp.ge.f32.partialorder %v112, 0.0
  %vm177 = vcmp.ge.f32.partialorder %v113, 0.0
  %vm178 = vcmp.ge.f32.partialorder %v114, 0.0
  %vm179 = vcmp.ge.f32.partialorder %v115, 0.0
  %vm180 = vcmp.ge.f32.partialorder %v116, 0.0
  %vm181 = vcmp.ge.f32.partialorder %v117, 0.0
  %vm182 = vcmp.ge.f32.partialorder %v118, 0.0
  %vm183 = vcmp.ge.f32.partialorder %v119, 0.0
  %vm184 = vcmp.ge.f32.partialorder %v120, 0.0
  %vm185 = vcmp.ge.f32.partialorder %v121, 0.0
  %vm186 = vcmp.ge.f32.partialorder %v122, 0.0
  %vm187 = vcmp.ge.f32.partialorder %v123, 0.0
  %v188 = vmul.f32 %v60, 0.2
  %v189 = vmul.f32 %v61, 0.2
  %v190 = vmul.f32 %v62, 0.2
  %v191 = vmul.f32 %v63, 0.2
  %v192 = vmul.f32 %v64, 0.2
  %v193 = vmul.f32 %v65, 0.2
  %v194 = vmul.f32 %v66, 0.2
  %v195 = vmul.f32 %v67, 0.2
  %v196 = vmul.f32 %v68, 0.2
  %v197 = vmul.f32 %v69, 0.2
  %v198 = vmul.f32 %v70, 0.2
  %v199 = vmul.f32 %v71, 0.2
  %v200 = vmul.f32 %v72, 0.2
  %v201 = vmul.f32 %v73, 0.2
  %v202 = vmul.f32 %v74, 0.2
  %v203 = vmul.f32 %v75, 0.2
  %v204 = vmul.f32 %v76, 0.2
  %v205 = vmul.f32 %v77, 0.2
  %v206 = vmul.f32 %v78, 0.2
  %v207 = vmul.f32 %v79, 0.2
  %v208 = vmul.f32 %v80, 0.2
  %v209 = vmul.f32 %v81, 0.2
  %v210 = vmul.f32 %v82, 0.2
  %v211 = vmul.f32 %v83, 0.2
  %v212 = vmul.f32 %v84, 0.2
  %v213 = vmul.f32 %v85, 0.2
  %v214 = vmul.f32 %v86, 0.2
  %v215 = vmul.f32 %v87, 0.2
  %v216 = vmul.f32 %v88, 0.2
  %v217 = vmul.f32 %v89, 0.2
  %v218 = vmul.f32 %v90, 0.2
  %v219 = vmul.f32 %v91, 0.2
  %v220 = vmul.f32 %v92, 0.2
  %v221 = vmul.f32 %v93, 0.2
  %v222 = vmul.f32 %v94, 0.2
  %v223 = vmul.f32 %v95, 0.2
  %v224 = vmul.f32 %v96, 0.2
  %v225 = vmul.f32 %v97, 0.2
  %v226 = vmul.f32 %v98, 0.2
  %v227 = vmul.f32 %v99, 0.2
  %v228 = vmul.f32 %v100, 0.2
  %v229 = vmul.f32 %v101, 0.2
  %v230 = vmul.f32 %v102, 0.2
  %v231 = vmul.f32 %v103, 0.2
  %v232 = vmul.f32 %v104, 0.2
  %v233 = vmul.f32 %v105, 0.2
  %v234 = vmul.f32 %v106, 0.2
  %v235 = vmul.f32 %v107, 0.2
  %v236 = vmul.f32 %v108, 0.2
  %v237 = vmul.f32 %v109, 0.2
  %v238 = vmul.f32 %v110, 0.2
  %v239 = vmul.f32 %v111, 0.2
  %v240 = vmul.f32 %v112, 0.2
  %v241 = vmul.f32 %v113, 0.2
  %v242 = vmul.f32 %v114, 0.2
  %v243 = vmul.f32 %v115, 0.2
  %v244 = vmul.f32 %v116, 0.2
  %v245 = vmul.f32 %v117, 0.2
  %v246 = vmul.f32 %v118, 0.2
  %v247 = vmul.f32 %v119, 0.2
  %v248 = vmul.f32 %v120, 0.2
  %v249 = vmul.f32 %v121, 0.2
  %v250 = vmul.f32 %v122, 0.2
  %v251 = vmul.f32 %v123, 0.2
  %v252 = vsel %vm124, %v60, %v188
  %v253 = vsel %vm125, %v61, %v189
  %v254 = vsel %vm126, %v62, %v190
  %v255 = vsel %vm127, %v63, %v191
  %v256 = vsel %vm128, %v64, %v192
  %v257 = vsel %vm129, %v65, %v193
  %v258 = vsel %vm130, %v66, %v194
  %v259 = vsel %vm131, %v67, %v195
  %v260 = vsel %vm132, %v68, %v196
  %v261 = vsel %vm133, %v69, %v197
  %v262 = vsel %vm134, %v70, %v198
  %v263 = vsel %vm135, %v71, %v199
  %v264 = vsel %vm136, %v72, %v200
  %v265 = vsel %vm137, %v73, %v201
  %v266 = vsel %vm138, %v74, %v202
  %v267 = vsel %vm139, %v75, %v203
  %v268 = vsel %vm140, %v76, %v204
  %v269 = vsel %vm141, %v77, %v205
  %v270 = vsel %vm142, %v78, %v206
  %v271 = vsel %vm143, %v79, %v207
  %v272 = vsel %vm144, %v80, %v208
  %v273 = vsel %vm145, %v81, %v209
  %v274 = vsel %vm146, %v82, %v210
  %v275 = vsel %vm147, %v83, %v211
  %v276 = vsel %vm148, %v84, %v212
  %v277 = vsel %vm149, %v85, %v213
  %v278 = vsel %vm150, %v86, %v214
  %v279 = vsel %vm151, %v87, %v215
  %v280 = vsel %vm152, %v88, %v216
  %v281 = vsel %vm153, %v89, %v217
  %v282 = vsel %vm154, %v90, %v218
  %v283 = vsel %vm155, %v91, %v219
  %v284 = vsel %vm156, %v92, %v220
  %v285 = vsel %vm157, %v93, %v221
  %v286 = vsel %vm158, %v94, %v222
  %v287 = vsel %vm159, %v95, %v223
  %v288 = vsel %vm160, %v96, %v224
  %v289 = vsel %vm161, %v97, %v225
  %v290 = vsel %vm162, %v98, %v226
  %v291 = vsel %vm163, %v99, %v227
  %v292 = vsel %vm164, %v100, %v228
  %v293 = vsel %vm165, %v101, %v229
  %v294 = vsel %vm166, %v102, %v230
  %v295 = vsel %vm167, %v103, %v231
  %v296 = vsel %vm168, %v104, %v232
  %v297 = vsel %vm169, %v105, %v233
  %v298 = vsel %vm170, %v106, %v234
  %v299 = vsel %vm171, %v107, %v235
  %v300 = vsel %vm172, %v108, %v236
  %v301 = vsel %vm173, %v109, %v237
  %v302 = vsel %vm174, %v110, %v238
  %v303 = vsel %vm175, %v111, %v239
  %v304 = vsel %vm176, %v112, %v240
  %v305 = vsel %vm177, %v113, %v241
  %v306 = vsel %vm178, %v114, %v242
  %v307 = vsel %vm179, %v115, %v243
  %v308 = vsel %vm180, %v116, %v244
  %v309 = vsel %vm181, %v117, %v245
  %v310 = vsel %vm182, %v118, %v246
  %v311 = vsel %vm183, %v119, %v247
  %v312 = vsel %vm184, %v120, %v248
  %v313 = vsel %vm185, %v121, %v249
  %v314 = vsel %vm186, %v122, %v250
  %v315 = vsel %vm187, %v123, %v251
  %v316 = vpack.c.bf16 %v254, %v252
  %v317 = vpack.c.bf16 %v255, %v253
  %v318 = vpack.c.bf16 %v258, %v256
  %v319 = vpack.c.bf16 %v259, %v257
  %v320 = vpack.c.bf16 %v262, %v260
  %v321 = vpack.c.bf16 %v263, %v261
  %v322 = vpack.c.bf16 %v266, %v264
  %v323 = vpack.c.bf16 %v267, %v265
  %v324 = vpack.c.bf16 %v270, %v268
  %v325 = vpack.c.bf16 %v271, %v269
  %v326 = vpack.c.bf16 %v274, %v272
  %v327 = vpack.c.bf16 %v275, %v273
  %v328 = vpack.c.bf16 %v278, %v276
  %v329 = vpack.c.bf16 %v279, %v277
  %v330 = vpack.c.bf16 %v282, %v280
  %v331 = vpack.c.bf16 %v283, %v281
  %v332 = vpack.c.bf16 %v286, %v284
  %v333 = vpack.c.bf16 %v287, %v285
  %v334 = vpack.c.bf16 %v290, %v288
  %v335 = vpack.c.bf16 %v291, %v289
  %v336 = vpack.c.bf16 %v294, %v292
  %v337 = vpack.c.bf16 %v295, %v293
  %v338 = vpack.c.bf16 %v298, %v296
  %v339 = vpack.c.bf16 %v299, %v297
  %v340 = vpack.c.bf16 %v302, %v300
  %v341 = vpack.c.bf16 %v303, %v301
  %v342 = vpack.c.bf16 %v306, %v304
  %v343 = vpack.c.bf16 %v307, %v305
  %v344 = vpack.c.bf16 %v310, %v308
  %v345 = vpack.c.bf16 %v311, %v309
  %v346 = vpack.c.bf16 %v314, %v312
  %v347 = vpack.c.bf16 %v315, %v313
  %v348 = vld [vmem:[#allocation2] sm:$0xff]
  %v349 = vld [vmem:[#allocation2 + $0x8] sm:$0xff]
  %v350 = vld [vmem:[#allocation2 + $0x10] sm:$0xff]
  %v351 = vld [vmem:[#allocation2 + $0x18] sm:$0xff]
  %v352 = vld [vmem:[%s1] sm:$0xff]
  %v353 = vld [vmem:[%s1 + $0x8] sm:$0xff]
  %v356 = vunpack.c.l.b16 %v352
  %v357 = vunpack.c.h.b16 %v352
  %v358 = vunpack.c.l.b16 %v353
  %v359 = vunpack.c.h.b16 %v353
  %v360 = vpack.c.b16 %v358, %v356
  %v361 = vpack.c.b16 %v359, %v357
  %364 = vmatprep.subr.bf16.mxu0 %v317
  %365 = vmatpush1.bf16.msra.mxu0 %v316
  %366 = vmatprep.subr.bf16.mxu0 %v319
  %367 = vmatpush1.bf16.msra.mxu0 %v318
  %368 = vmatprep.subr.bf16.mxu0 %v321
  %369 = vmatpush1.bf16.msra.mxu0 %v320
  %370 = vmatprep.subr.bf16.mxu0 %v323
  %371 = vmatpush1.bf16.msra.mxu0 %v322
  %372 = vmatprep.subr.bf16.mxu0 %v325
  %373 = vmatpush1.bf16.msra.mxu0 %v324
  %374 = vmatprep.subr.bf16.mxu0 %v327
  %375 = vmatpush1.bf16.msra.mxu0 %v326
  %376 = vmatprep.subr.bf16.mxu0 %v329
  %377 = vmatpush1.bf16.msra.mxu0 %v328
  %378 = vmatprep.subr.bf16.mxu0 %v331
  %379 = vmatpush1.bf16.msra.mxu0 %v330
  %380 = vmatprep.subr.bf16.mxu0 %v333
  %381 = vmatpush1.bf16.msra.mxu0 %v332
  %382 = vmatprep.subr.bf16.mxu0 %v335
  %383 = vmatpush1.bf16.msra.mxu0 %v334
  %384 = vmatprep.subr.bf16.mxu0 %v337
  %385 = vmatpush1.bf16.msra.mxu0 %v336
  %386 = vmatprep.subr.bf16.mxu0 %v339
  %387 = vmatpush1.bf16.msra.mxu0 %v338
  %388 = vmatprep.subr.bf16.mxu0 %v341
  %389 = vmatpush1.bf16.msra.mxu0 %v340
  %390 = vmatprep.subr.bf16.mxu0 %v343
  %391 = vmatpush1.bf16.msra.mxu0 %v342
  %392 = vmatprep.subr.bf16.mxu0 %v345
  %393 = vmatpush1.bf16.msra.mxu0 %v344
  %394 = vmatprep.subr.bf16.mxu0 %v347
  %395 = vmatpush1.bf16.msra.mxu0 %v346
  %396 = vmatprep.mubr.bf16.mxu0 %v361
  %397 = vmatmul.mubr.bf16.gmra.mrb[0].mxu0 %v360
  %v398 = vpop.f32.mrb[0].mxu0
  %v399 = vadd.f32 0.0, %v398
  %v400 = vpop.f32.mrb[0].mxu0
  %v401 = vadd.f32 0.0, %v400
  %v402 = vpop.f32.mrb[0].mxu0
  %v403 = vadd.f32 0.0, %v402
  %v404 = vpop.f32.mrb[0].mxu0
  %v405 = vadd.f32 0.0, %v404
  %406 = vdwg.mxu0
  %v407 = vadd.f32 %v348, %v399
  %v408 = vadd.f32 %v349, %v401
  %v409 = vadd.f32 %v350, %v403
  %v410 = vadd.f32 %v351, %v405
  %411 = vst [vmem:[#allocation2] sm:$0xff] %v407
  %412 = vst [vmem:[#allocation2 + $0x8] sm:$0xff] %v408
  %413 = vst [vmem:[#allocation2 + $0x10] sm:$0xff] %v409
  %414 = vst [vmem:[#allocation2 + $0x18] sm:$0xff] %v410
  // Predicated region
  $region22: #{nlayer_discriminator_forward.5} parent=0 // pred_check
    %p415 = pneg %p20
  $region23: #{nlayer_discriminator_forward.5} parent=0 // pred_check_branch
    %417 = sbr.rel (%p415) target = $region25
  $region24: #{nlayer_discriminator_forward.5} parent=0 // pred_region
    %v418 = vld [vmem:[#allocation2] sm:$0xff]
    %v419 = vld [vmem:[#allocation2 + $0x8] sm:$0xff]
    %v420 = vld [vmem:[#allocation2 + $0x10] sm:$0xff]
    %v421 = vld [vmem:[#allocation2 + $0x18] sm:$0xff]
    %v422 = vpack.c.bf16 %v420, %v418
    %v423 = vpack.c.bf16 %v421, %v419
    %v426 = vunpack.c.l.b16 %v422
    %v427 = vunpack.c.l.b16 %v423
    %v428 = vunpack.c.h.b16 %v422
    %v429 = vunpack.c.h.b16 %v423
    %v430 = vpack.c.b16 %v427, %v426
    %v431 = vpack.c.b16 %v429, %v428
    %434 = vst [vmem:[%s4] sm:$0xff] %v430
    %435 = vst [vmem:[%s4 + $0x8] sm:$0xff] %v431
    %v436 = vlaneseq
    %v437 = vand.u32 %v436, 127
    %v438 = vadd.s32 %v437, 128
    %s439 = smul.u32 0, 256
    %v440 = vstv %s439
    %v441 = vadd.s32 %v440, %v437
    %v442 = vadd.s32 %v440, %v438
    %vm443 = vcmp.lt.s32.totalorder %v441, 160
    %vm444 = vcmp.lt.s32.totalorder %v442, 160
    %v445 = vsel %vm443, %v418, 0.0
    %v446 = vsel %vm444, %v419, 0.0
    %v447 = vsel %vm443, %v420, 0.0
    %v448 = vsel %vm444, %v421, 0.0
    %v449 = vadd.f32 %v445, %v446
    %450 = vadd.xlane.f32.xlu0 %v449
    %v451 = vpop.xlane.xlu0 %450
    %v452 = vadd.f32 %v447, %v448
    %453 = vadd.xlane.f32.xlu0 %v452
    %v454 = vpop.xlane.xlu0 %453
    %vm455 = vcmask 7168
    %456 = vst.msk [vmem:[%s5] sm:$0xff] %vm455, %v451
    %457 = vst.msk [vmem:[%s5 + $0x8] sm:$0xff] %vm455, %v454
    %v458 = vmul.f32 %v445, %v445
    %v459 = vmul.f32 %v446, %v446
    %v460 = vmul.f32 %v447, %v447
    %v461 = vmul.f32 %v448, %v448
    %v462 = vadd.f32 %v458, %v459
    %463 = vadd.xlane.f32.xlu0 %v462
    %v464 = vpop.xlane.xlu0 %463
    %v465 = vadd.f32 %v460, %v461
    %466 = vadd.xlane.f32.xlu0 %v465
    %v467 = vpop.xlane.xlu0 %466
    %468 = vst.msk [vmem:[%s6] sm:$0xff] %vm455, %v464
    %469 = vst.msk [vmem:[%s6 + $0x8] sm:$0xff] %vm455, %v467
  $region25: #{nlayer_discriminator_forward.5} parent=0 // pred_fallthru
    _
  // Predicated region
  $region26: #{nlayer_discriminator_forward.5} parent=0 // pred_check
    _
  $region27: #{nlayer_discriminator_forward.5} parent=0 // pred_check_branch
    %471 = sbr.rel (0) target = $region29
  $region28: #{nlayer_discriminator_forward.5} parent=0 // pred_region
    _
  $region29: #{nlayer_discriminator_forward.5} parent=0 // pred_fallthru
    _
  // Predicated region
  $region30: #{nlayer_discriminator_forward.5} parent=0 // pred_check
    _
  $region31: #{nlayer_discriminator_forward.5} parent=0 // pred_check_branch
    %473 = sbr.rel (0) target = $region33
  $region32: #{nlayer_discriminator_forward.5} parent=0 // pred_region
    _
  $region33: #{nlayer_discriminator_forward.5} parent=0 // pred_fallthru
    _
  // Predicated region
  $region34: #{nlayer_discriminator_forward.5} parent=0 // pred_check
    _
  $region35: #{nlayer_discriminator_forward.5} parent=0 // pred_check_branch
    %475 = sbr.rel (0) target = $region37
  $region36: #{nlayer_discriminator_forward.5} parent=0 // pred_region
    _
  $region37: #{nlayer_discriminator_forward.5} parent=0 // pred_fallthru
    _
  // Predicated region
  $region38: #{nlayer_discriminator_forward.5} parent=0 // pred_check
    _
  $region39: #{nlayer_discriminator_forward.5} parent=0 // pred_check_branch
    %477 = sbr.rel (0) target = $region41
  $region40: #{nlayer_discriminator_forward.5} parent=0 // pred_region
    _
  $region41: #{nlayer_discriminator_forward.5} parent=0 // pred_fallthru
    _
  // Predicated region
  $region42: #{nlayer_discriminator_forward.5} parent=0 // pred_check
    _
  $region43: #{nlayer_discriminator_forward.5} parent=0 // pred_check_branch
    %479 = sbr.rel (0) target = $region45
  $region44: #{nlayer_discriminator_forward.5} parent=0 // pred_region
    _
  $region45: #{nlayer_discriminator_forward.5} parent=0 // pred_fallthru
    _
  // Predicated region
  $region46: #{nlayer_discriminator_forward.5} parent=0 // pred_check
    _
  $region47: #{nlayer_discriminator_forward.5} parent=0 // pred_check_branch
    %481 = sbr.rel (0) target = $region49
  $region48: #{nlayer_discriminator_forward.5} parent=0 // pred_region
    _
  $region49: #{nlayer_discriminator_forward.5} parent=0 // pred_fallthru
    _

// kernel: nlayer_discriminator_forward.6
$region0: #{nlayer_discriminator_forward.6}
  #allocation0 [shape = 'u32[]', space=smem, size = 0x4, offset = 0x4, fixed_abs, tag = 'smem constant byte address 0x4 - core index']
  #allocation1 [shape = 'u32[144,128]{1,0:T(1,128)}', space=vmem, size = 0x12000, scoped, tag = 'internal scratch']
  #allocation2 [shape = 'f32[16,128]{1,0:T(8,128)}', space=vmem, size = 0x2000, scoped, tag = 'scratch operand']
  %s0 = inlined_call_operand.vmem [shape: bf16[512,128], index: 0, kind: input, shape index: {}]
  %s1 = inlined_call_operand.vmem [shape: bf16[16,512], index: 1, kind: input, shape index: {}]
  %s2 = inlined_call_operand.vmem [shape: f32[512,1], index: 2, kind: input, shape index: {}]
  %s3 = inlined_call_operand.vmem [shape: f32[512,1], index: 3, kind: input, shape index: {}]
  %s4 = inlined_call_operand.vmem [shape: bf16[16,128], index: 4, kind: output, shape index: {0}]
  %s5 = inlined_call_operand.vmem [shape: f32[1,16,1], index: 5, kind: output, shape index: {1}]
  %s6 = inlined_call_operand.vmem [shape: f32[1,16,1], index: 6, kind: output, shape index: {2}]
  %7 = xla_tuple %s4, %s5, %s6
  %s8 = sld [smem:[#allocation0]]
  $region50: #{nlayer_discriminator_forward.6} parent=0
    _
  %s10 = ssub.s32 1, %s8
  %s11 = scalar_select 0, %s10, %s8
  // Predicated region
  $region2: #{nlayer_discriminator_forward.6} parent=0 // pred_check
    _
  $region3: #{nlayer_discriminator_forward.6} parent=0 // pred_check_branch
    %13 = sbr.rel (0) target = $region5
  $region4: #{nlayer_discriminator_forward.6} parent=0 // pred_region
    _
  $region5: #{nlayer_discriminator_forward.6} parent=0 // pred_fallthru
    _
  // Predicated region
  $region6: #{nlayer_discriminator_forward.6} parent=0 // pred_check
    _
  $region7: #{nlayer_discriminator_forward.6} parent=0 // pred_check_branch
    %15 = sbr.rel (0) target = $region9
  $region8: #{nlayer_discriminator_forward.6} parent=0 // pred_region
    _
  $region9: #{nlayer_discriminator_forward.6} parent=0 // pred_fallthru
    _
  // Predicated region
  $region10: #{nlayer_discriminator_forward.6} parent=0 // pred_check
    _
  $region11: #{nlayer_discriminator_forward.6} parent=0 // pred_check_branch
    %17 = sbr.rel (0) target = $region13
  $region12: #{nlayer_discriminator_forward.6} parent=0 // pred_region
    _
  $region13: #{nlayer_discriminator_forward.6} parent=0 // pred_fallthru
    _
  // Predicated region
  $region14: #{nlayer_discriminator_forward.6} parent=0 // pred_check
    _
  $region15: #{nlayer_discriminator_forward.6} parent=0 // pred_check_branch
    %19 = sbr.rel (0) target = $region17
  $region16: #{nlayer_discriminator_forward.6} parent=0 // pred_region
    _
  $region17: #{nlayer_discriminator_forward.6} parent=0 // pred_fallthru
    _
  %p21 = scmp.eq.s32.totalorder 0, 0
  // Predicated region
  $region18: #{nlayer_discriminator_forward.6} parent=0 // pred_check
    %p22 = pneg %p21
  $region19: #{nlayer_discriminator_forward.6} parent=0 // pred_check_branch
    %24 = sbr.rel (%p22) target = $region21
  $region20: #{nlayer_discriminator_forward.6} parent=0 // pred_region
    %25 = vst [vmem:[#allocation2] sm:$0xff] 0.0
    %26 = vst [vmem:[#allocation2 + $0x8] sm:$0xff] 0.0
  $region21: #{nlayer_discriminator_forward.6} parent=0 // pred_fallthru
    _
  %v27 = vld [vmem:[%s0] sm:$0xf]
  %v28 = vld [vmem:[%s0 + $0x4] sm:$0xf]
  %v29 = vld [vmem:[%s0 + $0x8] sm:$0xf]
  %v30 = vld [vmem:[%s0 + $0xc] sm:$0xf]
  %v31 = vld [vmem:[%s0 + $0x10] sm:$0xf]
  %v32 = vld [vmem:[%s0 + $0x14] sm:$0xf]
  %v33 = vld [vmem:[%s0 + $0x18] sm:$0xf]
  %v34 = vld [vmem:[%s0 + $0x1c] sm:$0xf]
  %v35 = vld [vmem:[%s0 + $0x20] sm:$0xf]
  %v36 = vld [vmem:[%s0 + $0x24] sm:$0xf]
  %v37 = vld [vmem:[%s0 + $0x28] sm:$0xf]
  %v38 = vld [vmem:[%s0 + $0x2c] sm:$0xf]
  %v39 = vld [vmem:[%s0 + $0x30] sm:$0xf]
  %v40 = vld [vmem:[%s0 + $0x34] sm:$0xf]
  %v41 = vld [vmem:[%s0 + $0x38] sm:$0xf]
  %v42 = vld [vmem:[%s0 + $0x3c] sm:$0xf]
  %v43 = vld [vmem:[%s0 + $0x40] sm:$0xf]
  %v44 = vld [vmem:[%s0 + $0x44] sm:$0xf]
  %v45 = vld [vmem:[%s0 + $0x48] sm:$0xf]
  %v46 = vld [vmem:[%s0 + $0x4c] sm:$0xf]
  %v47 = vld [vmem:[%s0 + $0x50] sm:$0xf]
  %v48 = vld [vmem:[%s0 + $0x54] sm:$0xf]
  %v49 = vld [vmem:[%s0 + $0x58] sm:$0xf]
  %v50 = vld [vmem:[%s0 + $0x5c] sm:$0xf]
  %v51 = vld [vmem:[%s0 + $0x60] sm:$0xf]
  %v52 = vld [vmem:[%s0 + $0x64] sm:$0xf]
  %v53 = vld [vmem:[%s0 + $0x68] sm:$0xf]
  %v54 = vld [vmem:[%s0 + $0x6c] sm:$0xf]
  %v55 = vld [vmem:[%s0 + $0x70] sm:$0xf]
  %v56 = vld [vmem:[%s0 + $0x74] sm:$0xf]
  %v57 = vld [vmem:[%s0 + $0x78] sm:$0xf]
  %v58 = vld [vmem:[%s0 + $0x7c] sm:$0xf]
  %v59 = vld [vmem:[%s0 + $0x80] sm:$0xf]
  %v60 = vld [vmem:[%s0 + $0x84] sm:$0xf]
  %v61 = vld [vmem:[%s0 + $0x88] sm:$0xf]
  %v62 = vld [vmem:[%s0 + $0x8c] sm:$0xf]
  %v63 = vld [vmem:[%s0 + $0x90] sm:$0xf]
  %v64 = vld [vmem:[%s0 + $0x94] sm:$0xf]
  %v65 = vld [vmem:[%s0 + $0x98] sm:$0xf]
  %v66 = vld [vmem:[%s0 + $0x9c] sm:$0xf]
  %v67 = vld [vmem:[%s0 + $0xa0] sm:$0xf]
  %v68 = vld [vmem:[%s0 + $0xa4] sm:$0xf]
  %v69 = vld [vmem:[%s0 + $0xa8] sm:$0xf]
  %v70 = vld [vmem:[%s0 + $0xac] sm:$0xf]
  %v71 = vld [vmem:[%s0 + $0xb0] sm:$0xf]
  %v72 = vld [vmem:[%s0 + $0xb4] sm:$0xf]
  %v73 = vld [vmem:[%s0 + $0xb8] sm:$0xf]
  %v74 = vld [vmem:[%s0 + $0xbc] sm:$0xf]
  %v75 = vld [vmem:[%s0 + $0xc0] sm:$0xf]
  %v76 = vld [vmem:[%s0 + $0xc4] sm:$0xf]
  %v77 = vld [vmem:[%s0 + $0xc8] sm:$0xf]
  %v78 = vld [vmem:[%s0 + $0xcc] sm:$0xf]
  %v79 = vld [vmem:[%s0 + $0xd0] sm:$0xf]
  %v80 = vld [vmem:[%s0 + $0xd4] sm:$0xf]
  %v81 = vld [vmem:[%s0 + $0xd8] sm:$0xf]
  %v82 = vld [vmem:[%s0 + $0xdc] sm:$0xf]
  %v83 = vld [vmem:[%s0 + $0xe0] sm:$0xf]
  %v84 = vld [vmem:[%s0 + $0xe4] sm:$0xf]
  %v85 = vld [vmem:[%s0 + $0xe8] sm:$0xf]
  %v86 = vld [vmem:[%s0 + $0xec] sm:$0xf]
  %v87 = vld [vmem:[%s0 + $0xf0] sm:$0xf]
  %v88 = vld [vmem:[%s0 + $0xf4] sm:$0xf]
  %v89 = vld [vmem:[%s0 + $0xf8] sm:$0xf]
  %v90 = vld [vmem:[%s0 + $0xfc] sm:$0xf]
  %v91 = vunpack.c.l.bf16 %v27
  %v92 = vunpack.c.l.bf16 %v28
  %v93 = vunpack.c.l.bf16 %v29
  %v94 = vunpack.c.l.bf16 %v30
  %v95 = vunpack.c.l.bf16 %v31
  %v96 = vunpack.c.l.bf16 %v32
  %v97 = vunpack.c.l.bf16 %v33
  %v98 = vunpack.c.l.bf16 %v34
  %v99 = vunpack.c.l.bf16 %v35
  %v100 = vunpack.c.l.bf16 %v36
  %v101 = vunpack.c.l.bf16 %v37
  %v102 = vunpack.c.l.bf16 %v38
  %v103 = vunpack.c.l.bf16 %v39
  %v104 = vunpack.c.l.bf16 %v40
  %v105 = vunpack.c.l.bf16 %v41
  %v106 = vunpack.c.l.bf16 %v42
  %v107 = vunpack.c.l.bf16 %v43
  %v108 = vunpack.c.l.bf16 %v44
  %v109 = vunpack.c.l.bf16 %v45
  %v110 = vunpack.c.l.bf16 %v46
  %v111 = vunpack.c.l.bf16 %v47
  %v112 = vunpack.c.l.bf16 %v48
  %v113 = vunpack.c.l.bf16 %v49
  %v114 = vunpack.c.l.bf16 %v50
  %v115 = vunpack.c.l.bf16 %v51
  %v116 = vunpack.c.l.bf16 %v52
  %v117 = vunpack.c.l.bf16 %v53
  %v118 = vunpack.c.l.bf16 %v54
  %v119 = vunpack.c.l.bf16 %v55
  %v120 = vunpack.c.l.bf16 %v56
  %v121 = vunpack.c.l.bf16 %v57
  %v122 = vunpack.c.l.bf16 %v58
  %v123 = vunpack.c.l.bf16 %v59
  %v124 = vunpack.c.l.bf16 %v60
  %v125 = vunpack.c.l.bf16 %v61
  %v126 = vunpack.c.l.bf16 %v62
  %v127 = vunpack.c.l.bf16 %v63
  %v128 = vunpack.c.l.bf16 %v64
  %v129 = vunpack.c.l.bf16 %v65
  %v130 = vunpack.c.l.bf16 %v66
  %v131 = vunpack.c.l.bf16 %v67
  %v132 = vunpack.c.l.bf16 %v68
  %v133 = vunpack.c.l.bf16 %v69
  %v134 = vunpack.c.l.bf16 %v70
  %v135 = vunpack.c.l.bf16 %v71
  %v136 = vunpack.c.l.bf16 %v72
  %v137 = vunpack.c.l.bf16 %v73
  %v138 = vunpack.c.l.bf16 %v74
  %v139 = vunpack.c.l.bf16 %v75
  %v140 = vunpack.c.l.bf16 %v76
  %v141 = vunpack.c.l.bf16 %v77
  %v142 = vunpack.c.l.bf16 %v78
  %v143 = vunpack.c.l.bf16 %v79
  %v144 = vunpack.c.l.bf16 %v80
  %v145 = vunpack.c.l.bf16 %v81
  %v146 = vunpack.c.l.bf16 %v82
  %v147 = vunpack.c.l.bf16 %v83
  %v148 = vunpack.c.l.bf16 %v84
  %v149 = vunpack.c.l.bf16 %v85
  %v150 = vunpack.c.l.bf16 %v86
  %v151 = vunpack.c.l.bf16 %v87
  %v152 = vunpack.c.l.bf16 %v88
  %v153 = vunpack.c.l.bf16 %v89
  %v154 = vunpack.c.l.bf16 %v90
  %v155 = vld [vmem:[%s2] sm:$0xff]
  %v156 = vld [vmem:[%s2 + $0x8] sm:$0xff]
  %v157 = vld [vmem:[%s2 + $0x10] sm:$0xff]
  %v158 = vld [vmem:[%s2 + $0x18] sm:$0xff]
  %v159 = vld [vmem:[%s2 + $0x20] sm:$0xff]
  %v160 = vld [vmem:[%s2 + $0x28] sm:$0xff]
  %v161 = vld [vmem:[%s2 + $0x30] sm:$0xff]
  %v162 = vld [vmem:[%s2 + $0x38] sm:$0xff]
  %v163 = vld [vmem:[%s2 + $0x40] sm:$0xff]
  %v164 = vld [vmem:[%s2 + $0x48] sm:$0xff]
  %v165 = vld [vmem:[%s2 + $0x50] sm:$0xff]
  %v166 = vld [vmem:[%s2 + $0x58] sm:$0xff]
  %v167 = vld [vmem:[%s2 + $0x60] sm:$0xff]
  %v168 = vld [vmem:[%s2 + $0x68] sm:$0xff]
  %v169 = vld [vmem:[%s2 + $0x70] sm:$0xff]
  %v170 = vld [vmem:[%s2 + $0x78] sm:$0xff]
  %v171 = vld [vmem:[%s2 + $0x80] sm:$0xff]
  %v172 = vld [vmem:[%s2 + $0x88] sm:$0xff]
  %v173 = vld [vmem:[%s2 + $0x90] sm:$0xff]
  %v174 = vld [vmem:[%s2 + $0x98] sm:$0xff]
  %v175 = vld [vmem:[%s2 + $0xa0] sm:$0xff]
  %v176 = vld [vmem:[%s2 + $0xa8] sm:$0xff]
  %v177 = vld [vmem:[%s2 + $0xb0] sm:$0xff]
  %v178 = vld [vmem:[%s2 + $0xb8] sm:$0xff]
  %v179 = vld [vmem:[%s2 + $0xc0] sm:$0xff]
  %v180 = vld [vmem:[%s2 + $0xc8] sm:$0xff]
  %v181 = vld [vmem:[%s2 + $0xd0] sm:$0xff]
  %v182 = vld [vmem:[%s2 + $0xd8] sm:$0xff]
  %v183 = vld [vmem:[%s2 + $0xe0] sm:$0xff]
  %v184 = vld [vmem:[%s2 + $0xe8] sm:$0xff]
  %v185 = vld [vmem:[%s2 + $0xf0] sm:$0xff]
  %v186 = vld [vmem:[%s2 + $0xf8] sm:$0xff]
  %v187 = vld [vmem:[%s2 + $0x100] sm:$0xff]
  %v188 = vld [vmem:[%s2 + $0x108] sm:$0xff]
  %v189 = vld [vmem:[%s2 + $0x110] sm:$0xff]
  %v190 = vld [vmem:[%s2 + $0x118] sm:$0xff]
  %v191 = vld [vmem:[%s2 + $0x120] sm:$0xff]
  %v192 = vld [vmem:[%s2 + $0x128] sm:$0xff]
  %v193 = vld [vmem:[%s2 + $0x130] sm:$0xff]
  %v194 = vld [vmem:[%s2 + $0x138] sm:$0xff]
  %v195 = vld [vmem:[%s2 + $0x140] sm:$0xff]
  %v196 = vld [vmem:[%s2 + $0x148] sm:$0xff]
  %v197 = vld [vmem:[%s2 + $0x150] sm:$0xff]
  %v198 = vld [vmem:[%s2 + $0x158] sm:$0xff]
  %v199 = vld [vmem:[%s2 + $0x160] sm:$0xff]
  %v200 = vld [vmem:[%s2 + $0x168] sm:$0xff]
  %v201 = vld [vmem:[%s2 + $0x170] sm:$0xff]
  %v202 = vld [vmem:[%s2 + $0x178] sm:$0xff]
  %v203 = vld [vmem:[%s2 + $0x180] sm:$0xff]
  %v204 = vld [vmem:[%s2 + $0x188] sm:$0xff]
  %v205 = vld [vmem:[%s2 + $0x190] sm:$0xff]
  %v206 = vld [vmem:[%s2 + $0x198] sm:$0xff]
  %v207 = vld [vmem:[%s2 + $0x1a0] sm:$0xff]
  %v208 = vld [vmem:[%s2 + $0x1a8] sm:$0xff]
  %v209 = vld [vmem:[%s2 + $0x1b0] sm:$0xff]
  %v210 = vld [vmem:[%s2 + $0x1b8] sm:$0xff]
  %v211 = vld [vmem:[%s2 + $0x1c0] sm:$0xff]
  %v212 = vld [vmem:[%s2 + $0x1c8] sm:$0xff]
  %v213 = vld [vmem:[%s2 + $0x1d0] sm:$0xff]
  %v214 = vld [vmem:[%s2 + $0x1d8] sm:$0xff]
  %v215 = vld [vmem:[%s2 + $0x1e0] sm:$0xff]
  %v216 = vld [vmem:[%s2 + $0x1e8] sm:$0xff]
  %v217 = vld [vmem:[%s2 + $0x1f0] sm:$0xff]
  %v218 = vld [vmem:[%s2 + $0x1f8] sm:$0xff]
  %220 = vset.pattern.permute.xlu0 0
  %221 = vperm.xlu0 %220, %v155
  %v222 = vpop.permute.xlu0 %221
  %225 = vset.pattern.permute.xlu0 0
  %226 = vperm.xlu0 %225, %v156
  %v227 = vpop.permute.xlu0 %226
  %230 = vset.pattern.permute.xlu0 0
  %231 = vperm.xlu0 %230, %v157
  %v232 = vpop.permute.xlu0 %231
  %235 = vset.pattern.permute.xlu0 0
  %236 = vperm.xlu0 %235, %v158
  %v237 = vpop.permute.xlu0 %236
  %240 = vset.pattern.permute.xlu0 0
  %241 = vperm.xlu0 %240, %v159
  %v242 = vpop.permute.xlu0 %241
  %245 = vset.pattern.permute.xlu0 0
  %246 = vperm.xlu0 %245, %v160
  %v247 = vpop.permute.xlu0 %246
  %250 = vset.pattern.permute.xlu0 0
  %251 = vperm.xlu0 %250, %v161
  %v252 = vpop.permute.xlu0 %251
  %255 = vset.pattern.permute.xlu0 0
  %256 = vperm.xlu0 %255, %v162
  %v257 = vpop.permute.xlu0 %256
  %260 = vset.pattern.permute.xlu0 0
  %261 = vperm.xlu0 %260, %v163
  %v262 = vpop.permute.xlu0 %261
  %265 = vset.pattern.permute.xlu0 0
  %266 = vperm.xlu0 %265, %v164
  %v267 = vpop.permute.xlu0 %266
  %270 = vset.pattern.permute.xlu0 0
  %271 = vperm.xlu0 %270, %v165
  %v272 = vpop.permute.xlu0 %271
  %275 = vset.pattern.permute.xlu0 0
  %276 = vperm.xlu0 %275, %v166
  %v277 = vpop.permute.xlu0 %276
  %280 = vset.pattern.permute.xlu0 0
  %281 = vperm.xlu0 %280, %v167
  %v282 = vpop.permute.xlu0 %281
  %285 = vset.pattern.permute.xlu0 0
  %286 = vperm.xlu0 %285, %v168
  %v287 = vpop.permute.xlu0 %286
  %290 = vset.pattern.permute.xlu0 0
  %291 = vperm.xlu0 %290, %v169
  %v292 = vpop.permute.xlu0 %291
  %295 = vset.pattern.permute.xlu0 0
  %296 = vperm.xlu0 %295, %v170
  %v297 = vpop.permute.xlu0 %296
  %300 = vset.pattern.permute.xlu0 0
  %301 = vperm.xlu0 %300, %v171
  %v302 = vpop.permute.xlu0 %301
  %305 = vset.pattern.permute.xlu0 0
  %306 = vperm.xlu0 %305, %v172
  %v307 = vpop.permute.xlu0 %306
  %310 = vset.pattern.permute.xlu0 0
  %311 = vperm.xlu0 %310, %v173
  %v312 = vpop.permute.xlu0 %311
  %315 = vset.pattern.permute.xlu0 0
  %316 = vperm.xlu0 %315, %v174
  %v317 = vpop.permute.xlu0 %316
  %320 = vset.pattern.permute.xlu0 0
  %321 = vperm.xlu0 %320, %v175
  %v322 = vpop.permute.xlu0 %321
  %325 = vset.pattern.permute.xlu0 0
  %326 = vperm.xlu0 %325, %v176
  %v327 = vpop.permute.xlu0 %326
  %330 = vset.pattern.permute.xlu0 0
  %331 = vperm.xlu0 %330, %v177
  %v332 = vpop.permute.xlu0 %331
  %335 = vset.pattern.permute.xlu0 0
  %336 = vperm.xlu0 %335, %v178
  %v337 = vpop.permute.xlu0 %336
  %340 = vset.pattern.permute.xlu0 0
  %341 = vperm.xlu0 %340, %v179
  %v342 = vpop.permute.xlu0 %341
  %345 = vset.pattern.permute.xlu0 0
  %346 = vperm.xlu0 %345, %v180
  %v347 = vpop.permute.xlu0 %346
  %350 = vset.pattern.permute.xlu0 0
  %351 = vperm.xlu0 %350, %v181
  %v352 = vpop.permute.xlu0 %351
  %355 = vset.pattern.permute.xlu0 0
  %356 = vperm.xlu0 %355, %v182
  %v357 = vpop.permute.xlu0 %356
  %360 = vset.pattern.permute.xlu0 0
  %361 = vperm.xlu0 %360, %v183
  %v362 = vpop.permute.xlu0 %361
  %365 = vset.pattern.permute.xlu0 0
  %366 = vperm.xlu0 %365, %v184
  %v367 = vpop.permute.xlu0 %366
  %370 = vset.pattern.permute.xlu0 0
  %371 = vperm.xlu0 %370, %v185
  %v372 = vpop.permute.xlu0 %371
  %375 = vset.pattern.permute.xlu0 0
  %376 = vperm.xlu0 %375, %v186
  %v377 = vpop.permute.xlu0 %376
  %380 = vset.pattern.permute.xlu0 0
  %381 = vperm.xlu0 %380, %v187
  %v382 = vpop.permute.xlu0 %381
  %385 = vset.pattern.permute.xlu0 0
  %386 = vperm.xlu0 %385, %v188
  %v387 = vpop.permute.xlu0 %386
  %390 = vset.pattern.permute.xlu0 0
  %391 = vperm.xlu0 %390, %v189
  %v392 = vpop.permute.xlu0 %391
  %395 = vset.pattern.permute.xlu0 0
  %396 = vperm.xlu0 %395, %v190
  %v397 = vpop.permute.xlu0 %396
  %400 = vset.pattern.permute.xlu0 0
  %401 = vperm.xlu0 %400, %v191
  %v402 = vpop.permute.xlu0 %401
  %405 = vset.pattern.permute.xlu0 0
  %406 = vperm.xlu0 %405, %v192
  %v407 = vpop.permute.xlu0 %406
  %410 = vset.pattern.permute.xlu0 0
  %411 = vperm.xlu0 %410, %v193
  %v412 = vpop.permute.xlu0 %411
  %415 = vset.pattern.permute.xlu0 0
  %416 = vperm.xlu0 %415, %v194
  %v417 = vpop.permute.xlu0 %416
  %420 = vset.pattern.permute.xlu0 0
  %421 = vperm.xlu0 %420, %v195
  %v422 = vpop.permute.xlu0 %421
  %425 = vset.pattern.permute.xlu0 0
  %426 = vperm.xlu0 %425, %v196
  %v427 = vpop.permute.xlu0 %426
  %430 = vset.pattern.permute.xlu0 0
  %431 = vperm.xlu0 %430, %v197
  %v432 = vpop.permute.xlu0 %431
  %435 = vset.pattern.permute.xlu0 0
  %436 = vperm.xlu0 %435, %v198
  %v437 = vpop.permute.xlu0 %436
  %440 = vset.pattern.permute.xlu0 0
  %441 = vperm.xlu0 %440, %v199
  %v442 = vpop.permute.xlu0 %441
  %445 = vset.pattern.permute.xlu0 0
  %446 = vperm.xlu0 %445, %v200
  %v447 = vpop.permute.xlu0 %446
  %450 = vset.pattern.permute.xlu0 0
  %451 = vperm.xlu0 %450, %v201
  %v452 = vpop.permute.xlu0 %451
  %455 = vset.pattern.permute.xlu0 0
  %456 = vperm.xlu0 %455, %v202
  %v457 = vpop.permute.xlu0 %456
  %460 = vset.pattern.permute.xlu0 0
  %461 = vperm.xlu0 %460, %v203
  %v462 = vpop.permute.xlu0 %461
  %465 = vset.pattern.permute.xlu0 0
  %466 = vperm.xlu0 %465, %v204
  %v467 = vpop.permute.xlu0 %466
  %470 = vset.pattern.permute.xlu0 0
  %471 = vperm.xlu0 %470, %v205
  %v472 = vpop.permute.xlu0 %471
  %475 = vset.pattern.permute.xlu0 0
  %476 = vperm.xlu0 %475, %v206
  %v477 = vpop.permute.xlu0 %476
  %480 = vset.pattern.permute.xlu0 0
  %481 = vperm.xlu0 %480, %v207
  %v482 = vpop.permute.xlu0 %481
  %485 = vset.pattern.permute.xlu0 0
  %486 = vperm.xlu0 %485, %v208
  %v487 = vpop.permute.xlu0 %486
  %490 = vset.pattern.permute.xlu0 0
  %491 = vperm.xlu0 %490, %v209
  %v492 = vpop.permute.xlu0 %491
  %495 = vset.pattern.permute.xlu0 0
  %496 = vperm.xlu0 %495, %v210
  %v497 = vpop.permute.xlu0 %496
  %500 = vset.pattern.permute.xlu0 0
  %501 = vperm.xlu0 %500, %v211
  %v502 = vpop.permute.xlu0 %501
  %505 = vset.pattern.permute.xlu0 0
  %506 = vperm.xlu0 %505, %v212
  %v507 = vpop.permute.xlu0 %506
  %510 = vset.pattern.permute.xlu0 0
  %511 = vperm.xlu0 %510, %v213
  %v512 = vpop.permute.xlu0 %511
  %515 = vset.pattern.permute.xlu0 0
  %516 = vperm.xlu0 %515, %v214
  %v517 = vpop.permute.xlu0 %516
  %520 = vset.pattern.permute.xlu0 0
  %521 = vperm.xlu0 %520, %v215
  %v522 = vpop.permute.xlu0 %521
  %525 = vset.pattern.permute.xlu0 0
  %526 = vperm.xlu0 %525, %v216
  %v527 = vpop.permute.xlu0 %526
  %530 = vset.pattern.permute.xlu0 0
  %531 = vperm.xlu0 %530, %v217
  %v532 = vpop.permute.xlu0 %531
  %535 = vset.pattern.permute.xlu0 0
  %536 = vperm.xlu0 %535, %v218
  %v537 = vpop.permute.xlu0 %536
  %v539 = vmul.f32 %v91, %v222
  %v540 = vmul.f32 %v92, %v227
  %v541 = vmul.f32 %v93, %v232
  %v542 = vmul.f32 %v94, %v237
  %v543 = vmul.f32 %v95, %v242
  %v544 = vmul.f32 %v96, %v247
  %v545 = vmul.f32 %v97, %v252
  %v546 = vmul.f32 %v98, %v257
  %v547 = vmul.f32 %v99, %v262
  %v548 = vmul.f32 %v100, %v267
  %v549 = vmul.f32 %v101, %v272
  %v550 = vmul.f32 %v102, %v277
  %v551 = vmul.f32 %v103, %v282
  %v552 = vmul.f32 %v104, %v287
  %v553 = vmul.f32 %v105, %v292
  %v554 = vmul.f32 %v106, %v297
  %v555 = vmul.f32 %v107, %v302
  %v556 = vmul.f32 %v108, %v307
  %v557 = vmul.f32 %v109, %v312
  %v558 = vmul.f32 %v110, %v317
  %v559 = vmul.f32 %v111, %v322
  %v560 = vmul.f32 %v112, %v327
  %v561 = vmul.f32 %v113, %v332
  %v562 = vmul.f32 %v114, %v337
  %v563 = vmul.f32 %v115, %v342
  %v564 = vmul.f32 %v116, %v347
  %v565 = vmul.f32 %v117, %v352
  %v566 = vmul.f32 %v118, %v357
  %v567 = vmul.f32 %v119, %v362
  %v568 = vmul.f32 %v120, %v367
  %v569 = vmul.f32 %v121, %v372
  %v570 = vmul.f32 %v122, %v377
  %v571 = vmul.f32 %v123, %v382
  %v572 = vmul.f32 %v124, %v387
  %v573 = vmul.f32 %v125, %v392
  %v574 = vmul.f32 %v126, %v397
  %v575 = vmul.f32 %v127, %v402
  %v576 = vmul.f32 %v128, %v407
  %v577 = vmul.f32 %v129, %v412
  %v578 = vmul.f32 %v130, %v417
  %v579 = vmul.f32 %v131, %v422
  %v580 = vmul.f32 %v132, %v427
  %v581 = vmul.f32 %v133, %v432
  %v582 = vmul.f32 %v134, %v437
  %v583 = vmul.f32 %v135, %v442
  %v584 = vmul.f32 %v136, %v447
  %v585 = vmul.f32 %v137, %v452
  %v586 = vmul.f32 %v138, %v457
  %v587 = vmul.f32 %v139, %v462
  %v588 = vmul.f32 %v140, %v467
  %v589 = vmul.f32 %v141, %v472
  %v590 = vmul.f32 %v142, %v477
  %v591 = vmul.f32 %v143, %v482
  %v592 = vmul.f32 %v144, %v487
  %v593 = vmul.f32 %v145, %v492
  %v594 = vmul.f32 %v146, %v497
  %v595 = vmul.f32 %v147, %v502
  %v596 = vmul.f32 %v148, %v507
  %v597 = vmul.f32 %v149, %v512
  %v598 = vmul.f32 %v150, %v517
  %v599 = vmul.f32 %v151, %v522
  %v600 = vmul.f32 %v152, %v527
  %v601 = vmul.f32 %v153, %v532
  %v602 = vmul.f32 %v154, %v537
  %v603 = vld [vmem:[%s3] sm:$0xff]
  %v604 = vld [vmem:[%s3 + $0x8] sm:$0xff]
  %v605 = vld [vmem:[%s3 + $0x10] sm:$0xff]
  %v606 = vld [vmem:[%s3 + $0x18] sm:$0xff]
  %v607 = vld [vmem:[%s3 + $0x20] sm:$0xff]
  %v608 = vld [vmem:[%s3 + $0x28] sm:$0xff]
  %v609 = vld [vmem:[%s3 + $0x30] sm:$0xff]
  %v610 = vld [vmem:[%s3 + $0x38] sm:$0xff]
  %v611 = vld [vmem:[%s3 + $0x40] sm:$0xff]
  %v612 = vld [vmem:[%s3 + $0x48] sm:$0xff]
  %v613 = vld [vmem:[%s3 + $0x50] sm:$0xff]
  %v614 = vld [vmem:[%s3 + $0x58] sm:$0xff]
  %v615 = vld [vmem:[%s3 + $0x60] sm:$0xff]
  %v616 = vld [vmem:[%s3 + $0x68] sm:$0xff]
  %v617 = vld [vmem:[%s3 + $0x70] sm:$0xff]
  %v618 = vld [vmem:[%s3 + $0x78] sm:$0xff]
  %v619 = vld [vmem:[%s3 + $0x80] sm:$0xff]
  %v620 = vld [vmem:[%s3 + $0x88] sm:$0xff]
  %v621 = vld [vmem:[%s3 + $0x90] sm:$0xff]
  %v622 = vld [vmem:[%s3 + $0x98] sm:$0xff]
  %v623 = vld [vmem:[%s3 + $0xa0] sm:$0xff]
  %v624 = vld [vmem:[%s3 + $0xa8] sm:$0xff]
  %v625 = vld [vmem:[%s3 + $0xb0] sm:$0xff]
  %v626 = vld [vmem:[%s3 + $0xb8] sm:$0xff]
  %v627 = vld [vmem:[%s3 + $0xc0] sm:$0xff]
  %v628 = vld [vmem:[%s3 + $0xc8] sm:$0xff]
  %v629 = vld [vmem:[%s3 + $0xd0] sm:$0xff]
  %v630 = vld [vmem:[%s3 + $0xd8] sm:$0xff]
  %v631 = vld [vmem:[%s3 + $0xe0] sm:$0xff]
  %v632 = vld [vmem:[%s3 + $0xe8] sm:$0xff]
  %v633 = vld [vmem:[%s3 + $0xf0] sm:$0xff]
  %v634 = vld [vmem:[%s3 + $0xf8] sm:$0xff]
  %v635 = vld [vmem:[%s3 + $0x100] sm:$0xff]
  %v636 = vld [vmem:[%s3 + $0x108] sm:$0xff]
  %v637 = vld [vmem:[%s3 + $0x110] sm:$0xff]
  %v638 = vld [vmem:[%s3 + $0x118] sm:$0xff]
  %v639 = vld [vmem:[%s3 + $0x120] sm:$0xff]
  %v640 = vld [vmem:[%s3 + $0x128] sm:$0xff]
  %v641 = vld [vmem:[%s3 + $0x130] sm:$0xff]
  %v642 = vld [vmem:[%s3 + $0x138] sm:$0xff]
  %v643 = vld [vmem:[%s3 + $0x140] sm:$0xff]
  %v644 = vld [vmem:[%s3 + $0x148] sm:$0xff]
  %v645 = vld [vmem:[%s3 + $0x150] sm:$0xff]
  %v646 = vld [vmem:[%s3 + $0x158] sm:$0xff]
  %v647 = vld [vmem:[%s3 + $0x160] sm:$0xff]
  %v648 = vld [vmem:[%s3 + $0x168] sm:$0xff]
  %v649 = vld [vmem:[%s3 + $0x170] sm:$0xff]
  %v650 = vld [vmem:[%s3 + $0x178] sm:$0xff]
  %v651 = vld [vmem:[%s3 + $0x180] sm:$0xff]
  %v652 = vld [vmem:[%s3 + $0x188] sm:$0xff]
  %v653 = vld [vmem:[%s3 + $0x190] sm:$0xff]
  %v654 = vld [vmem:[%s3 + $0x198] sm:$0xff]
  %v655 = vld [vmem:[%s3 + $0x1a0] sm:$0xff]
  %v656 = vld [vmem:[%s3 + $0x1a8] sm:$0xff]
  %v657 = vld [vmem:[%s3 + $0x1b0] sm:$0xff]
  %v658 = vld [vmem:[%s3 + $0x1b8] sm:$0xff]
  %v659 = vld [vmem:[%s3 + $0x1c0] sm:$0xff]
  %v660 = vld [vmem:[%s3 + $0x1c8] sm:$0xff]
  %v661 = vld [vmem:[%s3 + $0x1d0] sm:$0xff]
  %v662 = vld [vmem:[%s3 + $0x1d8] sm:$0xff]
  %v663 = vld [vmem:[%s3 + $0x1e0] sm:$0xff]
  %v664 = vld [vmem:[%s3 + $0x1e8] sm:$0xff]
  %v665 = vld [vmem:[%s3 + $0x1f0] sm:$0xff]
  %v666 = vld [vmem:[%s3 + $0x1f8] sm:$0xff]
  %668 = vset.pattern.permute.xlu0 0
  %669 = vperm.xlu0 %668, %v603
  %v670 = vpop.permute.xlu0 %669
  %673 = vset.pattern.permute.xlu0 0
  %674 = vperm.xlu0 %673, %v604
  %v675 = vpop.permute.xlu0 %674
  %678 = vset.pattern.permute.xlu0 0
  %679 = vperm.xlu0 %678, %v605
  %v680 = vpop.permute.xlu0 %679
  %683 = vset.pattern.permute.xlu0 0
  %684 = vperm.xlu0 %683, %v606
  %v685 = vpop.permute.xlu0 %684
  %688 = vset.pattern.permute.xlu0 0
  %689 = vperm.xlu0 %688, %v607
  %v690 = vpop.permute.xlu0 %689
  %693 = vset.pattern.permute.xlu0 0
  %694 = vperm.xlu0 %693, %v608
  %v695 = vpop.permute.xlu0 %694
  %698 = vset.pattern.permute.xlu0 0
  %699 = vperm.xlu0 %698, %v609
  %v700 = vpop.permute.xlu0 %699
  %703 = vset.pattern.permute.xlu0 0
  %704 = vperm.xlu0 %703, %v610
  %v705 = vpop.permute.xlu0 %704
  %708 = vset.pattern.permute.xlu0 0
  %709 = vperm.xlu0 %708, %v611
  %v710 = vpop.permute.xlu0 %709
  %713 = vset.pattern.permute.xlu0 0
  %714 = vperm.xlu0 %713, %v612
  %v715 = vpop.permute.xlu0 %714
  %718 = vset.pattern.permute.xlu0 0
  %719 = vperm.xlu0 %718, %v613
  %v720 = vpop.permute.xlu0 %719
  %723 = vset.pattern.permute.xlu0 0
  %724 = vperm.xlu0 %723, %v614
  %v725 = vpop.permute.xlu0 %724
  %728 = vset.pattern.permute.xlu0 0
  %729 = vperm.xlu0 %728, %v615
  %v730 = vpop.permute.xlu0 %729
  %733 = vset.pattern.permute.xlu0 0
  %734 = vperm.xlu0 %733, %v616
  %v735 = vpop.permute.xlu0 %734
  %738 = vset.pattern.permute.xlu0 0
  %739 = vperm.xlu0 %738, %v617
  %v740 = vpop.permute.xlu0 %739
  %743 = vset.pattern.permute.xlu0 0
  %744 = vperm.xlu0 %743, %v618
  %v745 = vpop.permute.xlu0 %744
  %748 = vset.pattern.permute.xlu0 0
  %749 = vperm.xlu0 %748, %v619
  %v750 = vpop.permute.xlu0 %749
  %753 = vset.pattern.permute.xlu0 0
  %754 = vperm.xlu0 %753, %v620
  %v755 = vpop.permute.xlu0 %754
  %758 = vset.pattern.permute.xlu0 0
  %759 = vperm.xlu0 %758, %v621
  %v760 = vpop.permute.xlu0 %759
  %763 = vset.pattern.permute.xlu0 0
  %764 = vperm.xlu0 %763, %v622
  %v765 = vpop.permute.xlu0 %764
  %768 = vset.pattern.permute.xlu0 0
  %769 = vperm.xlu0 %768, %v623
  %v770 = vpop.permute.xlu0 %769
  %773 = vset.pattern.permute.xlu0 0
  %774 = vperm.xlu0 %773, %v624
  %v775 = vpop.permute.xlu0 %774
  %778 = vset.pattern.permute.xlu0 0
  %779 = vperm.xlu0 %778, %v625
  %v780 = vpop.permute.xlu0 %779
  %783 = vset.pattern.permute.xlu0 0
  %784 = vperm.xlu0 %783, %v626
  %v785 = vpop.permute.xlu0 %784
  %788 = vset.pattern.permute.xlu0 0
  %789 = vperm.xlu0 %788, %v627
  %v790 = vpop.permute.xlu0 %789
  %793 = vset.pattern.permute.xlu0 0
  %794 = vperm.xlu0 %793, %v628
  %v795 = vpop.permute.xlu0 %794
  %798 = vset.pattern.permute.xlu0 0
  %799 = vperm.xlu0 %798, %v629
  %v800 = vpop.permute.xlu0 %799
  %803 = vset.pattern.permute.xlu0 0
  %804 = vperm.xlu0 %803, %v630
  %v805 = vpop.permute.xlu0 %804
  %808 = vset.pattern.permute.xlu0 0
  %809 = vperm.xlu0 %808, %v631
  %v810 = vpop.permute.xlu0 %809
  %813 = vset.pattern.permute.xlu0 0
  %814 = vperm.xlu0 %813, %v632
  %v815 = vpop.permute.xlu0 %814
  %818 = vset.pattern.permute.xlu0 0
  %819 = vperm.xlu0 %818, %v633
  %v820 = vpop.permute.xlu0 %819
  %823 = vset.pattern.permute.xlu0 0
  %824 = vperm.xlu0 %823, %v634
  %v825 = vpop.permute.xlu0 %824
  %828 = vset.pattern.permute.xlu0 0
  %829 = vperm.xlu0 %828, %v635
  %v830 = vpop.permute.xlu0 %829
  %833 = vset.pattern.permute.xlu0 0
  %834 = vperm.xlu0 %833, %v636
  %v835 = vpop.permute.xlu0 %834
  %838 = vset.pattern.permute.xlu0 0
  %839 = vperm.xlu0 %838, %v637
  %v840 = vpop.permute.xlu0 %839
  %843 = vset.pattern.permute.xlu0 0
  %844 = vperm.xlu0 %843, %v638
  %v845 = vpop.permute.xlu0 %844
  %848 = vset.pattern.permute.xlu0 0
  %849 = vperm.xlu0 %848, %v639
  %v850 = vpop.permute.xlu0 %849
  %853 = vset.pattern.permute.xlu0 0
  %854 = vperm.xlu0 %853, %v640
  %v855 = vpop.permute.xlu0 %854
  %858 = vset.pattern.permute.xlu0 0
  %859 = vperm.xlu0 %858, %v641
  %v860 = vpop.permute.xlu0 %859
  %863 = vset.pattern.permute.xlu0 0
  %864 = vperm.xlu0 %863, %v642
  %v865 = vpop.permute.xlu0 %864
  %868 = vset.pattern.permute.xlu0 0
  %869 = vperm.xlu0 %868, %v643
  %v870 = vpop.permute.xlu0 %869
  %873 = vset.pattern.permute.xlu0 0
  %874 = vperm.xlu0 %873, %v644
  %v875 = vpop.permute.xlu0 %874
  %878 = vset.pattern.permute.xlu0 0
  %879 = vperm.xlu0 %878, %v645
  %v880 = vpop.permute.xlu0 %879
  %883 = vset.pattern.permute.xlu0 0
  %884 = vperm.xlu0 %883, %v646
  %v885 = vpop.permute.xlu0 %884
  %888 = vset.pattern.permute.xlu0 0
  %889 = vperm.xlu0 %888, %v647
  %v890 = vpop.permute.xlu0 %889
  %893 = vset.pattern.permute.xlu0 0
  %894 = vperm.xlu0 %893, %v648
  %v895 = vpop.permute.xlu0 %894
  %898 = vset.pattern.permute.xlu0 0
  %899 = vperm.xlu0 %898, %v649
  %v900 = vpop.permute.xlu0 %899
  %903 = vset.pattern.permute.xlu0 0
  %904 = vperm.xlu0 %903, %v650
  %v905 = vpop.permute.xlu0 %904
  %908 = vset.pattern.permute.xlu0 0
  %909 = vperm.xlu0 %908, %v651
  %v910 = vpop.permute.xlu0 %909
  %913 = vset.pattern.permute.xlu0 0
  %914 = vperm.xlu0 %913, %v652
  %v915 = vpop.permute.xlu0 %914
  %918 = vset.pattern.permute.xlu0 0
  %919 = vperm.xlu0 %918, %v653
  %v920 = vpop.permute.xlu0 %919
  %923 = vset.pattern.permute.xlu0 0
  %924 = vperm.xlu0 %923, %v654
  %v925 = vpop.permute.xlu0 %924
  %928 = vset.pattern.permute.xlu0 0
  %929 = vperm.xlu0 %928, %v655
  %v930 = vpop.permute.xlu0 %929
  %933 = vset.pattern.permute.xlu0 0
  %934 = vperm.xlu0 %933, %v656
  %v935 = vpop.permute.xlu0 %934
  %938 = vset.pattern.permute.xlu0 0
  %939 = vperm.xlu0 %938, %v657
  %v940 = vpop.permute.xlu0 %939
  %943 = vset.pattern.permute.xlu0 0
  %944 = vperm.xlu0 %943, %v658
  %v945 = vpop.permute.xlu0 %944
  %948 = vset.pattern.permute.xlu0 0
  %949 = vperm.xlu0 %948, %v659
  %v950 = vpop.permute.xlu0 %949
  %953 = vset.pattern.permute.xlu0 0
  %954 = vperm.xlu0 %953, %v660
  %v955 = vpop.permute.xlu0 %954
  %958 = vset.pattern.permute.xlu0 0
  %959 = vperm.xlu0 %958, %v661
  %v960 = vpop.permute.xlu0 %959
  %963 = vset.pattern.permute.xlu0 0
  %964 = vperm.xlu0 %963, %v662
  %v965 = vpop.permute.xlu0 %964
  %968 = vset.pattern.permute.xlu0 0
  %969 = vperm.xlu0 %968, %v663
  %v970 = vpop.permute.xlu0 %969
  %973 = vset.pattern.permute.xlu0 0
  %974 = vperm.xlu0 %973, %v664
  %v975 = vpop.permute.xlu0 %974
  %978 = vset.pattern.permute.xlu0 0
  %979 = vperm.xlu0 %978, %v665
  %v980 = vpop.permute.xlu0 %979
  %983 = vset.pattern.permute.xlu0 0
  %984 = vperm.xlu0 %983, %v666
  %v985 = vpop.permute.xlu0 %984
  %v987 = vadd.f32 %v539, %v670
  %v988 = vadd.f32 %v540, %v675
  %v989 = vadd.f32 %v541, %v680
  %v990 = vadd.f32 %v542, %v685
  %v991 = vadd.f32 %v543, %v690
  %v992 = vadd.f32 %v544, %v695
  %v993 = vadd.f32 %v545, %v700
  %v994 = vadd.f32 %v546, %v705
  %v995 = vadd.f32 %v547, %v710
  %v996 = vadd.f32 %v548, %v715
  %v997 = vadd.f32 %v549, %v720
  %v998 = vadd.f32 %v550, %v725
  %v999 = vadd.f32 %v551, %v730
  %v1000 = vadd.f32 %v552, %v735
  %v1001 = vadd.f32 %v553, %v740
  %v1002 = vadd.f32 %v554, %v745
  %v1003 = vadd.f32 %v555, %v750
  %v1004 = vadd.f32 %v556, %v755
  %v1005 = vadd.f32 %v557, %v760
  %v1006 = vadd.f32 %v558, %v765
  %v1007 = vadd.f32 %v559, %v770
  %v1008 = vadd.f32 %v560, %v775
  %v1009 = vadd.f32 %v561, %v780
  %v1010 = vadd.f32 %v562, %v785
  %v1011 = vadd.f32 %v563, %v790
  %v1012 = vadd.f32 %v564, %v795
  %v1013 = vadd.f32 %v565, %v800
  %v1014 = vadd.f32 %v566, %v805
  %v1015 = vadd.f32 %v567, %v810
  %v1016 = vadd.f32 %v568, %v815
  %v1017 = vadd.f32 %v569, %v820
  %v1018 = vadd.f32 %v570, %v825
  %v1019 = vadd.f32 %v571, %v830
  %v1020 = vadd.f32 %v572, %v835
  %v1021 = vadd.f32 %v573, %v840
  %v1022 = vadd.f32 %v574, %v845
  %v1023 = vadd.f32 %v575, %v850
  %v1024 = vadd.f32 %v576, %v855
  %v1025 = vadd.f32 %v577, %v860
  %v1026 = vadd.f32 %v578, %v865
  %v1027 = vadd.f32 %v579, %v870
  %v1028 = vadd.f32 %v580, %v875
  %v1029 = vadd.f32 %v581, %v880
  %v1030 = vadd.f32 %v582, %v885
  %v1031 = vadd.f32 %v583, %v890
  %v1032 = vadd.f32 %v584, %v895
  %v1033 = vadd.f32 %v585, %v900
  %v1034 = vadd.f32 %v586, %v905
  %v1035 = vadd.f32 %v587, %v910
  %v1036 = vadd.f32 %v588, %v915
  %v1037 = vadd.f32 %v589, %v920
  %v1038 = vadd.f32 %v590, %v925
  %v1039 = vadd.f32 %v591, %v930
  %v1040 = vadd.f32 %v592, %v935
  %v1041 = vadd.f32 %v593, %v940
  %v1042 = vadd.f32 %v594, %v945
  %v1043 = vadd.f32 %v595, %v950
  %v1044 = vadd.f32 %v596, %v955
  %v1045 = vadd.f32 %v597, %v960
  %v1046 = vadd.f32 %v598, %v965
  %v1047 = vadd.f32 %v599, %v970
  %v1048 = vadd.f32 %v600, %v975
  %v1049 = vadd.f32 %v601, %v980
  %v1050 = vadd.f32 %v602, %v985
  %vm1051 = vcmp.ge.f32.partialorder %v987, 0.0
  %vm1052 = vcmp.ge.f32.partialorder %v988, 0.0
  %vm1053 = vcmp.ge.f32.partialorder %v989, 0.0
  %vm1054 = vcmp.ge.f32.partialorder %v990, 0.0
  %vm1055 = vcmp.ge.f32.partialorder %v991, 0.0
  %vm1056 = vcmp.ge.f32.partialorder %v992, 0.0
  %vm1057 = vcmp.ge.f32.partialorder %v993, 0.0
  %vm1058 = vcmp.ge.f32.partialorder %v994, 0.0
  %vm1059 = vcmp.ge.f32.partialorder %v995, 0.0
  %vm1060 = vcmp.ge.f32.partialorder %v996, 0.0
  %vm1061 = vcmp.ge.f32.partialorder %v997, 0.0
  %vm1062 = vcmp.ge.f32.partialorder %v998, 0.0
  %vm1063 = vcmp.ge.f32.partialorder %v999, 0.0
  %vm1064 = vcmp.ge.f32.partialorder %v1000, 0.0
  %vm1065 = vcmp.ge.f32.partialorder %v1001, 0.0
  %vm1066 = vcmp.ge.f32.partialorder %v1002, 0.0
  %vm1067 = vcmp.ge.f32.partialorder %v1003, 0.0
  %vm1068 = vcmp.ge.f32.partialorder %v1004, 0.0
  %vm1069 = vcmp.ge.f32.partialorder %v1005, 0.0
  %vm1070 = vcmp.ge.f32.partialorder %v1006, 0.0
  %vm1071 = vcmp.ge.f32.partialorder %v1007, 0.0
  %vm1072 = vcmp.ge.f32.partialorder %v1008, 0.0
  %vm1073 = vcmp.ge.f32.partialorder %v1009, 0.0
  %vm1074 = vcmp.ge.f32.partialorder %v1010, 0.0
  %vm1075 = vcmp.ge.f32.partialorder %v1011, 0.0
  %vm1076 = vcmp.ge.f32.partialorder %v1012, 0.0
  %vm1077 = vcmp.ge.f32.partialorder %v1013, 0.0
  %vm1078 = vcmp.ge.f32.partialorder %v1014, 0.0
  %vm1079 = vcmp.ge.f32.partialorder %v1015, 0.0
  %vm1080 = vcmp.ge.f32.partialorder %v1016, 0.0
  %vm1081 = vcmp.ge.f32.partialorder %v1017, 0.0
  %vm1082 = vcmp.ge.f32.partialorder %v1018, 0.0
  %vm1083 = vcmp.ge.f32.partialorder %v1019, 0.0
  %vm1084 = vcmp.ge.f32.partialorder %v1020, 0.0
  %vm1085 = vcmp.ge.f32.partialorder %v1021, 0.0
  %vm1086 = vcmp.ge.f32.partialorder %v1022, 0.0
  %vm1087 = vcmp.ge.f32.partialorder %v1023, 0.0
  %vm1088 = vcmp.ge.f32.partialorder %v1024, 0.0
  %vm1089 = vcmp.ge.f32.partialorder %v1025, 0.0
  %vm1090 = vcmp.ge.f32.partialorder %v1026, 0.0
  %vm1091 = vcmp.ge.f32.partialorder %v1027, 0.0
  %vm1092 = vcmp.ge.f32.partialorder %v1028, 0.0
  %vm1093 = vcmp.ge.f32.partialorder %v1029, 0.0
  %vm1094 = vcmp.ge.f32.partialorder %v1030, 0.0
  %vm1095 = vcmp.ge.f32.partialorder %v1031, 0.0
  %vm1096 = vcmp.ge.f32.partialorder %v1032, 0.0
  %vm1097 = vcmp.ge.f32.partialorder %v1033, 0.0
  %vm1098 = vcmp.ge.f32.partialorder %v1034, 0.0
  %vm1099 = vcmp.ge.f32.partialorder %v1035, 0.0
  %vm1100 = vcmp.ge.f32.partialorder %v1036, 0.0
  %vm1101 = vcmp.ge.f32.partialorder %v1037, 0.0
  %vm1102 = vcmp.ge.f32.partialorder %v1038, 0.0
  %vm1103 = vcmp.ge.f32.partialorder %v1039, 0.0
  %vm1104 = vcmp.ge.f32.partialorder %v1040, 0.0
  %vm1105 = vcmp.ge.f32.partialorder %v1041, 0.0
  %vm1106 = vcmp.ge.f32.partialorder %v1042, 0.0
  %vm1107 = vcmp.ge.f32.partialorder %v1043, 0.0
  %vm1108 = vcmp.ge.f32.partialorder %v1044, 0.0
  %vm1109 = vcmp.ge.f32.partialorder %v1045, 0.0
  %vm1110 = vcmp.ge.f32.partialorder %v1046, 0.0
  %vm1111 = vcmp.ge.f32.partialorder %v1047, 0.0
  %vm1112 = vcmp.ge.f32.partialorder %v1048, 0.0
  %vm1113 = vcmp.ge.f32.partialorder %v1049, 0.0
  %vm1114 = vcmp.ge.f32.partialorder %v1050, 0.0
  %v1115 = vmul.f32 %v987, 0.2
  %v1116 = vmul.f32 %v988, 0.2
  %v1117 = vmul.f32 %v989, 0.2
  %v1118 = vmul.f32 %v990, 0.2
  %v1119 = vmul.f32 %v991, 0.2
  %v1120 = vmul.f32 %v992, 0.2
  %v1121 = vmul.f32 %v993, 0.2
  %v1122 = vmul.f32 %v994, 0.2
  %v1123 = vmul.f32 %v995, 0.2
  %v1124 = vmul.f32 %v996, 0.2
  %v1125 = vmul.f32 %v997, 0.2
  %v1126 = vmul.f32 %v998, 0.2
  %v1127 = vmul.f32 %v999, 0.2
  %v1128 = vmul.f32 %v1000, 0.2
  %v1129 = vmul.f32 %v1001, 0.2
  %v1130 = vmul.f32 %v1002, 0.2
  %v1131 = vmul.f32 %v1003, 0.2
  %v1132 = vmul.f32 %v1004, 0.2
  %v1133 = vmul.f32 %v1005, 0.2
  %v1134 = vmul.f32 %v1006, 0.2
  %v1135 = vmul.f32 %v1007, 0.2
  %v1136 = vmul.f32 %v1008, 0.2
  %v1137 = vmul.f32 %v1009, 0.2
  %v1138 = vmul.f32 %v1010, 0.2
  %v1139 = vmul.f32 %v1011, 0.2
  %v1140 = vmul.f32 %v1012, 0.2
  %v1141 = vmul.f32 %v1013, 0.2
  %v1142 = vmul.f32 %v1014, 0.2
  %v1143 = vmul.f32 %v1015, 0.2
  %v1144 = vmul.f32 %v1016, 0.2
  %v1145 = vmul.f32 %v1017, 0.2
  %v1146 = vmul.f32 %v1018, 0.2
  %v1147 = vmul.f32 %v1019, 0.2
  %v1148 = vmul.f32 %v1020, 0.2
  %v1149 = vmul.f32 %v1021, 0.2
  %v1150 = vmul.f32 %v1022, 0.2
  %v1151 = vmul.f32 %v1023, 0.2
  %v1152 = vmul.f32 %v1024, 0.2
  %v1153 = vmul.f32 %v1025, 0.2
  %v1154 = vmul.f32 %v1026, 0.2
  %v1155 = vmul.f32 %v1027, 0.2
  %v1156 = vmul.f32 %v1028, 0.2
  %v1157 = vmul.f32 %v1029, 0.2
  %v1158 = vmul.f32 %v1030, 0.2
  %v1159 = vmul.f32 %v1031, 0.2
  %v1160 = vmul.f32 %v1032, 0.2
  %v1161 = vmul.f32 %v1033, 0.2
  %v1162 = vmul.f32 %v1034, 0.2
  %v1163 = vmul.f32 %v1035, 0.2
  %v1164 = vmul.f32 %v1036, 0.2
  %v1165 = vmul.f32 %v1037, 0.2
  %v1166 = vmul.f32 %v1038, 0.2
  %v1167 = vmul.f32 %v1039, 0.2
  %v1168 = vmul.f32 %v1040, 0.2
  %v1169 = vmul.f32 %v1041, 0.2
  %v1170 = vmul.f32 %v1042, 0.2
  %v1171 = vmul.f32 %v1043, 0.2
  %v1172 = vmul.f32 %v1044, 0.2
  %v1173 = vmul.f32 %v1045, 0.2
  %v1174 = vmul.f32 %v1046, 0.2
  %v1175 = vmul.f32 %v1047, 0.2
  %v1176 = vmul.f32 %v1048, 0.2
  %v1177 = vmul.f32 %v1049, 0.2
  %v1178 = vmul.f32 %v1050, 0.2
  %v1179 = vsel %vm1051, %v987, %v1115
  %v1180 = vsel %vm1052, %v988, %v1116
  %v1181 = vsel %vm1053, %v989, %v1117
  %v1182 = vsel %vm1054, %v990, %v1118
  %v1183 = vsel %vm1055, %v991, %v1119
  %v1184 = vsel %vm1056, %v992, %v1120
  %v1185 = vsel %vm1057, %v993, %v1121
  %v1186 = vsel %vm1058, %v994, %v1122
  %v1187 = vsel %vm1059, %v995, %v1123
  %v1188 = vsel %vm1060, %v996, %v1124
  %v1189 = vsel %vm1061, %v997, %v1125
  %v1190 = vsel %vm1062, %v998, %v1126
  %v1191 = vsel %vm1063, %v999, %v1127
  %v1192 = vsel %vm1064, %v1000, %v1128
  %v1193 = vsel %vm1065, %v1001, %v1129
  %v1194 = vsel %vm1066, %v1002, %v1130
  %v1195 = vsel %vm1067, %v1003, %v1131
  %v1196 = vsel %vm1068, %v1004, %v1132
  %v1197 = vsel %vm1069, %v1005, %v1133
  %v1198 = vsel %vm1070, %v1006, %v1134
  %v1199 = vsel %vm1071, %v1007, %v1135
  %v1200 = vsel %vm1072, %v1008, %v1136
  %v1201 = vsel %vm1073, %v1009, %v1137
  %v1202 = vsel %vm1074, %v1010, %v1138
  %v1203 = vsel %vm1075, %v1011, %v1139
  %v1204 = vsel %vm1076, %v1012, %v1140
  %v1205 = vsel %vm1077, %v1013, %v1141
  %v1206 = vsel %vm1078, %v1014, %v1142
  %v1207 = vsel %vm1079, %v1015, %v1143
  %v1208 = vsel %vm1080, %v1016, %v1144
  %v1209 = vsel %vm1081, %v1017, %v1145
  %v1210 = vsel %vm1082, %v1018, %v1146
  %v1211 = vsel %vm1083, %v1019, %v1147
  %v1212 = vsel %vm1084, %v1020, %v1148
  %v1213 = vsel %vm1085, %v1021, %v1149
  %v1214 = vsel %vm1086, %v1022, %v1150
  %v1215 = vsel %vm1087, %v1023, %v1151
  %v1216 = vsel %vm1088, %v1024, %v1152
  %v1217 = vsel %vm1089, %v1025, %v1153
  %v1218 = vsel %vm1090, %v1026, %v1154
  %v1219 = vsel %vm1091, %v1027, %v1155
  %v1220 = vsel %vm1092, %v1028, %v1156
  %v1221 = vsel %vm1093, %v1029, %v1157
  %v1222 = vsel %vm1094, %v1030, %v1158
  %v1223 = vsel %vm1095, %v1031, %v1159
  %v1224 = vsel %vm1096, %v1032, %v1160
  %v1225 = vsel %vm1097, %v1033, %v1161
  %v1226 = vsel %vm1098, %v1034, %v1162
  %v1227 = vsel %vm1099, %v1035, %v1163
  %v1228 = vsel %vm1100, %v1036, %v1164
  %v1229 = vsel %vm1101, %v1037, %v1165
  %v1230 = vsel %vm1102, %v1038, %v1166
  %v1231 = vsel %vm1103, %v1039, %v1167
  %v1232 = vsel %vm1104, %v1040, %v1168
  %v1233 = vsel %vm1105, %v1041, %v1169
  %v1234 = vsel %vm1106, %v1042, %v1170
  %v1235 = vsel %vm1107, %v1043, %v1171
  %v1236 = vsel %vm1108, %v1044, %v1172
  %v1237 = vsel %vm1109, %v1045, %v1173
  %v1238 = vsel %vm1110, %v1046, %v1174
  %v1239 = vsel %vm1111, %v1047, %v1175
  %v1240 = vsel %vm1112, %v1048, %v1176
  %v1241 = vsel %vm1113, %v1049, %v1177
  %v1242 = vsel %vm1114, %v1050, %v1178
  %v1243 = vpack.c.bf16 %v1180, %v1179
  %v1244 = vpack.c.bf16 %v1182, %v1181
  %v1245 = vpack.c.bf16 %v1184, %v1183
  %v1246 = vpack.c.bf16 %v1186, %v1185
  %v1247 = vpack.c.bf16 %v1188, %v1187
  %v1248 = vpack.c.bf16 %v1190, %v1189
  %v1249 = vpack.c.bf16 %v1192, %v1191
  %v1250 = vpack.c.bf16 %v1194, %v1193
  %v1251 = vpack.c.bf16 %v1196, %v1195
  %v1252 = vpack.c.bf16 %v1198, %v1197
  %v1253 = vpack.c.bf16 %v1200, %v1199
  %v1254 = vpack.c.bf16 %v1202, %v1201
  %v1255 = vpack.c.bf16 %v1204, %v1203
  %v1256 = vpack.c.bf16 %v1206, %v1205
  %v1257 = vpack.c.bf16 %v1208, %v1207
  %v1258 = vpack.c.bf16 %v1210, %v1209
  %v1259 = vpack.c.bf16 %v1212, %v1211
  %v1260 = vpack.c.bf16 %v1214, %v1213
  %v1261 = vpack.c.bf16 %v1216, %v1215
  %v1262 = vpack.c.bf16 %v1218, %v1217
  %v1263 = vpack.c.bf16 %v1220, %v1219
  %v1264 = vpack.c.bf16 %v1222, %v1221
  %v1265 = vpack.c.bf16 %v1224, %v1223
  %v1266 = vpack.c.bf16 %v1226, %v1225
  %v1267 = vpack.c.bf16 %v1228, %v1227
  %v1268 = vpack.c.bf16 %v1230, %v1229
  %v1269 = vpack.c.bf16 %v1232, %v1231
  %v1270 = vpack.c.bf16 %v1234, %v1233
  %v1271 = vpack.c.bf16 %v1236, %v1235
  %v1272 = vpack.c.bf16 %v1238, %v1237
  %v1273 = vpack.c.bf16 %v1240, %v1239
  %v1274 = vpack.c.bf16 %v1242, %v1241
  %v1275 = vld [vmem:[#allocation2] sm:$0xff]
  %v1276 = vld [vmem:[#allocation2 + $0x8] sm:$0xff]
  %v1277 = vld [vmem:[%s1] sm:$0xff]
  %v1278 = vld [vmem:[%s1 + $0x8] sm:$0xff]
  %v1279 = vld [vmem:[%s1 + $0x10] sm:$0xff]
  %v1280 = vld [vmem:[%s1 + $0x18] sm:$0xff]
  %v1285 = vunpack.c.l.b16 %v1277
  %v1286 = vunpack.c.h.b16 %v1277
  %v1287 = vunpack.c.l.b16 %v1278
  %v1288 = vunpack.c.h.b16 %v1278
  %v1289 = vunpack.c.l.b16 %v1279
  %v1290 = vunpack.c.h.b16 %v1279
  %v1291 = vunpack.c.l.b16 %v1280
  %v1292 = vunpack.c.h.b16 %v1280
  %v1293 = vpack.c.b16 %v1289, %v1285
  %v1294 = vpack.c.b16 %v1290, %v1286
  %v1295 = vpack.c.b16 %v1291, %v1287
  %v1296 = vpack.c.b16 %v1292, %v1288
  %1301 = vmatprep.subr.bf16.mxu0 0
  %1302 = vmatpush1.bf16.msra.mxu0 %v1243
  %1303 = vmatprep.subr.bf16.mxu0 0
  %1304 = vmatpush1.bf16.msra.mxu0 %v1244
  %1305 = vmatprep.subr.bf16.mxu0 0
  %1306 = vmatpush1.bf16.msra.mxu0 %v1245
  %1307 = vmatprep.subr.bf16.mxu0 0
  %1308 = vmatpush1.bf16.msra.mxu0 %v1246
  %1309 = vmatprep.subr.bf16.mxu0 0
  %1310 = vmatpush1.bf16.msra.mxu0 %v1247
  %1311 = vmatprep.subr.bf16.mxu0 0
  %1312 = vmatpush1.bf16.msra.mxu0 %v1248
  %1313 = vmatprep.subr.bf16.mxu0 0
  %1314 = vmatpush1.bf16.msra.mxu0 %v1249
  %1315 = vmatprep.subr.bf16.mxu0 0
  %1316 = vmatpush1.bf16.msra.mxu0 %v1250
  %1317 = vmatprep.subr.bf16.mxu0 0
  %1318 = vmatpush1.bf16.msra.mxu0 %v1251
  %1319 = vmatprep.subr.bf16.mxu0 0
  %1320 = vmatpush1.bf16.msra.mxu0 %v1252
  %1321 = vmatprep.subr.bf16.mxu0 0
  %1322 = vmatpush1.bf16.msra.mxu0 %v1253
  %1323 = vmatprep.subr.bf16.mxu0 0
  %1324 = vmatpush1.bf16.msra.mxu0 %v1254
  %1325 = vmatprep.subr.bf16.mxu0 0
  %1326 = vmatpush1.bf16.msra.mxu0 %v1255
  %1327 = vmatprep.subr.bf16.mxu0 0
  %1328 = vmatpush1.bf16.msra.mxu0 %v1256
  %1329 = vmatprep.subr.bf16.mxu0 0
  %1330 = vmatpush1.bf16.msra.mxu0 %v1257
  %1331 = vmatprep.subr.bf16.mxu0 0
  %1332 = vmatpush1.bf16.msra.mxu0 %v1258
  %1333 = vmatprep.mubr.bf16.mxu0 %v1294
  %1334 = vmatmul.mubr.bf16.gmra.mrb[0].mxu0 %v1293
  %v1335 = vpop.f32.mrb[0].mxu0
  %v1336 = vadd.f32 0.0, %v1335
  %v1337 = vpop.f32.mrb[0].mxu0
  %v1338 = vpop.f32.mrb[0].mxu0
  %v1339 = vadd.f32 0.0, %v1338
  %v1340 = vpop.f32.mrb[0].mxu0
  %1341 = vdwg.mxu0
  %1342 = vmatprep.subr.bf16.mxu0 0
  %1343 = vmatpush1.bf16.msra.mxu0 %v1259
  %1344 = vmatprep.subr.bf16.mxu0 0
  %1345 = vmatpush1.bf16.msra.mxu0 %v1260
  %1346 = vmatprep.subr.bf16.mxu0 0
  %1347 = vmatpush1.bf16.msra.mxu0 %v1261
  %1348 = vmatprep.subr.bf16.mxu0 0
  %1349 = vmatpush1.bf16.msra.mxu0 %v1262
  %1350 = vmatprep.subr.bf16.mxu0 0
  %1351 = vmatpush1.bf16.msra.mxu0 %v1263
  %1352 = vmatprep.subr.bf16.mxu0 0
  %1353 = vmatpush1.bf16.msra.mxu0 %v1264
  %1354 = vmatprep.subr.bf16.mxu0 0
  %1355 = vmatpush1.bf16.msra.mxu0 %v1265
  %1356 = vmatprep.subr.bf16.mxu0 0
  %1357 = vmatpush1.bf16.msra.mxu0 %v1266
  %1358 = vmatprep.subr.bf16.mxu0 0
  %1359 = vmatpush1.bf16.msra.mxu0 %v1267
  %1360 = vmatprep.subr.bf16.mxu0 0
  %1361 = vmatpush1.bf16.msra.mxu0 %v1268
  %1362 = vmatprep.subr.bf16.mxu0 0
  %1363 = vmatpush1.bf16.msra.mxu0 %v1269
  %1364 = vmatprep.subr.bf16.mxu0 0
  %1365 = vmatpush1.bf16.msra.mxu0 %v1270
  %1366 = vmatprep.subr.bf16.mxu0 0
  %1367 = vmatpush1.bf16.msra.mxu0 %v1271
  %1368 = vmatprep.subr.bf16.mxu0 0
  %1369 = vmatpush1.bf16.msra.mxu0 %v1272
  %1370 = vmatprep.subr.bf16.mxu0 0
  %1371 = vmatpush1.bf16.msra.mxu0 %v1273
  %1372 = vmatprep.subr.bf16.mxu0 0
  %1373 = vmatpush1.bf16.msra.mxu0 %v1274
  %1374 = vmatprep.mubr.bf16.mxu0 %v1296
  %1375 = vmatmul.mubr.bf16.gmra.mrb[0].mxu0 %v1295
  %v1376 = vpop.f32.mrb[0].mxu0
  %v1377 = vadd.f32 %v1336, %v1376
  %v1378 = vpop.f32.mrb[0].mxu0
  %v1379 = vpop.f32.mrb[0].mxu0
  %v1380 = vadd.f32 %v1339, %v1379
  %v1381 = vpop.f32.mrb[0].mxu0
  %1382 = vdwg.mxu0
  %v1383 = vadd.f32 %v1275, %v1377
  %v1384 = vadd.f32 %v1276, %v1380
  %1385 = vst [vmem:[#allocation2] sm:$0xff] %v1383
  %1386 = vst [vmem:[#allocation2 + $0x8] sm:$0xff] %v1384
  // Predicated region
  $region22: #{nlayer_discriminator_forward.6} parent=0 // pred_check
    %p1387 = pneg %p21
  $region23: #{nlayer_discriminator_forward.6} parent=0 // pred_check_branch
    %1389 = sbr.rel (%p1387) target = $region25
  $region24: #{nlayer_discriminator_forward.6} parent=0 // pred_region
    %v1390 = vld [vmem:[#allocation2] sm:$0xff]
    %v1391 = vld [vmem:[#allocation2 + $0x8] sm:$0xff]
    %v1392 = vpack.c.bf16 %v1391, %v1390
    %v1394 = vunpack.c.l.b16 %v1392
    %v1395 = vunpack.c.h.b16 %v1392
    %v1396 = vpack.c.b16 %v1394, %v1394
    %v1397 = vpack.c.b16 %v1395, %v1395
    %1400 = vst [vmem:[%s4] sm:$0xf] %v1396
    %1401 = vst [vmem:[%s4 + $0x4] sm:$0xf] %v1397
    %v1402 = vlaneseq
    %v1403 = vand.u32 %v1402, 127
    %s1404 = smul.u32 0, 128
    %v1405 = vstv %s1404
    %v1406 = vadd.s32 %v1405, %v1403
    %vm1407 = vcmp.lt.s32.totalorder %v1406, 40
    %v1408 = vsel %vm1407, %v1390, 0.0
    %v1409 = vsel %vm1407, %v1391, 0.0
    %1410 = vadd.xlane.f32.xlu0 %v1408
    %v1411 = vpop.xlane.xlu0 %1410
    %1412 = vadd.xlane.f32.xlu0 %v1409
    %v1413 = vpop.xlane.xlu0 %1412
    %vm1414 = vcmask 7168
    %1415 = vst.msk [vmem:[%s5] sm:$0xff] %vm1414, %v1411
    %1416 = vst.msk [vmem:[%s5 + $0x8] sm:$0xff] %vm1414, %v1413
    %v1417 = vmul.f32 %v1408, %v1408
    %v1418 = vmul.f32 %v1409, %v1409
    %1419 = vadd.xlane.f32.xlu0 %v1417
    %v1420 = vpop.xlane.xlu0 %1419
    %1421 = vadd.xlane.f32.xlu0 %v1418
    %v1422 = vpop.xlane.xlu0 %1421
    %1423 = vst.msk [vmem:[%s6] sm:$0xff] %vm1414, %v1420
    %1424 = vst.msk [vmem:[%s6 + $0x8] sm:$0xff] %vm1414, %v1422
  $region25: #{nlayer_discriminator_forward.6} parent=0 // pred_fallthru
    _
  // Predicated region
  $region26: #{nlayer_discriminator_forward.6} parent=0 // pred_check
    _
  $region27: #{nlayer_discriminator_forward.6} parent=0 // pred_check_branch
    %1426 = sbr.rel (0) target = $region29
  $region28: #{nlayer_discriminator_forward.6} parent=0 // pred_region
    _
  $region29: #{nlayer_discriminator_forward.6} parent=0 // pred_fallthru
    _
  // Predicated region
  $region30: #{nlayer_discriminator_forward.6} parent=0 // pred_check
    _
  $region31: #{nlayer_discriminator_forward.6} parent=0 // pred_check_branch
    %1428 = sbr.rel (0) target = $region33
  $region32: #{nlayer_discriminator_forward.6} parent=0 // pred_region
    _
  $region33: #{nlayer_discriminator_forward.6} parent=0 // pred_fallthru
    _
  // Predicated region
  $region34: #{nlayer_discriminator_forward.6} parent=0 // pred_check
    _
  $region35: #{nlayer_discriminator_forward.6} parent=0 // pred_check_branch
    %1430 = sbr.rel (0) target = $region37
  $region36: #{nlayer_discriminator_forward.6} parent=0 // pred_region
    _
  $region37: #{nlayer_discriminator_forward.6} parent=0 // pred_fallthru
    _
  // Predicated region
  $region38: #{nlayer_discriminator_forward.6} parent=0 // pred_check
    _
  $region39: #{nlayer_discriminator_forward.6} parent=0 // pred_check_branch
    %1432 = sbr.rel (0) target = $region41
  $region40: #{nlayer_discriminator_forward.6} parent=0 // pred_region
    _
  $region41: #{nlayer_discriminator_forward.6} parent=0 // pred_fallthru
    _
  // Predicated region
  $region42: #{nlayer_discriminator_forward.6} parent=0 // pred_check
    _
  $region43: #{nlayer_discriminator_forward.6} parent=0 // pred_check_branch
    %1434 = sbr.rel (0) target = $region45
  $region44: #{nlayer_discriminator_forward.6} parent=0 // pred_region
    _
  $region45: #{nlayer_discriminator_forward.6} parent=0 // pred_fallthru
    _
  // Predicated region
  $region46: #{nlayer_discriminator_forward.6} parent=0 // pred_check
    _
  $region47: #{nlayer_discriminator_forward.6} parent=0 // pred_check_branch
    %1436 = sbr.rel (0) target = $region49
  $region48: #{nlayer_discriminator_forward.6} parent=0 // pred_region
    _
  $region49: #{nlayer_discriminator_forward.6} parent=0 // pred_fallthru
    _

// kernel: nlayer_discriminator_forward.7
$region0: #{nlayer_discriminator_forward.7}
  #allocation0 [shape = 'u32[]', space=smem, size = 0x4, offset = 0x4, fixed_abs, tag = 'smem constant byte address 0x4 - core index']
  #allocation1 [shape = 'u32[144,128]{1,0:T(1,128)}', space=vmem, size = 0x12000, scoped, tag = 'internal scratch']
  #allocation2 [shape = 'f32[8,128]{1,0:T(8,128)}', space=vmem, size = 0x1000, scoped, tag = 'scratch operand']
  %s0 = inlined_call_operand.vmem [shape: bf16[256,128], index: 0, kind: input, shape index: {}]
  %s1 = inlined_call_operand.vmem [shape: bf16[8,256], index: 1, kind: input, shape index: {}]
  %s2 = inlined_call_operand.vmem [shape: f32[256,1], index: 2, kind: input, shape index: {}]
  %s3 = inlined_call_operand.vmem [shape: f32[256,1], index: 3, kind: input, shape index: {}]
  %s4 = inlined_call_operand.vmem [shape: f32[8,128], index: 4, kind: output, shape index: {}]
  %s5 = sld [smem:[#allocation0]]
  $region34: #{nlayer_discriminator_forward.7} parent=0
    _
  %s7 = ssub.s32 1, %s5
  %s8 = scalar_select 0, %s7, %s5
  // Predicated region
  $region2: #{nlayer_discriminator_forward.7} parent=0 // pred_check
    _
  $region3: #{nlayer_discriminator_forward.7} parent=0 // pred_check_branch
    %10 = sbr.rel (0) target = $region5
  $region4: #{nlayer_discriminator_forward.7} parent=0 // pred_region
    _
  $region5: #{nlayer_discriminator_forward.7} parent=0 // pred_fallthru
    _
  // Predicated region
  $region6: #{nlayer_discriminator_forward.7} parent=0 // pred_check
    _
  $region7: #{nlayer_discriminator_forward.7} parent=0 // pred_check_branch
    %12 = sbr.rel (0) target = $region9
  $region8: #{nlayer_discriminator_forward.7} parent=0 // pred_region
    _
  $region9: #{nlayer_discriminator_forward.7} parent=0 // pred_fallthru
    _
  // Predicated region
  $region10: #{nlayer_discriminator_forward.7} parent=0 // pred_check
    _
  $region11: #{nlayer_discriminator_forward.7} parent=0 // pred_check_branch
    %14 = sbr.rel (0) target = $region13
  $region12: #{nlayer_discriminator_forward.7} parent=0 // pred_region
    _
  $region13: #{nlayer_discriminator_forward.7} parent=0 // pred_fallthru
    _
  // Predicated region
  $region14: #{nlayer_discriminator_forward.7} parent=0 // pred_check
    _
  $region15: #{nlayer_discriminator_forward.7} parent=0 // pred_check_branch
    %16 = sbr.rel (0) target = $region17
  $region16: #{nlayer_discriminator_forward.7} parent=0 // pred_region
    _
  $region17: #{nlayer_discriminator_forward.7} parent=0 // pred_fallthru
    _
  %p18 = scmp.eq.s32.totalorder 0, 0
  // Predicated region
  $region18: #{nlayer_discriminator_forward.7} parent=0 // pred_check
    %p19 = pneg %p18
  $region19: #{nlayer_discriminator_forward.7} parent=0 // pred_check_branch
    %21 = sbr.rel (%p19) target = $region21
  $region20: #{nlayer_discriminator_forward.7} parent=0 // pred_region
    %22 = vst [vmem:[#allocation2] sm:$0xff] 0.0
  $region21: #{nlayer_discriminator_forward.7} parent=0 // pred_fallthru
    _
  %v23 = vld [vmem:[%s0] sm:$0xf]
  %v24 = vld [vmem:[%s0 + $0x4] sm:$0xf]
  %v25 = vld [vmem:[%s0 + $0x8] sm:$0xf]
  %v26 = vld [vmem:[%s0 + $0xc] sm:$0xf]
  %v27 = vld [vmem:[%s0 + $0x10] sm:$0xf]
  %v28 = vld [vmem:[%s0 + $0x14] sm:$0xf]
  %v29 = vld [vmem:[%s0 + $0x18] sm:$0xf]
  %v30 = vld [vmem:[%s0 + $0x1c] sm:$0xf]
  %v31 = vld [vmem:[%s0 + $0x20] sm:$0xf]
  %v32 = vld [vmem:[%s0 + $0x24] sm:$0xf]
  %v33 = vld [vmem:[%s0 + $0x28] sm:$0xf]
  %v34 = vld [vmem:[%s0 + $0x2c] sm:$0xf]
  %v35 = vld [vmem:[%s0 + $0x30] sm:$0xf]
  %v36 = vld [vmem:[%s0 + $0x34] sm:$0xf]
  %v37 = vld [vmem:[%s0 + $0x38] sm:$0xf]
  %v38 = vld [vmem:[%s0 + $0x3c] sm:$0xf]
  %v39 = vld [vmem:[%s0 + $0x40] sm:$0xf]
  %v40 = vld [vmem:[%s0 + $0x44] sm:$0xf]
  %v41 = vld [vmem:[%s0 + $0x48] sm:$0xf]
  %v42 = vld [vmem:[%s0 + $0x4c] sm:$0xf]
  %v43 = vld [vmem:[%s0 + $0x50] sm:$0xf]
  %v44 = vld [vmem:[%s0 + $0x54] sm:$0xf]
  %v45 = vld [vmem:[%s0 + $0x58] sm:$0xf]
  %v46 = vld [vmem:[%s0 + $0x5c] sm:$0xf]
  %v47 = vld [vmem:[%s0 + $0x60] sm:$0xf]
  %v48 = vld [vmem:[%s0 + $0x64] sm:$0xf]
  %v49 = vld [vmem:[%s0 + $0x68] sm:$0xf]
  %v50 = vld [vmem:[%s0 + $0x6c] sm:$0xf]
  %v51 = vld [vmem:[%s0 + $0x70] sm:$0xf]
  %v52 = vld [vmem:[%s0 + $0x74] sm:$0xf]
  %v53 = vld [vmem:[%s0 + $0x78] sm:$0xf]
  %v54 = vld [vmem:[%s0 + $0x7c] sm:$0xf]
  %v55 = vunpack.c.l.bf16 %v23
  %v56 = vunpack.c.l.bf16 %v24
  %v57 = vunpack.c.l.bf16 %v25
  %v58 = vunpack.c.l.bf16 %v26
  %v59 = vunpack.c.l.bf16 %v27
  %v60 = vunpack.c.l.bf16 %v28
  %v61 = vunpack.c.l.bf16 %v29
  %v62 = vunpack.c.l.bf16 %v30
  %v63 = vunpack.c.l.bf16 %v31
  %v64 = vunpack.c.l.bf16 %v32
  %v65 = vunpack.c.l.bf16 %v33
  %v66 = vunpack.c.l.bf16 %v34
  %v67 = vunpack.c.l.bf16 %v35
  %v68 = vunpack.c.l.bf16 %v36
  %v69 = vunpack.c.l.bf16 %v37
  %v70 = vunpack.c.l.bf16 %v38
  %v71 = vunpack.c.l.bf16 %v39
  %v72 = vunpack.c.l.bf16 %v40
  %v73 = vunpack.c.l.bf16 %v41
  %v74 = vunpack.c.l.bf16 %v42
  %v75 = vunpack.c.l.bf16 %v43
  %v76 = vunpack.c.l.bf16 %v44
  %v77 = vunpack.c.l.bf16 %v45
  %v78 = vunpack.c.l.bf16 %v46
  %v79 = vunpack.c.l.bf16 %v47
  %v80 = vunpack.c.l.bf16 %v48
  %v81 = vunpack.c.l.bf16 %v49
  %v82 = vunpack.c.l.bf16 %v50
  %v83 = vunpack.c.l.bf16 %v51
  %v84 = vunpack.c.l.bf16 %v52
  %v85 = vunpack.c.l.bf16 %v53
  %v86 = vunpack.c.l.bf16 %v54
  %v87 = vld [vmem:[%s2] sm:$0xff]
  %v88 = vld [vmem:[%s2 + $0x8] sm:$0xff]
  %v89 = vld [vmem:[%s2 + $0x10] sm:$0xff]
  %v90 = vld [vmem:[%s2 + $0x18] sm:$0xff]
  %v91 = vld [vmem:[%s2 + $0x20] sm:$0xff]
  %v92 = vld [vmem:[%s2 + $0x28] sm:$0xff]
  %v93 = vld [vmem:[%s2 + $0x30] sm:$0xff]
  %v94 = vld [vmem:[%s2 + $0x38] sm:$0xff]
  %v95 = vld [vmem:[%s2 + $0x40] sm:$0xff]
  %v96 = vld [vmem:[%s2 + $0x48] sm:$0xff]
  %v97 = vld [vmem:[%s2 + $0x50] sm:$0xff]
  %v98 = vld [vmem:[%s2 + $0x58] sm:$0xff]
  %v99 = vld [vmem:[%s2 + $0x60] sm:$0xff]
  %v100 = vld [vmem:[%s2 + $0x68] sm:$0xff]
  %v101 = vld [vmem:[%s2 + $0x70] sm:$0xff]
  %v102 = vld [vmem:[%s2 + $0x78] sm:$0xff]
  %v103 = vld [vmem:[%s2 + $0x80] sm:$0xff]
  %v104 = vld [vmem:[%s2 + $0x88] sm:$0xff]
  %v105 = vld [vmem:[%s2 + $0x90] sm:$0xff]
  %v106 = vld [vmem:[%s2 + $0x98] sm:$0xff]
  %v107 = vld [vmem:[%s2 + $0xa0] sm:$0xff]
  %v108 = vld [vmem:[%s2 + $0xa8] sm:$0xff]
  %v109 = vld [vmem:[%s2 + $0xb0] sm:$0xff]
  %v110 = vld [vmem:[%s2 + $0xb8] sm:$0xff]
  %v111 = vld [vmem:[%s2 + $0xc0] sm:$0xff]
  %v112 = vld [vmem:[%s2 + $0xc8] sm:$0xff]
  %v113 = vld [vmem:[%s2 + $0xd0] sm:$0xff]
  %v114 = vld [vmem:[%s2 + $0xd8] sm:$0xff]
  %v115 = vld [vmem:[%s2 + $0xe0] sm:$0xff]
  %v116 = vld [vmem:[%s2 + $0xe8] sm:$0xff]
  %v117 = vld [vmem:[%s2 + $0xf0] sm:$0xff]
  %v118 = vld [vmem:[%s2 + $0xf8] sm:$0xff]
  %120 = vset.pattern.permute.xlu0 0
  %121 = vperm.xlu0 %120, %v87
  %v122 = vpop.permute.xlu0 %121
  %125 = vset.pattern.permute.xlu0 0
  %126 = vperm.xlu0 %125, %v88
  %v127 = vpop.permute.xlu0 %126
  %130 = vset.pattern.permute.xlu0 0
  %131 = vperm.xlu0 %130, %v89
  %v132 = vpop.permute.xlu0 %131
  %135 = vset.pattern.permute.xlu0 0
  %136 = vperm.xlu0 %135, %v90
  %v137 = vpop.permute.xlu0 %136
  %140 = vset.pattern.permute.xlu0 0
  %141 = vperm.xlu0 %140, %v91
  %v142 = vpop.permute.xlu0 %141
  %145 = vset.pattern.permute.xlu0 0
  %146 = vperm.xlu0 %145, %v92
  %v147 = vpop.permute.xlu0 %146
  %150 = vset.pattern.permute.xlu0 0
  %151 = vperm.xlu0 %150, %v93
  %v152 = vpop.permute.xlu0 %151
  %155 = vset.pattern.permute.xlu0 0
  %156 = vperm.xlu0 %155, %v94
  %v157 = vpop.permute.xlu0 %156
  %160 = vset.pattern.permute.xlu0 0
  %161 = vperm.xlu0 %160, %v95
  %v162 = vpop.permute.xlu0 %161
  %165 = vset.pattern.permute.xlu0 0
  %166 = vperm.xlu0 %165, %v96
  %v167 = vpop.permute.xlu0 %166
  %170 = vset.pattern.permute.xlu0 0
  %171 = vperm.xlu0 %170, %v97
  %v172 = vpop.permute.xlu0 %171
  %175 = vset.pattern.permute.xlu0 0
  %176 = vperm.xlu0 %175, %v98
  %v177 = vpop.permute.xlu0 %176
  %180 = vset.pattern.permute.xlu0 0
  %181 = vperm.xlu0 %180, %v99
  %v182 = vpop.permute.xlu0 %181
  %185 = vset.pattern.permute.xlu0 0
  %186 = vperm.xlu0 %185, %v100
  %v187 = vpop.permute.xlu0 %186
  %190 = vset.pattern.permute.xlu0 0
  %191 = vperm.xlu0 %190, %v101
  %v192 = vpop.permute.xlu0 %191
  %195 = vset.pattern.permute.xlu0 0
  %196 = vperm.xlu0 %195, %v102
  %v197 = vpop.permute.xlu0 %196
  %200 = vset.pattern.permute.xlu0 0
  %201 = vperm.xlu0 %200, %v103
  %v202 = vpop.permute.xlu0 %201
  %205 = vset.pattern.permute.xlu0 0
  %206 = vperm.xlu0 %205, %v104
  %v207 = vpop.permute.xlu0 %206
  %210 = vset.pattern.permute.xlu0 0
  %211 = vperm.xlu0 %210, %v105
  %v212 = vpop.permute.xlu0 %211
  %215 = vset.pattern.permute.xlu0 0
  %216 = vperm.xlu0 %215, %v106
  %v217 = vpop.permute.xlu0 %216
  %220 = vset.pattern.permute.xlu0 0
  %221 = vperm.xlu0 %220, %v107
  %v222 = vpop.permute.xlu0 %221
  %225 = vset.pattern.permute.xlu0 0
  %226 = vperm.xlu0 %225, %v108
  %v227 = vpop.permute.xlu0 %226
  %230 = vset.pattern.permute.xlu0 0
  %231 = vperm.xlu0 %230, %v109
  %v232 = vpop.permute.xlu0 %231
  %235 = vset.pattern.permute.xlu0 0
  %236 = vperm.xlu0 %235, %v110
  %v237 = vpop.permute.xlu0 %236
  %240 = vset.pattern.permute.xlu0 0
  %241 = vperm.xlu0 %240, %v111
  %v242 = vpop.permute.xlu0 %241
  %245 = vset.pattern.permute.xlu0 0
  %246 = vperm.xlu0 %245, %v112
  %v247 = vpop.permute.xlu0 %246
  %250 = vset.pattern.permute.xlu0 0
  %251 = vperm.xlu0 %250, %v113
  %v252 = vpop.permute.xlu0 %251
  %255 = vset.pattern.permute.xlu0 0
  %256 = vperm.xlu0 %255, %v114
  %v257 = vpop.permute.xlu0 %256
  %260 = vset.pattern.permute.xlu0 0
  %261 = vperm.xlu0 %260, %v115
  %v262 = vpop.permute.xlu0 %261
  %265 = vset.pattern.permute.xlu0 0
  %266 = vperm.xlu0 %265, %v116
  %v267 = vpop.permute.xlu0 %266
  %270 = vset.pattern.permute.xlu0 0
  %271 = vperm.xlu0 %270, %v117
  %v272 = vpop.permute.xlu0 %271
  %275 = vset.pattern.permute.xlu0 0
  %276 = vperm.xlu0 %275, %v118
  %v277 = vpop.permute.xlu0 %276
  %v279 = vmul.f32 %v55, %v122
  %v280 = vmul.f32 %v56, %v127
  %v281 = vmul.f32 %v57, %v132
  %v282 = vmul.f32 %v58, %v137
  %v283 = vmul.f32 %v59, %v142
  %v284 = vmul.f32 %v60, %v147
  %v285 = vmul.f32 %v61, %v152
  %v286 = vmul.f32 %v62, %v157
  %v287 = vmul.f32 %v63, %v162
  %v288 = vmul.f32 %v64, %v167
  %v289 = vmul.f32 %v65, %v172
  %v290 = vmul.f32 %v66, %v177
  %v291 = vmul.f32 %v67, %v182
  %v292 = vmul.f32 %v68, %v187
  %v293 = vmul.f32 %v69, %v192
  %v294 = vmul.f32 %v70, %v197
  %v295 = vmul.f32 %v71, %v202
  %v296 = vmul.f32 %v72, %v207
  %v297 = vmul.f32 %v73, %v212
  %v298 = vmul.f32 %v74, %v217
  %v299 = vmul.f32 %v75, %v222
  %v300 = vmul.f32 %v76, %v227
  %v301 = vmul.f32 %v77, %v232
  %v302 = vmul.f32 %v78, %v237
  %v303 = vmul.f32 %v79, %v242
  %v304 = vmul.f32 %v80, %v247
  %v305 = vmul.f32 %v81, %v252
  %v306 = vmul.f32 %v82, %v257
  %v307 = vmul.f32 %v83, %v262
  %v308 = vmul.f32 %v84, %v267
  %v309 = vmul.f32 %v85, %v272
  %v310 = vmul.f32 %v86, %v277
  %v311 = vld [vmem:[%s3] sm:$0xff]
  %v312 = vld [vmem:[%s3 + $0x8] sm:$0xff]
  %v313 = vld [vmem:[%s3 + $0x10] sm:$0xff]
  %v314 = vld [vmem:[%s3 + $0x18] sm:$0xff]
  %v315 = vld [vmem:[%s3 + $0x20] sm:$0xff]
  %v316 = vld [vmem:[%s3 + $0x28] sm:$0xff]
  %v317 = vld [vmem:[%s3 + $0x30] sm:$0xff]
  %v318 = vld [vmem:[%s3 + $0x38] sm:$0xff]
  %v319 = vld [vmem:[%s3 + $0x40] sm:$0xff]
  %v320 = vld [vmem:[%s3 + $0x48] sm:$0xff]
  %v321 = vld [vmem:[%s3 + $0x50] sm:$0xff]
  %v322 = vld [vmem:[%s3 + $0x58] sm:$0xff]
  %v323 = vld [vmem:[%s3 + $0x60] sm:$0xff]
  %v324 = vld [vmem:[%s3 + $0x68] sm:$0xff]
  %v325 = vld [vmem:[%s3 + $0x70] sm:$0xff]
  %v326 = vld [vmem:[%s3 + $0x78] sm:$0xff]
  %v327 = vld [vmem:[%s3 + $0x80] sm:$0xff]
  %v328 = vld [vmem:[%s3 + $0x88] sm:$0xff]
  %v329 = vld [vmem:[%s3 + $0x90] sm:$0xff]
  %v330 = vld [vmem:[%s3 + $0x98] sm:$0xff]
  %v331 = vld [vmem:[%s3 + $0xa0] sm:$0xff]
  %v332 = vld [vmem:[%s3 + $0xa8] sm:$0xff]
  %v333 = vld [vmem:[%s3 + $0xb0] sm:$0xff]
  %v334 = vld [vmem:[%s3 + $0xb8] sm:$0xff]
  %v335 = vld [vmem:[%s3 + $0xc0] sm:$0xff]
  %v336 = vld [vmem:[%s3 + $0xc8] sm:$0xff]
  %v337 = vld [vmem:[%s3 + $0xd0] sm:$0xff]
  %v338 = vld [vmem:[%s3 + $0xd8] sm:$0xff]
  %v339 = vld [vmem:[%s3 + $0xe0] sm:$0xff]
  %v340 = vld [vmem:[%s3 + $0xe8] sm:$0xff]
  %v341 = vld [vmem:[%s3 + $0xf0] sm:$0xff]
  %v342 = vld [vmem:[%s3 + $0xf8] sm:$0xff]
  %344 = vset.pattern.permute.xlu0 0
  %345 = vperm.xlu0 %344, %v311
  %v346 = vpop.permute.xlu0 %345
  %349 = vset.pattern.permute.xlu0 0
  %350 = vperm.xlu0 %349, %v312
  %v351 = vpop.permute.xlu0 %350
  %354 = vset.pattern.permute.xlu0 0
  %355 = vperm.xlu0 %354, %v313
  %v356 = vpop.permute.xlu0 %355
  %359 = vset.pattern.permute.xlu0 0
  %360 = vperm.xlu0 %359, %v314
  %v361 = vpop.permute.xlu0 %360
  %364 = vset.pattern.permute.xlu0 0
  %365 = vperm.xlu0 %364, %v315
  %v366 = vpop.permute.xlu0 %365
  %369 = vset.pattern.permute.xlu0 0
  %370 = vperm.xlu0 %369, %v316
  %v371 = vpop.permute.xlu0 %370
  %374 = vset.pattern.permute.xlu0 0
  %375 = vperm.xlu0 %374, %v317
  %v376 = vpop.permute.xlu0 %375
  %379 = vset.pattern.permute.xlu0 0
  %380 = vperm.xlu0 %379, %v318
  %v381 = vpop.permute.xlu0 %380
  %384 = vset.pattern.permute.xlu0 0
  %385 = vperm.xlu0 %384, %v319
  %v386 = vpop.permute.xlu0 %385
  %389 = vset.pattern.permute.xlu0 0
  %390 = vperm.xlu0 %389, %v320
  %v391 = vpop.permute.xlu0 %390
  %394 = vset.pattern.permute.xlu0 0
  %395 = vperm.xlu0 %394, %v321
  %v396 = vpop.permute.xlu0 %395
  %399 = vset.pattern.permute.xlu0 0
  %400 = vperm.xlu0 %399, %v322
  %v401 = vpop.permute.xlu0 %400
  %404 = vset.pattern.permute.xlu0 0
  %405 = vperm.xlu0 %404, %v323
  %v406 = vpop.permute.xlu0 %405
  %409 = vset.pattern.permute.xlu0 0
  %410 = vperm.xlu0 %409, %v324
  %v411 = vpop.permute.xlu0 %410
  %414 = vset.pattern.permute.xlu0 0
  %415 = vperm.xlu0 %414, %v325
  %v416 = vpop.permute.xlu0 %415
  %419 = vset.pattern.permute.xlu0 0
  %420 = vperm.xlu0 %419, %v326
  %v421 = vpop.permute.xlu0 %420
  %424 = vset.pattern.permute.xlu0 0
  %425 = vperm.xlu0 %424, %v327
  %v426 = vpop.permute.xlu0 %425
  %429 = vset.pattern.permute.xlu0 0
  %430 = vperm.xlu0 %429, %v328
  %v431 = vpop.permute.xlu0 %430
  %434 = vset.pattern.permute.xlu0 0
  %435 = vperm.xlu0 %434, %v329
  %v436 = vpop.permute.xlu0 %435
  %439 = vset.pattern.permute.xlu0 0
  %440 = vperm.xlu0 %439, %v330
  %v441 = vpop.permute.xlu0 %440
  %444 = vset.pattern.permute.xlu0 0
  %445 = vperm.xlu0 %444, %v331
  %v446 = vpop.permute.xlu0 %445
  %449 = vset.pattern.permute.xlu0 0
  %450 = vperm.xlu0 %449, %v332
  %v451 = vpop.permute.xlu0 %450
  %454 = vset.pattern.permute.xlu0 0
  %455 = vperm.xlu0 %454, %v333
  %v456 = vpop.permute.xlu0 %455
  %459 = vset.pattern.permute.xlu0 0
  %460 = vperm.xlu0 %459, %v334
  %v461 = vpop.permute.xlu0 %460
  %464 = vset.pattern.permute.xlu0 0
  %465 = vperm.xlu0 %464, %v335
  %v466 = vpop.permute.xlu0 %465
  %469 = vset.pattern.permute.xlu0 0
  %470 = vperm.xlu0 %469, %v336
  %v471 = vpop.permute.xlu0 %470
  %474 = vset.pattern.permute.xlu0 0
  %475 = vperm.xlu0 %474, %v337
  %v476 = vpop.permute.xlu0 %475
  %479 = vset.pattern.permute.xlu0 0
  %480 = vperm.xlu0 %479, %v338
  %v481 = vpop.permute.xlu0 %480
  %484 = vset.pattern.permute.xlu0 0
  %485 = vperm.xlu0 %484, %v339
  %v486 = vpop.permute.xlu0 %485
  %489 = vset.pattern.permute.xlu0 0
  %490 = vperm.xlu0 %489, %v340
  %v491 = vpop.permute.xlu0 %490
  %494 = vset.pattern.permute.xlu0 0
  %495 = vperm.xlu0 %494, %v341
  %v496 = vpop.permute.xlu0 %495
  %499 = vset.pattern.permute.xlu0 0
  %500 = vperm.xlu0 %499, %v342
  %v501 = vpop.permute.xlu0 %500
  %v503 = vadd.f32 %v279, %v346
  %v504 = vadd.f32 %v280, %v351
  %v505 = vadd.f32 %v281, %v356
  %v506 = vadd.f32 %v282, %v361
  %v507 = vadd.f32 %v283, %v366
  %v508 = vadd.f32 %v284, %v371
  %v509 = vadd.f32 %v285, %v376
  %v510 = vadd.f32 %v286, %v381
  %v511 = vadd.f32 %v287, %v386
  %v512 = vadd.f32 %v288, %v391
  %v513 = vadd.f32 %v289, %v396
  %v514 = vadd.f32 %v290, %v401
  %v515 = vadd.f32 %v291, %v406
  %v516 = vadd.f32 %v292, %v411
  %v517 = vadd.f32 %v293, %v416
  %v518 = vadd.f32 %v294, %v421
  %v519 = vadd.f32 %v295, %v426
  %v520 = vadd.f32 %v296, %v431
  %v521 = vadd.f32 %v297, %v436
  %v522 = vadd.f32 %v298, %v441
  %v523 = vadd.f32 %v299, %v446
  %v524 = vadd.f32 %v300, %v451
  %v525 = vadd.f32 %v301, %v456
  %v526 = vadd.f32 %v302, %v461
  %v527 = vadd.f32 %v303, %v466
  %v528 = vadd.f32 %v304, %v471
  %v529 = vadd.f32 %v305, %v476
  %v530 = vadd.f32 %v306, %v481
  %v531 = vadd.f32 %v307, %v486
  %v532 = vadd.f32 %v308, %v491
  %v533 = vadd.f32 %v309, %v496
  %v534 = vadd.f32 %v310, %v501
  %vm535 = vcmp.ge.f32.partialorder %v503, 0.0
  %vm536 = vcmp.ge.f32.partialorder %v504, 0.0
  %vm537 = vcmp.ge.f32.partialorder %v505, 0.0
  %vm538 = vcmp.ge.f32.partialorder %v506, 0.0
  %vm539 = vcmp.ge.f32.partialorder %v507, 0.0
  %vm540 = vcmp.ge.f32.partialorder %v508, 0.0
  %vm541 = vcmp.ge.f32.partialorder %v509, 0.0
  %vm542 = vcmp.ge.f32.partialorder %v510, 0.0
  %vm543 = vcmp.ge.f32.partialorder %v511, 0.0
  %vm544 = vcmp.ge.f32.partialorder %v512, 0.0
  %vm545 = vcmp.ge.f32.partialorder %v513, 0.0
  %vm546 = vcmp.ge.f32.partialorder %v514, 0.0
  %vm547 = vcmp.ge.f32.partialorder %v515, 0.0
  %vm548 = vcmp.ge.f32.partialorder %v516, 0.0
  %vm549 = vcmp.ge.f32.partialorder %v517, 0.0
  %vm550 = vcmp.ge.f32.partialorder %v518, 0.0
  %vm551 = vcmp.ge.f32.partialorder %v519, 0.0
  %vm552 = vcmp.ge.f32.partialorder %v520, 0.0
  %vm553 = vcmp.ge.f32.partialorder %v521, 0.0
  %vm554 = vcmp.ge.f32.partialorder %v522, 0.0
  %vm555 = vcmp.ge.f32.partialorder %v523, 0.0
  %vm556 = vcmp.ge.f32.partialorder %v524, 0.0
  %vm557 = vcmp.ge.f32.partialorder %v525, 0.0
  %vm558 = vcmp.ge.f32.partialorder %v526, 0.0
  %vm559 = vcmp.ge.f32.partialorder %v527, 0.0
  %vm560 = vcmp.ge.f32.partialorder %v528, 0.0
  %vm561 = vcmp.ge.f32.partialorder %v529, 0.0
  %vm562 = vcmp.ge.f32.partialorder %v530, 0.0
  %vm563 = vcmp.ge.f32.partialorder %v531, 0.0
  %vm564 = vcmp.ge.f32.partialorder %v532, 0.0
  %vm565 = vcmp.ge.f32.partialorder %v533, 0.0
  %vm566 = vcmp.ge.f32.partialorder %v534, 0.0
  %v567 = vmul.f32 %v503, 0.2
  %v568 = vmul.f32 %v504, 0.2
  %v569 = vmul.f32 %v505, 0.2
  %v570 = vmul.f32 %v506, 0.2
  %v571 = vmul.f32 %v507, 0.2
  %v572 = vmul.f32 %v508, 0.2
  %v573 = vmul.f32 %v509, 0.2
  %v574 = vmul.f32 %v510, 0.2
  %v575 = vmul.f32 %v511, 0.2
  %v576 = vmul.f32 %v512, 0.2
  %v577 = vmul.f32 %v513, 0.2
  %v578 = vmul.f32 %v514, 0.2
  %v579 = vmul.f32 %v515, 0.2
  %v580 = vmul.f32 %v516, 0.2
  %v581 = vmul.f32 %v517, 0.2
  %v582 = vmul.f32 %v518, 0.2
  %v583 = vmul.f32 %v519, 0.2
  %v584 = vmul.f32 %v520, 0.2
  %v585 = vmul.f32 %v521, 0.2
  %v586 = vmul.f32 %v522, 0.2
  %v587 = vmul.f32 %v523, 0.2
  %v588 = vmul.f32 %v524, 0.2
  %v589 = vmul.f32 %v525, 0.2
  %v590 = vmul.f32 %v526, 0.2
  %v591 = vmul.f32 %v527, 0.2
  %v592 = vmul.f32 %v528, 0.2
  %v593 = vmul.f32 %v529, 0.2
  %v594 = vmul.f32 %v530, 0.2
  %v595 = vmul.f32 %v531, 0.2
  %v596 = vmul.f32 %v532, 0.2
  %v597 = vmul.f32 %v533, 0.2
  %v598 = vmul.f32 %v534, 0.2
  %v599 = vsel %vm535, %v503, %v567
  %v600 = vsel %vm536, %v504, %v568
  %v601 = vsel %vm537, %v505, %v569
  %v602 = vsel %vm538, %v506, %v570
  %v603 = vsel %vm539, %v507, %v571
  %v604 = vsel %vm540, %v508, %v572
  %v605 = vsel %vm541, %v509, %v573
  %v606 = vsel %vm542, %v510, %v574
  %v607 = vsel %vm543, %v511, %v575
  %v608 = vsel %vm544, %v512, %v576
  %v609 = vsel %vm545, %v513, %v577
  %v610 = vsel %vm546, %v514, %v578
  %v611 = vsel %vm547, %v515, %v579
  %v612 = vsel %vm548, %v516, %v580
  %v613 = vsel %vm549, %v517, %v581
  %v614 = vsel %vm550, %v518, %v582
  %v615 = vsel %vm551, %v519, %v583
  %v616 = vsel %vm552, %v520, %v584
  %v617 = vsel %vm553, %v521, %v585
  %v618 = vsel %vm554, %v522, %v586
  %v619 = vsel %vm555, %v523, %v587
  %v620 = vsel %vm556, %v524, %v588
  %v621 = vsel %vm557, %v525, %v589
  %v622 = vsel %vm558, %v526, %v590
  %v623 = vsel %vm559, %v527, %v591
  %v624 = vsel %vm560, %v528, %v592
  %v625 = vsel %vm561, %v529, %v593
  %v626 = vsel %vm562, %v530, %v594
  %v627 = vsel %vm563, %v531, %v595
  %v628 = vsel %vm564, %v532, %v596
  %v629 = vsel %vm565, %v533, %v597
  %v630 = vsel %vm566, %v534, %v598
  %v631 = vpack.c.bf16 %v600, %v599
  %v632 = vpack.c.bf16 %v602, %v601
  %v633 = vpack.c.bf16 %v604, %v603
  %v634 = vpack.c.bf16 %v606, %v605
  %v635 = vpack.c.bf16 %v608, %v607
  %v636 = vpack.c.bf16 %v610, %v609
  %v637 = vpack.c.bf16 %v612, %v611
  %v638 = vpack.c.bf16 %v614, %v613
  %v639 = vpack.c.bf16 %v616, %v615
  %v640 = vpack.c.bf16 %v618, %v617
  %v641 = vpack.c.bf16 %v620, %v619
  %v642 = vpack.c.bf16 %v622, %v621
  %v643 = vpack.c.bf16 %v624, %v623
  %v644 = vpack.c.bf16 %v626, %v625
  %v645 = vpack.c.bf16 %v628, %v627
  %v646 = vpack.c.bf16 %v630, %v629
  %v647 = vld [vmem:[#allocation2] sm:$0xff]
  %v648 = vld [vmem:[%s1] sm:$0xff]
  %v650 = vunpack.c.l.b16 %v648
  %v651 = vunpack.c.h.b16 %v648
  %v652 = vpack.c.b16 %v650, %v650
  %v653 = vpack.c.b16 %v651, %v651
  %656 = vmatprep.subr.bf16.mxu0 0
  %657 = vmatpush1.bf16.msra.mxu0 %v631
  %658 = vmatprep.subr.bf16.mxu0 0
  %659 = vmatpush1.bf16.msra.mxu0 %v632
  %660 = vmatprep.subr.bf16.mxu0 0
  %661 = vmatpush1.bf16.msra.mxu0 %v633
  %662 = vmatprep.subr.bf16.mxu0 0
  %663 = vmatpush1.bf16.msra.mxu0 %v634
  %664 = vmatprep.subr.bf16.mxu0 0
  %665 = vmatpush1.bf16.msra.mxu0 %v635
  %666 = vmatprep.subr.bf16.mxu0 0
  %667 = vmatpush1.bf16.msra.mxu0 %v636
  %668 = vmatprep.subr.bf16.mxu0 0
  %669 = vmatpush1.bf16.msra.mxu0 %v637
  %670 = vmatprep.subr.bf16.mxu0 0
  %671 = vmatpush1.bf16.msra.mxu0 %v638
  %672 = vmatprep.subr.bf16.mxu0 0
  %673 = vmatpush1.bf16.msra.mxu0 %v639
  %674 = vmatprep.subr.bf16.mxu0 0
  %675 = vmatpush1.bf16.msra.mxu0 %v640
  %676 = vmatprep.subr.bf16.mxu0 0
  %677 = vmatpush1.bf16.msra.mxu0 %v641
  %678 = vmatprep.subr.bf16.mxu0 0
  %679 = vmatpush1.bf16.msra.mxu0 %v642
  %680 = vmatprep.subr.bf16.mxu0 0
  %681 = vmatpush1.bf16.msra.mxu0 %v643
  %682 = vmatprep.subr.bf16.mxu0 0
  %683 = vmatpush1.bf16.msra.mxu0 %v644
  %684 = vmatprep.subr.bf16.mxu0 0
  %685 = vmatpush1.bf16.msra.mxu0 %v645
  %686 = vmatprep.subr.bf16.mxu0 0
  %687 = vmatpush1.bf16.msra.mxu0 %v646
  %688 = vmatprep.mubr.bf16.mxu0 %v653
  %689 = vmatmul.mubr.bf16.gmra.mrb[0].mxu0 %v652
  %v690 = vpop.f32.mrb[0].mxu0
  %v691 = vadd.f32 0.0, %v690
  %v692 = vpop.f32.mrb[0].mxu0
  %v693 = vpop.f32.mrb[0].mxu0
  %v694 = vpop.f32.mrb[0].mxu0
  %695 = vdwg.mxu0
  %v696 = vadd.f32 %v647, %v691
  %697 = vst [vmem:[#allocation2] sm:$0xff] %v696
  // Predicated region
  $region22: #{nlayer_discriminator_forward.7} parent=0 // pred_check
    %p698 = pneg %p18
  $region23: #{nlayer_discriminator_forward.7} parent=0 // pred_check_branch
    %700 = sbr.rel (%p698) target = $region25
  $region24: #{nlayer_discriminator_forward.7} parent=0 // pred_region
    %v701 = vld [vmem:[#allocation2] sm:$0xff]
    %702 = vst [vmem:[%s4] sm:$0xff] %v701
  $region25: #{nlayer_discriminator_forward.7} parent=0 // pred_fallthru
    _
  // Predicated region
  $region26: #{nlayer_discriminator_forward.7} parent=0 // pred_check
    _
  $region27: #{nlayer_discriminator_forward.7} parent=0 // pred_check_branch
    %704 = sbr.rel (0) target = $region29
  $region28: #{nlayer_discriminator_forward.7} parent=0 // pred_region
    _
  $region29: #{nlayer_discriminator_forward.7} parent=0 // pred_fallthru
    _
  // Predicated region
  $region30: #{nlayer_discriminator_forward.7} parent=0 // pred_check
    _
  $region31: #{nlayer_discriminator_forward.7} parent=0 // pred_check_branch
    %706 = sbr.rel (0) target = $region33
  $region32: #{nlayer_discriminator_forward.7} parent=0 // pred_region
    _
  $region33: #{nlayer_discriminator_forward.7} parent=0 // pred_fallthru
    _

</llo_original>
